<compile_context>
chip_gen: v7x
topology: tpu7x:2x2x1
jax: 0.10.0
libtpu: 0.0.40
codegen_flags: <defaults>
</compile_context>

<pallas_src>
import functools

import jax
import jax.numpy as jnp
from jax.experimental import pallas as pl
from jax.experimental.pallas import tpu as pltpu

HID = 10            # hidden width used throughout the torch module
NEG_SLOPE = 0.2     # GATv2 leaky-relu slope
FPAD = 16           # padded feature width == contraction dim of every weight
PAD = 128           # lane width of the narrow slabs and of the output


# ------------------------------- fused kernel --------------------------------

def comb_kernel(feat_ref, adj_ref, w_ref, wx_ref, b_ref, bx_ref, out_ref, *,
                out_dim):
    N = out_ref.shape[0]
    F = FPAD
    NL = N * F

    feats = feat_ref[...]                       # [N,128] f32: x | z | e_sum bands
    adj = adj_ref[...]                          # [N,128] f32: 5 adjacency bands

    x16 = feats[:, 0:F]
    z = feats[:, F:2 * F]
    e16 = feats[:, 2 * F:3 * F]

    a_x = adj[:, 0 * N:1 * N]                   # edge_index
    a_1 = adj[:, 1 * N:2 * N]                   # z1edge_index
    a1sl = adj[:, 2 * N:3 * N]                  # z1edge_index + self loops
    a2sl = adj[:, 3 * N:4 * N]                  # z2edge_index + self loops
    a_3 = adj[:, 4 * N:5 * N]                   # z3edge_index

    # ---- hoisted constants shared by all GATv2 / SAGE layers ----------------
    # expanded lane index c = j*F + f  (j = source node, f = feature)
    k_row = jax.lax.broadcasted_iota(jnp.int32, (N, NL), 0)
    c_col = jax.lax.broadcasted_iota(jnp.int32, (N, NL), 1)
    lo = k_row * F
    selj = ((c_col >= lo) & (c_col < lo + F)).astype(jnp.float32)  # k == j(c)
    selj_bf = selj.astype(jnp.bfloat16)
    rF = jax.lax.broadcasted_iota(jnp.int32, (F, NL), 0)
    cF = jax.lax.broadcasted_iota(jnp.int32, (F, NL), 1)
    fexp = (((cF - rF) & (F - 1)) == 0).astype(jnp.bfloat16)       # f' == f(c)
    ones_nn = jnp.ones((N, N), jnp.float32)

    # ---- slab cursors (order must match pack_params) -------------------------
    wi, wxi, bi, bxi = [0], [0], [0], [0]

    def W():
        k = wi[0]; wi[0] += 1
        return w_ref[k]                          # [16,128] bf16

    def WX():
        k = wxi[0]; wxi[0] += 1
        return wx_ref[k]                         # [16,2*NL] bf16

    def B():
        k = bi[0]; bi[0] += 1
        return b_ref[pl.ds(k, 1), :]             # [1,128] f32

    def BX():
        k = bxi[0]; bxi[0] += 1
        return bx_ref[pl.ds(k, 1), :]            # [1,2*NL] f32

    # ---- building blocks ------------------------------------------------------
    def dot(a, b):                               # single-pass bf16 MXU, f32 accum
        return jax.lax.dot_general(
            a.astype(jnp.bfloat16), b.astype(jnp.bfloat16),
            (((1,), (0,)), ((), ())), preferred_element_type=jnp.float32)

    def dot_t(a, b):                             # a @ b.T
        return jax.lax.dot_general(
            a.astype(jnp.bfloat16), b.astype(jnp.bfloat16),
            (((1,), (1,)), ((), ())), preferred_element_type=jnp.float32)

    def msoftmax(scores, a_f):                   # softmax over axis=1 on edges only
        s = jnp.where(a_f > 0, scores, jnp.float32(-1e30))
        m = jnp.max(s, axis=1, keepdims=True)
        e = jnp.exp(s - m) * a_f
        d = jnp.maximum(jnp.sum(e, axis=1, keepdims=True), jnp.float32(1e-30))
        return e * pl.reciprocal(d, approx=True)

    relu = lambda t: jnp.maximum(t, jnp.float32(0.0))

    def transformer(x, a_f):
        # PyG TransformerConv(10,10): fused q|k|v|skip projection (16-lane bands)
        y = dot(x, W()) + B()
        q, k = y[:, 0:F], y[:, F:2 * F]
        v, s = y[:, 2 * F:3 * F], y[:, 3 * F:4 * F]
        p = msoftmax(dot_t(q, k) * jnp.float32(HID ** -0.5), a_f)
        return dot(p, v) + s

    def general(x, a_f):
        # PyG GeneralConv(10,10): sum_j lin_msg(x_j) + x_i (identity self term)
        msg = (dot(x, W()) + B())[:, 0:F]
        return dot(a_f, msg) + x

    def gatv2(x, a_f):
        # PyG GATv2Conv(10,10), heads=1, self loops baked into a_f.
        # Pre-expanded weights: y = [xl_exp | xr_exp] with lanes c = j*F + f.
        y = dot(x, WX()) + BX()
        xl_exp, xr_exp = y[:, 0:NL], y[:, NL:2 * NL]
        att = BX()[:, 0:NL]                      # att[f(c)] per lane
        xl_bc = dot(ones_nn, xl_exp * selj)      # xl[j(c), f(c)] on every row
        pair = xr_exp + xl_bc
        act = jnp.where(pair > 0, pair, jnp.float32(NEG_SLOPE) * pair)
        scores = dot_t(act * att, selj_bf)       # [N,N]: sum_f att_f*leaky(...)
        p = msoftmax(scores, a_f)
        xl = xl_exp[:, 0:F]                      # block j=0 == plain lin_l(x)
        return dot(p, xl) + B()[:, 0:F]

    def sage_max(x, a_f):
        # PyG SAGEConv(10,10, aggr='max').  Relies on x >= 0 (input follows a
        # ReLU in this module), so the masked neighbour max equals
        # max_j A[i,j]*x[j,f]; rows with no edges aggregate to 0 (PyG default).
        x_exp = dot(x, fexp)                     # x[k, f(c)]
        big = dot(a_f, x_exp * selj)             # A[i, j(c)] * x[j(c), f(c)]
        m, width = big, NL
        while width > F:                         # lane-fold max over j
            width //= 2
            m = jnp.maximum(m[:, :width], m[:, width:])
        wl, bl, wr = W(), B(), W()
        return (dot(m, wl) + bl + dot(x, wr))[:, 0:F]

    # ---------------------------- z branch ------------------------------------
    z = (dot(z, W()) + B())[:, 0:F]              # node_encz1
    z = relu(transformer(z, a_1))                # convz1 (+ relu)
    z = transformer(z, a_1)                      # convz2
    z = (dot(z, W()) + B())[:, 0:F]              # linxz
    z = relu(general(z, a_1))                    # convxz1 (+ relu)
    z = relu(gatv2(z, a2sl))                     # convxz2 (+ relu)
    z = relu(gatv2(z, a1sl))                     # convxz3 (+ relu)
    z = relu(sage_max(z, a_3))                   # convxz4 (+ relu)
    z = gatv2(z, a1sl)                           # convxz5

    # ---------------------------- x branch ------------------------------------
    # TODO(synk): `ownLayer` source is not included in the provided module;
    # implemented as a generic edge-conditioned message-passing layer:
    #   out_i = x_i @ W_self + sum_j A[i,j] (x_j @ W_msg)
    #           + (sum_j edge_attr_{j->i}) @ W_edge + b
    # torch.hstack() inputs are handled by weight row-splits (no lane concat).
    xw = dot(x16, W())                           # bands: self1|msg1|self2_x|msg2_x
    ew = dot(e16, W()) + B()                     # bands: e1+b1 | e2+b2 | e3+b3
    self1, msg1 = xw[:, 0:F], xw[:, F:2 * F]
    self2x, msg2x = xw[:, 2 * F:3 * F], xw[:, 3 * F:4 * F]
    e1, e2, e3 = ew[:, 0:F], ew[:, F:2 * F], ew[:, 2 * F:3 * F]

    x1 = self1 + dot(a_x, msg1) + e1             # l1   (`x1.relu()` is a no-op)
    x1w = dot(x1, W())                           # bands: self2_h | msg2_h
    x2 = (self2x + x1w[:, 0:F]
          + dot(a_x, msg2x + x1w[:, F:2 * F]) + e2)        # l2 (`x.relu()` no-op)
    x2w = dot(x2, W())                           # bands: self3 | msg3
    x3 = x2w[:, 0:F] + dot(a_x, x2w[:, F:2 * F]) + e3      # l3 (`x.relu()` no-op)

    # lin on hstack((x3, z)) realized as row-split weights
    logits = dot(x3, W()) + dot(z, W()) + B()    # [N,128]

    # row softmax over the real out_dim lanes; padded lanes underflow to 0.
    col = jax.lax.broadcasted_iota(jnp.int32, logits.shape, 1)
    s = jnp.where(col < out_dim, logits, jnp.float32(-1e30))
    m = jnp.max(s, axis=1, keepdims=True)
    e = jnp.exp(s - m)
    out_ref[...] = e / jnp.sum(e, axis=1, keepdims=True)


# --------------------------------- wrapper ------------------------------------

@functools.partial(jax.jit, static_argnames=("out_dim",))
def comb_forward(x, z, edge_index, z1edge_index, z2edge_index, z3edge_index,
                 edge_attr, pickable, w_slab, wx_slab, b_slab, bx_slab, *,
                 out_dim):
    n = x.shape[0]
    # TODO(synk): generalize to non-power-of-two / large N with a row-tile grid.
    assert n & (n - 1) == 0, "node count must be a power of two (lane folds)"
    assert 5 * n <= PAD
    assert max(x.shape[1], z.shape[1], edge_attr.shape[1]) <= FPAD
    assert out_dim <= PAD

    def dense_adj(ei):
        # A[i, j] = 1 iff edge j -> i (PyG source->target message direction)
        return jnp.zeros((n, n), jnp.float32).at[ei[1], ei[0]].set(1.0)

    ax = dense_adj(edge_index)
    a1 = dense_adj(z1edge_index)
    a2 = dense_adj(z2edge_index)
    a3 = dense_adj(z3edge_index)
    eye = jnp.eye(n, dtype=jnp.float32)

    # lane-dense adjacency slab: [ ax | a1 | a1+self | a2+self | a3 ]
    adjs = jnp.zeros((n, PAD), jnp.float32)
    adjs = adjs.at[:, 0 * n:1 * n].set(ax)
    adjs = adjs.at[:, 1 * n:2 * n].set(a1)
    adjs = adjs.at[:, 2 * n:3 * n].set(jnp.maximum(a1, eye))
    adjs = adjs.at[:, 3 * n:4 * n].set(jnp.maximum(a2, eye))
    adjs = adjs.at[:, 4 * n:5 * n].set(a3)

    # sparse segment-sum of edge attrs per target node (replaces dense [N,N,EF])
    e_sum = jnp.zeros((n, edge_attr.shape[1]), jnp.float32
                      ).at[edge_index[1]].add(edge_attr)

    # lane-dense feature slab: [ x | z | e_sum ] in 16-lane bands
    feats = jnp.zeros((n, PAD), jnp.float32)
    feats = feats.at[:, 0:x.shape[1]].set(x.astype(jnp.float32))
    feats = feats.at[:, FPAD:FPAD + z.shape[1]].set(z.astype(jnp.float32))
    feats = feats.at[:, 2 * FPAD:2 * FPAD + e_sum.shape[1]].set(e_sum)

    nl = n * FPAD
    cost = pl.CostEstimate(
        flops=int(2 * n * FPAD * PAD * w_slab.shape[0]
                  + 2 * n * FPAD * 2 * nl * wx_slab.shape[0]
                  + 2 * n * n * (8 * FPAD + 4 * nl)),
        transcendentals=int(6 * n * n + n * PAD),
        bytes_accessed=int(4 * (feats.size + adjs.size + b_slab.size
                                + bx_slab.size + n * PAD)
                           + 2 * (w_slab.size + wx_slab.size)),
    )

    probs = pl.pallas_call(
        functools.partial(comb_kernel, out_dim=out_dim),
        out_shape=jax.ShapeDtypeStruct((n, PAD), jnp.float32),
        in_specs=[pl.BlockSpec(memory_space=pltpu.MemorySpace.VMEM)] * 6,
        out_specs=pl.BlockSpec(memory_space=pltpu.MemorySpace.VMEM),
        compiler_params=pltpu.CompilerParams(vmem_limit_bytes=32 * 1024 * 1024),
        cost_estimate=cost,
    )(feats, adjs, w_slab, wx_slab, b_slab, bx_slab)

    # torch: x = x[pickable]; softmax(dim=1)  (row gather commutes with the row
    # softmax); padded lanes are stripped here.
    return jnp.take(probs, pickable, axis=0)[:, :out_dim]


# ------------------------- parameter construction -----------------------------

def make_params(zf, xf, ef, out_dim, key):
    """Random logical parameters mirroring the torch module structure."""
    shapes = []

    def lin(fin, fout):
        shapes.append((fin, fout))
        shapes.append((1, fout))

    def gatv2():
        lin(HID, HID)             # lin_l (W, b)
        lin(HID, HID)             # lin_r (W, b)
        shapes.append((1, HID))   # att
        shapes.append((1, HID))   # bias

    def own(fin):
        shapes.append((fin, HID))   # W_self
        shapes.append((fin, HID))   # W_msg
        shapes.append((ef, HID))    # W_edge
        shapes.append((1, HID))     # bias

    lin(zf, HID)                    # node_encz1
    for _ in range(2):              # convz1, convz2 (TransformerConv q,k,v,skip)
        for _ in range(4):
            lin(HID, HID)
    lin(HID, HID)                   # linxz
    lin(HID, HID)                   # convxz1 (GeneralConv lin_msg)
    gatv2()                         # convxz2
    gatv2()                         # convxz3
    lin(HID, HID)                   # convxz4 SAGE lin_l
    shapes.append((HID, HID))       # convxz4 SAGE lin_r (no bias)
    gatv2()                         # convxz5
    own(xf)                         # l1
    own(HID + xf)                   # l2
    own(HID)                        # l3
    lin(2 * HID, out_dim)           # lin

    keys = jax.random.split(key, len(shapes))
    params = []
    for s, k in zip(shapes, keys):
        scale = 0.05 if s[0] == 1 else 0.2
        params.append(jax.random.normal(k, s, jnp.float32) * scale)
    return params


def pack_params(params, xf, n):
    """Pack logical params into the four slabs the kernel consumes:
         w_slab  [13, 16, 128]      bf16  narrow weights (16-lane output bands)
         wx_slab [3, 16, 2*n*16]    bf16  GATv2 [lin_l | lin_r], expanded over j
         b_slab  [11, 128]          f32   bias / fused-bias rows
         bx_slab [6, 2*n*16]        f32   GATv2 expanded biases + att rows
       The packing order must match the cursor order in comb_kernel."""
    F = FPAD
    it = iter(params)
    nxt = lambda: next(it)
    ws, wxs, bs, bxs = [], [], [], []

    def wslot(blocks):
        w = jnp.zeros((F, PAD), jnp.float32)
        for arr, off in blocks:
            w = w.at[:arr.shape[0], off:off + arr.shape[1]].set(arr)
        return w

    def brow(blocks):
        b = jnp.zeros((PAD,), jnp.float32)
        for arr, off in blocks:
            v = jnp.reshape(arr, (-1,))
            b = b.at[off:off + v.shape[0]].set(v)
        return b

    def expand_w(w):                 # [fin, HID] -> [F, n*F] repeated per j block
        wp = jnp.zeros((F, F), jnp.float32).at[:w.shape[0], :w.shape[1]].set(w)
        return jnp.tile(wp, (1, n))

    def expand_row(r):               # [1, HID] -> [n*F]
        rp = jnp.zeros((F,), jnp.float32).at[:r.size].set(jnp.reshape(r, (-1,)))
        return jnp.tile(rp, (n,))

    def put_lin():
        w, b = nxt(), nxt()
        ws.append(wslot([(w, 0)]))
        bs.append(brow([(b, 0)]))

    def put_transformer():           # fuse q|k|v|skip into 16-lane bands
        wq, bq, wk, bk, wv, bv, wsk, bsk = (nxt() for _ in range(8))
        ws.append(wslot([(wq, 0), (wk, F), (wv, 2 * F), (wsk, 3 * F)]))
        bs.append(brow([(bq, 0), (bk, F), (bv, 2 * F), (bsk, 3 * F)]))

    def put_gatv2():                 # pre-expanded [lin_l | lin_r] + att + bias
        wl, bl, wr, br, att, bout = (nxt() for _ in range(6))
        wxs.append(jnp.concatenate([expand_w(wl), expand_w(wr)], axis=1))
        bxs.append(jnp.concatenate([expand_row(bl), expand_row(br)]))
        bxs.append(jnp.concatenate([expand_row(att),
                                    jnp.zeros((n * F,), jnp.float32)]))
        bs.append(brow([(bout, 0)]))

    put_lin()                        # node_encz1
    put_transformer()                # convz1
    put_transformer()                # convz2
    put_lin()                        # linxz
    put_lin()                        # convxz1
    put_gatv2()                      # convxz2
    put_gatv2()                      # convxz3
    wl_s, bl_s, wr_s = nxt(), nxt(), nxt()      # convxz4 (SAGE, lin_r has no bias)
    ws.append(wslot([(wl_s, 0)]))
    ws.append(wslot([(wr_s, 0)]))
    bs.append(brow([(bl_s, 0)]))
    put_gatv2()                      # convxz5

    ws1, wm1, we1, b1 = nxt(), nxt(), nxt(), nxt()   # l1
    ws2, wm2, we2, b2 = nxt(), nxt(), nxt(), nxt()   # l2 (rows split: x | x1)
    ws3, wm3, we3, b3 = nxt(), nxt(), nxt(), nxt()   # l3
    w_lin, b_lin = nxt(), nxt()                      # lin (rows split: x3 | z)

    # x-LHS fused weight: self1 | msg1 | self2_x | msg2_x
    ws.append(wslot([(ws1, 0), (wm1, F), (ws2[:xf], 2 * F), (wm2[:xf], 3 * F)]))
    # edge projections of all three ownLayers; layer biases folded into bands
    ws.append(wslot([(we1, 0), (we2, F), (we3, 2 * F)]))
    bs.append(brow([(b1, 0), (b2, F), (b3, 2 * F)]))
    # l2 x1-part, l3
    ws.append(wslot([(ws2[xf:], 0), (wm2[xf:], F)]))
    ws.append(wslot([(ws3, 0), (wm3, F)]))
    # lin split into x3 / z row blocks
    ws.append(wslot([(w_lin[:HID], 0)]))
    ws.append(wslot([(w_lin[HID:], 0)]))
    bs.append(brow([(b_lin, 0)]))

    assert len(ws) == 13 and len(wxs) == 3 and len(bs) == 11 and len(bxs) == 6
    assert sum(1 for _ in it) == 0

    return (jnp.stack(ws).astype(jnp.bfloat16),
            jnp.stack(wxs).astype(jnp.bfloat16),
            jnp.stack(bs),
            jnp.stack(bxs))


# ----------------------------------- demo -------------------------------------

if __name__ == "__main__":
    N, ZF, XF, EF, OUT = 16, 8, 6, 4, 4

    root = jax.random.PRNGKey(0)
    kx, kz, ke, kp = jax.random.split(root, 4)

    x = jax.random.normal(kx, (N, XF), jnp.float32)
    z = jax.random.normal(kz, (N, ZF), jnp.float32)

    def ring_edges(n, offsets):
        src, dst = [], []
        for o in offsets:
            for i in range(n):
                src.append(i)
                dst.append((i + o) % n)
        return jnp.array([src, dst], dtype=jnp.int32)

    edge_index = ring_edges(N, [1, 3])        # x graph
    z1edge_index = ring_edges(N, [1, N - 1])  # z graph 1
    z2edge_index = ring_edges(N, [2])         # z graph 2
    z3edge_index = ring_edges(N, [5])         # z graph 3

    edge_attr = jax.random.normal(ke, (edge_index.shape[1], EF), jnp.float32)
    pickable = jnp.array([0, 3, 7, 12], dtype=jnp.int32)

    params = make_params(ZF, XF, EF, OUT, kp)
    w_slab, wx_slab, b_slab, bx_slab = pack_params(params, XF, N)

    out = comb_forward(x, z, edge_index, z1edge_index, z2edge_index,
                       z3edge_index, edge_attr, pickable,
                       w_slab, wx_slab, b_slab, bx_slab, out_dim=OUT)
    out = jax.block_until_ready(out)

    assert out.shape == (pickable.shape[0], OUT)
    assert bool(jnp.all(jnp.isfinite(out)))
    assert bool(jnp.allclose(jnp.sum(out, axis=1), 1.0, atol=1e-5))
    print("KERNEL_OK")
</pallas_src>

<mosaic_0001>
module attributes {stable_mosaic.version = 11 : i64} {
  func.func @comb_kernel(%arg0: memref<16x128xf32, #tpu.memory_space<vmem>>, %arg1: memref<16x128xf32, #tpu.memory_space<vmem>>, %arg2: memref<13x16x128xbf16, #tpu.memory_space<vmem>>, %arg3: memref<3x16x512xbf16, #tpu.memory_space<vmem>>, %arg4: memref<11x128xf32, #tpu.memory_space<vmem>>, %arg5: memref<6x512xf32, #tpu.memory_space<vmem>>, %arg6: memref<16x128xf32, #tpu.memory_space<vmem>>) attributes {dimension_semantics = [], scalar_prefetch = 0 : i64, scratch_operands = 0 : i64, tpu.core_type = #tpu.core_type<tc>} {
    %c0 = arith.constant 0 : index
    %c0_0 = arith.constant 0 : index
    %0 = vector.load %arg0[%c0, %c0_0] : memref<16x128xf32, #tpu.memory_space<vmem>>, vector<16x128xf32>
    %c0_1 = arith.constant 0 : index
    %c0_2 = arith.constant 0 : index
    %1 = vector.load %arg1[%c0_1, %c0_2] : memref<16x128xf32, #tpu.memory_space<vmem>>, vector<16x128xf32>
    %2 = vector.extract_strided_slice %0 {offsets = [0, 0], sizes = [16, 16], strides = [1, 1]} : vector<16x128xf32> to vector<16x16xf32>
    %3 = vector.extract_strided_slice %0 {offsets = [0, 16], sizes = [16, 16], strides = [1, 1]} : vector<16x128xf32> to vector<16x16xf32>
    %4 = vector.extract_strided_slice %0 {offsets = [0, 32], sizes = [16, 16], strides = [1, 1]} : vector<16x128xf32> to vector<16x16xf32>
    %5 = vector.extract_strided_slice %1 {offsets = [0, 0], sizes = [16, 16], strides = [1, 1]} : vector<16x128xf32> to vector<16x16xf32>
    %6 = vector.extract_strided_slice %1 {offsets = [0, 16], sizes = [16, 16], strides = [1, 1]} : vector<16x128xf32> to vector<16x16xf32>
    %7 = vector.extract_strided_slice %1 {offsets = [0, 32], sizes = [16, 16], strides = [1, 1]} : vector<16x128xf32> to vector<16x16xf32>
    %8 = vector.extract_strided_slice %1 {offsets = [0, 48], sizes = [16, 16], strides = [1, 1]} : vector<16x128xf32> to vector<16x16xf32>
    %9 = vector.extract_strided_slice %1 {offsets = [0, 64], sizes = [16, 16], strides = [1, 1]} : vector<16x128xf32> to vector<16x16xf32>
    %10 = tpu.iota {dimensions = array<i32: 0>} : vector<16x256xi32>
    %11 = tpu.iota {dimensions = array<i32: 1>} : vector<16x256xi32>
    %c16_i32 = arith.constant 16 : i32
    %12 = vector.broadcast %c16_i32 : i32 to vector<16x256xi32>
    %13 = arith.muli %10, %12 : vector<16x256xi32>
    %14 = arith.cmpi sge, %11, %13 : vector<16x256xi32>
    %c16_i32_3 = arith.constant 16 : i32
    %15 = vector.broadcast %c16_i32_3 : i32 to vector<16x256xi32>
    %16 = arith.addi %13, %15 : vector<16x256xi32>
    %17 = arith.cmpi slt, %11, %16 : vector<16x256xi32>
    %18 = arith.andi %14, %17 : vector<16x256xi1>
    %19 = arith.extui %18 : vector<16x256xi1> to vector<16x256xi32>
    %20 = arith.sitofp %19 : vector<16x256xi32> to vector<16x256xf32>
    %21 = arith.truncf %20 : vector<16x256xf32> to vector<16x256xbf16>
    %22 = tpu.iota {dimensions = array<i32: 0>} : vector<16x256xi32>
    %23 = tpu.iota {dimensions = array<i32: 1>} : vector<16x256xi32>
    %24 = arith.subi %23, %22 : vector<16x256xi32>
    %c15_i32 = arith.constant 15 : i32
    %25 = vector.broadcast %c15_i32 : i32 to vector<16x256xi32>
    %26 = arith.andi %24, %25 : vector<16x256xi32>
    %c0_i32 = arith.constant 0 : i32
    %27 = vector.broadcast %c0_i32 : i32 to vector<16x256xi32>
    %28 = arith.cmpi eq, %26, %27 : vector<16x256xi32>
    %29 = arith.extui %28 : vector<16x256xi1> to vector<16x256xi32>
    %30 = arith.sitofp %29 : vector<16x256xi32> to vector<16x256xf32>
    %31 = arith.truncf %30 : vector<16x256xf32> to vector<16x256xbf16>
    %cst = arith.constant 1.000000e+00 : f32
    %32 = vector.broadcast %cst : f32 to vector<16x16xf32>
    %c0_4 = arith.constant 0 : index
    %c0_5 = arith.constant 0 : index
    %c0_6 = arith.constant 0 : index
    %33 = vector.load %arg2[%c0_4, %c0_5, %c0_6] : memref<13x16x128xbf16, #tpu.memory_space<vmem>>, vector<1x16x128xbf16>
    %34 = vector.shape_cast %33 : vector<1x16x128xbf16> to vector<16x128xbf16>
    %35 = arith.truncf %3 : vector<16x16xf32> to vector<16x16xbf16>
    %cst_7 = arith.constant dense<0.000000e+00> : vector<16x128xf32>
    %36 = tpu.matmul %35, %34, %cst_7 {dimension_numbers = #tpu.dot_dimension_numbers<[1], [0], [0], [1], [0, 0, 1, 1], [], []>} : vector<16x16xbf16>, vector<16x128xbf16>, vector<16x128xf32> -> vector<16x128xf32>
    %c0_8 = arith.constant 0 : index
    %c0_9 = arith.constant 0 : index
    %37 = vector.load %arg4[%c0_8, %c0_9] : memref<11x128xf32, #tpu.memory_space<vmem>>, vector<1x128xf32>
    %38 = vector.broadcast %37 : vector<1x128xf32> to vector<16x128xf32>
    %39 = arith.addf %36, %38 : vector<16x128xf32>
    %40 = vector.extract_strided_slice %39 {offsets = [0, 0], sizes = [16, 16], strides = [1, 1]} : vector<16x128xf32> to vector<16x16xf32>
    %c1 = arith.constant 1 : index
    %c0_10 = arith.constant 0 : index
    %c0_11 = arith.constant 0 : index
    %41 = vector.load %arg2[%c1, %c0_10, %c0_11] : memref<13x16x128xbf16, #tpu.memory_space<vmem>>, vector<1x16x128xbf16>
    %42 = vector.shape_cast %41 : vector<1x16x128xbf16> to vector<16x128xbf16>
    %43 = arith.truncf %40 : vector<16x16xf32> to vector<16x16xbf16>
    %cst_12 = arith.constant dense<0.000000e+00> : vector<16x128xf32>
    %44 = tpu.matmul %43, %42, %cst_12 {dimension_numbers = #tpu.dot_dimension_numbers<[1], [0], [0], [1], [0, 0, 1, 1], [], []>} : vector<16x16xbf16>, vector<16x128xbf16>, vector<16x128xf32> -> vector<16x128xf32>
    %c1_13 = arith.constant 1 : index
    %c0_14 = arith.constant 0 : index
    %45 = vector.load %arg4[%c1_13, %c0_14] : memref<11x128xf32, #tpu.memory_space<vmem>>, vector<1x128xf32>
    %46 = vector.broadcast %45 : vector<1x128xf32> to vector<16x128xf32>
    %47 = arith.addf %44, %46 : vector<16x128xf32>
    %48 = vector.extract_strided_slice %47 {offsets = [0, 0], sizes = [16, 16], strides = [1, 1]} : vector<16x128xf32> to vector<16x16xf32>
    %49 = vector.extract_strided_slice %47 {offsets = [0, 16], sizes = [16, 16], strides = [1, 1]} : vector<16x128xf32> to vector<16x16xf32>
    %50 = vector.extract_strided_slice %47 {offsets = [0, 32], sizes = [16, 16], strides = [1, 1]} : vector<16x128xf32> to vector<16x16xf32>
    %51 = vector.extract_strided_slice %47 {offsets = [0, 48], sizes = [16, 16], strides = [1, 1]} : vector<16x128xf32> to vector<16x16xf32>
    %52 = arith.truncf %48 : vector<16x16xf32> to vector<16x16xbf16>
    %53 = arith.truncf %49 : vector<16x16xf32> to vector<16x16xbf16>
    %cst_15 = arith.constant dense<0.000000e+00> : vector<16x16xf32>
    %54 = tpu.matmul %52, %53, %cst_15 {dimension_numbers = #tpu.dot_dimension_numbers<[1], [1], [0], [0], [0, 0, 1, 0], [], []>} : vector<16x16xbf16>, vector<16x16xbf16>, vector<16x16xf32> -> vector<16x16xf32>
    %cst_16 = arith.constant 0.316227764 : f32
    %55 = vector.broadcast %cst_16 : f32 to vector<16x16xf32>
    %56 = arith.mulf %54, %55 : vector<16x16xf32>
    %cst_17 = arith.constant 0.000000e+00 : f32
    %57 = vector.broadcast %cst_17 : f32 to vector<16x16xf32>
    %58 = arith.cmpf ogt, %6, %57 : vector<16x16xf32>
    %cst_18 = arith.constant -1.000000e+30 : f32
    %59 = vector.broadcast %cst_18 : f32 to vector<16x16xf32>
    %60 = arith.select %58, %56, %59 : vector<16x16xi1>, vector<16x16xf32>
    %cst_19 = arith.constant dense<0xFF800000> : vector<16xf32>
    %61 = vector.multi_reduction <maximumf>, %60, %cst_19 [1] : vector<16x16xf32> to vector<16xf32>
    %62 = vector.shape_cast %61 : vector<16xf32> to vector<16x1xf32>
    %63 = vector.broadcast %62 : vector<16x1xf32> to vector<16x16xf32>
    %64 = arith.subf %60, %63 : vector<16x16xf32>
    %65 = math.exp %64 : vector<16x16xf32>
    %66 = arith.mulf %65, %6 : vector<16x16xf32>
    %cst_20 = arith.constant dense<0.000000e+00> : vector<16xf32>
    %67 = vector.multi_reduction <add>, %66, %cst_20 [1] : vector<16x16xf32> to vector<16xf32>
    %68 = vector.shape_cast %67 : vector<16xf32> to vector<16x1xf32>
    %cst_21 = arith.constant 1.000000e-30 : f32
    %69 = vector.broadcast %cst_21 : f32 to vector<16x1xf32>
    %70 = arith.maximumf %68, %69 : vector<16x1xf32>
    %71 = tpu.reciprocal %70 {approx = true} : vector<16x1xf32> -> vector<16x1xf32>
    %72 = vector.broadcast %71 : vector<16x1xf32> to vector<16x16xf32>
    %73 = arith.mulf %66, %72 : vector<16x16xf32>
    %74 = arith.truncf %73 : vector<16x16xf32> to vector<16x16xbf16>
    %75 = arith.truncf %50 : vector<16x16xf32> to vector<16x16xbf16>
    %cst_22 = arith.constant dense<0.000000e+00> : vector<16x16xf32>
    %76 = tpu.matmul %74, %75, %cst_22 {dimension_numbers = #tpu.dot_dimension_numbers<[1], [0], [0], [1], [0, 0, 1, 1], [], []>} : vector<16x16xbf16>, vector<16x16xbf16>, vector<16x16xf32> -> vector<16x16xf32>
    %77 = arith.addf %76, %51 : vector<16x16xf32>
    %cst_23 = arith.constant 0.000000e+00 : f32
    %78 = vector.broadcast %cst_23 : f32 to vector<16x16xf32>
    %79 = arith.maximumf %77, %78 : vector<16x16xf32>
    %c2 = arith.constant 2 : index
    %c0_24 = arith.constant 0 : index
    %c0_25 = arith.constant 0 : index
    %80 = vector.load %arg2[%c2, %c0_24, %c0_25] : memref<13x16x128xbf16, #tpu.memory_space<vmem>>, vector<1x16x128xbf16>
    %81 = vector.shape_cast %80 : vector<1x16x128xbf16> to vector<16x128xbf16>
    %82 = arith.truncf %79 : vector<16x16xf32> to vector<16x16xbf16>
    %cst_26 = arith.constant dense<0.000000e+00> : vector<16x128xf32>
    %83 = tpu.matmul %82, %81, %cst_26 {dimension_numbers = #tpu.dot_dimension_numbers<[1], [0], [0], [1], [0, 0, 1, 1], [], []>} : vector<16x16xbf16>, vector<16x128xbf16>, vector<16x128xf32> -> vector<16x128xf32>
    %c2_27 = arith.constant 2 : index
    %c0_28 = arith.constant 0 : index
    %84 = vector.load %arg4[%c2_27, %c0_28] : memref<11x128xf32, #tpu.memory_space<vmem>>, vector<1x128xf32>
    %85 = vector.broadcast %84 : vector<1x128xf32> to vector<16x128xf32>
    %86 = arith.addf %83, %85 : vector<16x128xf32>
    %87 = vector.extract_strided_slice %86 {offsets = [0, 0], sizes = [16, 16], strides = [1, 1]} : vector<16x128xf32> to vector<16x16xf32>
    %88 = vector.extract_strided_slice %86 {offsets = [0, 16], sizes = [16, 16], strides = [1, 1]} : vector<16x128xf32> to vector<16x16xf32>
    %89 = vector.extract_strided_slice %86 {offsets = [0, 32], sizes = [16, 16], strides = [1, 1]} : vector<16x128xf32> to vector<16x16xf32>
    %90 = vector.extract_strided_slice %86 {offsets = [0, 48], sizes = [16, 16], strides = [1, 1]} : vector<16x128xf32> to vector<16x16xf32>
    %91 = arith.truncf %87 : vector<16x16xf32> to vector<16x16xbf16>
    %92 = arith.truncf %88 : vector<16x16xf32> to vector<16x16xbf16>
    %cst_29 = arith.constant dense<0.000000e+00> : vector<16x16xf32>
    %93 = tpu.matmul %91, %92, %cst_29 {dimension_numbers = #tpu.dot_dimension_numbers<[1], [1], [0], [0], [0, 0, 1, 0], [], []>} : vector<16x16xbf16>, vector<16x16xbf16>, vector<16x16xf32> -> vector<16x16xf32>
    %cst_30 = arith.constant 0.316227764 : f32
    %94 = vector.broadcast %cst_30 : f32 to vector<16x16xf32>
    %95 = arith.mulf %93, %94 : vector<16x16xf32>
    %cst_31 = arith.constant 0.000000e+00 : f32
    %96 = vector.broadcast %cst_31 : f32 to vector<16x16xf32>
    %97 = arith.cmpf ogt, %6, %96 : vector<16x16xf32>
    %cst_32 = arith.constant -1.000000e+30 : f32
    %98 = vector.broadcast %cst_32 : f32 to vector<16x16xf32>
    %99 = arith.select %97, %95, %98 : vector<16x16xi1>, vector<16x16xf32>
    %cst_33 = arith.constant dense<0xFF800000> : vector<16xf32>
    %100 = vector.multi_reduction <maximumf>, %99, %cst_33 [1] : vector<16x16xf32> to vector<16xf32>
    %101 = vector.shape_cast %100 : vector<16xf32> to vector<16x1xf32>
    %102 = vector.broadcast %101 : vector<16x1xf32> to vector<16x16xf32>
    %103 = arith.subf %99, %102 : vector<16x16xf32>
    %104 = math.exp %103 : vector<16x16xf32>
    %105 = arith.mulf %104, %6 : vector<16x16xf32>
    %cst_34 = arith.constant dense<0.000000e+00> : vector<16xf32>
    %106 = vector.multi_reduction <add>, %105, %cst_34 [1] : vector<16x16xf32> to vector<16xf32>
    %107 = vector.shape_cast %106 : vector<16xf32> to vector<16x1xf32>
    %cst_35 = arith.constant 1.000000e-30 : f32
    %108 = vector.broadcast %cst_35 : f32 to vector<16x1xf32>
    %109 = arith.maximumf %107, %108 : vector<16x1xf32>
    %110 = tpu.reciprocal %109 {approx = true} : vector<16x1xf32> -> vector<16x1xf32>
    %111 = vector.broadcast %110 : vector<16x1xf32> to vector<16x16xf32>
    %112 = arith.mulf %105, %111 : vector<16x16xf32>
    %113 = arith.truncf %112 : vector<16x16xf32> to vector<16x16xbf16>
    %114 = arith.truncf %89 : vector<16x16xf32> to vector<16x16xbf16>
    %cst_36 = arith.constant dense<0.000000e+00> : vector<16x16xf32>
    %115 = tpu.matmul %113, %114, %cst_36 {dimension_numbers = #tpu.dot_dimension_numbers<[1], [0], [0], [1], [0, 0, 1, 1], [], []>} : vector<16x16xbf16>, vector<16x16xbf16>, vector<16x16xf32> -> vector<16x16xf32>
    %116 = arith.addf %115, %90 : vector<16x16xf32>
    %c3 = arith.constant 3 : index
    %c0_37 = arith.constant 0 : index
    %c0_38 = arith.constant 0 : index
    %117 = vector.load %arg2[%c3, %c0_37, %c0_38] : memref<13x16x128xbf16, #tpu.memory_space<vmem>>, vector<1x16x128xbf16>
    %118 = vector.shape_cast %117 : vector<1x16x128xbf16> to vector<16x128xbf16>
    %119 = arith.truncf %116 : vector<16x16xf32> to vector<16x16xbf16>
    %cst_39 = arith.constant dense<0.000000e+00> : vector<16x128xf32>
    %120 = tpu.matmul %119, %118, %cst_39 {dimension_numbers = #tpu.dot_dimension_numbers<[1], [0], [0], [1], [0, 0, 1, 1], [], []>} : vector<16x16xbf16>, vector<16x128xbf16>, vector<16x128xf32> -> vector<16x128xf32>
    %c3_40 = arith.constant 3 : index
    %c0_41 = arith.constant 0 : index
    %121 = vector.load %arg4[%c3_40, %c0_41] : memref<11x128xf32, #tpu.memory_space<vmem>>, vector<1x128xf32>
    %122 = vector.broadcast %121 : vector<1x128xf32> to vector<16x128xf32>
    %123 = arith.addf %120, %122 : vector<16x128xf32>
    %124 = vector.extract_strided_slice %123 {offsets = [0, 0], sizes = [16, 16], strides = [1, 1]} : vector<16x128xf32> to vector<16x16xf32>
    %c4 = arith.constant 4 : index
    %c0_42 = arith.constant 0 : index
    %c0_43 = arith.constant 0 : index
    %125 = vector.load %arg2[%c4, %c0_42, %c0_43] : memref<13x16x128xbf16, #tpu.memory_space<vmem>>, vector<1x16x128xbf16>
    %126 = vector.shape_cast %125 : vector<1x16x128xbf16> to vector<16x128xbf16>
    %127 = arith.truncf %124 : vector<16x16xf32> to vector<16x16xbf16>
    %cst_44 = arith.constant dense<0.000000e+00> : vector<16x128xf32>
    %128 = tpu.matmul %127, %126, %cst_44 {dimension_numbers = #tpu.dot_dimension_numbers<[1], [0], [0], [1], [0, 0, 1, 1], [], []>} : vector<16x16xbf16>, vector<16x128xbf16>, vector<16x128xf32> -> vector<16x128xf32>
    %c4_45 = arith.constant 4 : index
    %c0_46 = arith.constant 0 : index
    %129 = vector.load %arg4[%c4_45, %c0_46] : memref<11x128xf32, #tpu.memory_space<vmem>>, vector<1x128xf32>
    %130 = vector.broadcast %129 : vector<1x128xf32> to vector<16x128xf32>
    %131 = arith.addf %128, %130 : vector<16x128xf32>
    %132 = vector.extract_strided_slice %131 {offsets = [0, 0], sizes = [16, 16], strides = [1, 1]} : vector<16x128xf32> to vector<16x16xf32>
    %133 = arith.truncf %6 : vector<16x16xf32> to vector<16x16xbf16>
    %134 = arith.truncf %132 : vector<16x16xf32> to vector<16x16xbf16>
    %cst_47 = arith.constant dense<0.000000e+00> : vector<16x16xf32>
    %135 = tpu.matmul %133, %134, %cst_47 {dimension_numbers = #tpu.dot_dimension_numbers<[1], [0], [0], [1], [0, 0, 1, 1], [], []>} : vector<16x16xbf16>, vector<16x16xbf16>, vector<16x16xf32> -> vector<16x16xf32>
    %136 = arith.addf %135, %124 : vector<16x16xf32>
    %cst_48 = arith.constant 0.000000e+00 : f32
    %137 = vector.broadcast %cst_48 : f32 to vector<16x16xf32>
    %138 = arith.maximumf %136, %137 : vector<16x16xf32>
    %c0_49 = arith.constant 0 : index
    %c0_50 = arith.constant 0 : index
    %c0_51 = arith.constant 0 : index
    %139 = vector.load %arg3[%c0_49, %c0_50, %c0_51] : memref<3x16x512xbf16, #tpu.memory_space<vmem>>, vector<1x16x512xbf16>
    %140 = vector.shape_cast %139 : vector<1x16x512xbf16> to vector<16x512xbf16>
    %141 = arith.truncf %138 : vector<16x16xf32> to vector<16x16xbf16>
    %cst_52 = arith.constant dense<0.000000e+00> : vector<16x512xf32>
    %142 = tpu.matmul %141, %140, %cst_52 {dimension_numbers = #tpu.dot_dimension_numbers<[1], [0], [0], [1], [0, 0, 1, 1], [], []>} : vector<16x16xbf16>, vector<16x512xbf16>, vector<16x512xf32> -> vector<16x512xf32>
    %c0_53 = arith.constant 0 : index
    %c0_54 = arith.constant 0 : index
    %143 = vector.load %arg5[%c0_53, %c0_54] : memref<6x512xf32, #tpu.memory_space<vmem>>, vector<1x512xf32>
    %144 = vector.broadcast %143 : vector<1x512xf32> to vector<16x512xf32>
    %145 = arith.addf %142, %144 : vector<16x512xf32>
    %146 = vector.extract_strided_slice %145 {offsets = [0, 0], sizes = [16, 256], strides = [1, 1]} : vector<16x512xf32> to vector<16x256xf32>
    %147 = vector.extract_strided_slice %145 {offsets = [0, 256], sizes = [16, 256], strides = [1, 1]} : vector<16x512xf32> to vector<16x256xf32>
    %c1_55 = arith.constant 1 : index
    %c0_56 = arith.constant 0 : index
    %148 = vector.load %arg5[%c1_55, %c0_56] : memref<6x512xf32, #tpu.memory_space<vmem>>, vector<1x512xf32>
    %149 = vector.extract_strided_slice %148 {offsets = [0, 0], sizes = [1, 256], strides = [1, 1]} : vector<1x512xf32> to vector<1x256xf32>
    %150 = arith.mulf %146, %20 : vector<16x256xf32>
    %151 = arith.truncf %32 : vector<16x16xf32> to vector<16x16xbf16>
    %152 = arith.truncf %150 : vector<16x256xf32> to vector<16x256xbf16>
    %cst_57 = arith.constant dense<0.000000e+00> : vector<16x256xf32>
    %153 = tpu.matmul %151, %152, %cst_57 {dimension_numbers = #tpu.dot_dimension_numbers<[1], [0], [0], [1], [0, 0, 1, 1], [], []>} : vector<16x16xbf16>, vector<16x256xbf16>, vector<16x256xf32> -> vector<16x256xf32>
    %154 = arith.addf %147, %153 : vector<16x256xf32>
    %cst_58 = arith.constant 0.000000e+00 : f32
    %155 = vector.broadcast %cst_58 : f32 to vector<16x256xf32>
    %156 = arith.cmpf ogt, %154, %155 : vector<16x256xf32>
    %cst_59 = arith.constant 2.000000e-01 : f32
    %157 = vector.broadcast %cst_59 : f32 to vector<16x256xf32>
    %158 = arith.mulf %157, %154 : vector<16x256xf32>
    %159 = arith.select %156, %154, %158 : vector<16x256xi1>, vector<16x256xf32>
    %160 = vector.broadcast %149 : vector<1x256xf32> to vector<16x256xf32>
    %161 = arith.mulf %159, %160 : vector<16x256xf32>
    %162 = arith.truncf %161 : vector<16x256xf32> to vector<16x256xbf16>
    %cst_60 = arith.constant dense<0.000000e+00> : vector<16x16xf32>
    %163 = tpu.matmul %162, %21, %cst_60 {dimension_numbers = #tpu.dot_dimension_numbers<[1], [1], [0], [0], [0, 0, 1, 0], [], []>} : vector<16x256xbf16>, vector<16x256xbf16>, vector<16x16xf32> -> vector<16x16xf32>
    %cst_61 = arith.constant 0.000000e+00 : f32
    %164 = vector.broadcast %cst_61 : f32 to vector<16x16xf32>
    %165 = arith.cmpf ogt, %8, %164 : vector<16x16xf32>
    %cst_62 = arith.constant -1.000000e+30 : f32
    %166 = vector.broadcast %cst_62 : f32 to vector<16x16xf32>
    %167 = arith.select %165, %163, %166 : vector<16x16xi1>, vector<16x16xf32>
    %cst_63 = arith.constant dense<0xFF800000> : vector<16xf32>
    %168 = vector.multi_reduction <maximumf>, %167, %cst_63 [1] : vector<16x16xf32> to vector<16xf32>
    %169 = vector.shape_cast %168 : vector<16xf32> to vector<16x1xf32>
    %170 = vector.broadcast %169 : vector<16x1xf32> to vector<16x16xf32>
    %171 = arith.subf %167, %170 : vector<16x16xf32>
    %172 = math.exp %171 : vector<16x16xf32>
    %173 = arith.mulf %172, %8 : vector<16x16xf32>
    %cst_64 = arith.constant dense<0.000000e+00> : vector<16xf32>
    %174 = vector.multi_reduction <add>, %173, %cst_64 [1] : vector<16x16xf32> to vector<16xf32>
    %175 = vector.shape_cast %174 : vector<16xf32> to vector<16x1xf32>
    %cst_65 = arith.constant 1.000000e-30 : f32
    %176 = vector.broadcast %cst_65 : f32 to vector<16x1xf32>
    %177 = arith.maximumf %175, %176 : vector<16x1xf32>
    %178 = tpu.reciprocal %177 {approx = true} : vector<16x1xf32> -> vector<16x1xf32>
    %179 = vector.broadcast %178 : vector<16x1xf32> to vector<16x16xf32>
    %180 = arith.mulf %173, %179 : vector<16x16xf32>
    %181 = vector.extract_strided_slice %146 {offsets = [0, 0], sizes = [16, 16], strides = [1, 1]} : vector<16x256xf32> to vector<16x16xf32>
    %182 = arith.truncf %180 : vector<16x16xf32> to vector<16x16xbf16>
    %183 = arith.truncf %181 : vector<16x16xf32> to vector<16x16xbf16>
    %cst_66 = arith.constant dense<0.000000e+00> : vector<16x16xf32>
    %184 = tpu.matmul %182, %183, %cst_66 {dimension_numbers = #tpu.dot_dimension_numbers<[1], [0], [0], [1], [0, 0, 1, 1], [], []>} : vector<16x16xbf16>, vector<16x16xbf16>, vector<16x16xf32> -> vector<16x16xf32>
    %c5 = arith.constant 5 : index
    %c0_67 = arith.constant 0 : index
    %185 = vector.load %arg4[%c5, %c0_67] : memref<11x128xf32, #tpu.memory_space<vmem>>, vector<1x128xf32>
    %186 = vector.extract_strided_slice %185 {offsets = [0, 0], sizes = [1, 16], strides = [1, 1]} : vector<1x128xf32> to vector<1x16xf32>
    %187 = vector.broadcast %186 : vector<1x16xf32> to vector<16x16xf32>
    %188 = arith.addf %184, %187 : vector<16x16xf32>
    %cst_68 = arith.constant 0.000000e+00 : f32
    %189 = vector.broadcast %cst_68 : f32 to vector<16x16xf32>
    %190 = arith.maximumf %188, %189 : vector<16x16xf32>
    %c1_69 = arith.constant 1 : index
    %c0_70 = arith.constant 0 : index
    %c0_71 = arith.constant 0 : index
    %191 = vector.load %arg3[%c1_69, %c0_70, %c0_71] : memref<3x16x512xbf16, #tpu.memory_space<vmem>>, vector<1x16x512xbf16>
    %192 = vector.shape_cast %191 : vector<1x16x512xbf16> to vector<16x512xbf16>
    %193 = arith.truncf %190 : vector<16x16xf32> to vector<16x16xbf16>
    %cst_72 = arith.constant dense<0.000000e+00> : vector<16x512xf32>
    %194 = tpu.matmul %193, %192, %cst_72 {dimension_numbers = #tpu.dot_dimension_numbers<[1], [0], [0], [1], [0, 0, 1, 1], [], []>} : vector<16x16xbf16>, vector<16x512xbf16>, vector<16x512xf32> -> vector<16x512xf32>
    %c2_73 = arith.constant 2 : index
    %c0_74 = arith.constant 0 : index
    %195 = vector.load %arg5[%c2_73, %c0_74] : memref<6x512xf32, #tpu.memory_space<vmem>>, vector<1x512xf32>
    %196 = vector.broadcast %195 : vector<1x512xf32> to vector<16x512xf32>
    %197 = arith.addf %194, %196 : vector<16x512xf32>
    %198 = vector.extract_strided_slice %197 {offsets = [0, 0], sizes = [16, 256], strides = [1, 1]} : vector<16x512xf32> to vector<16x256xf32>
    %199 = vector.extract_strided_slice %197 {offsets = [0, 256], sizes = [16, 256], strides = [1, 1]} : vector<16x512xf32> to vector<16x256xf32>
    %c3_75 = arith.constant 3 : index
    %c0_76 = arith.constant 0 : index
    %200 = vector.load %arg5[%c3_75, %c0_76] : memref<6x512xf32, #tpu.memory_space<vmem>>, vector<1x512xf32>
    %201 = vector.extract_strided_slice %200 {offsets = [0, 0], sizes = [1, 256], strides = [1, 1]} : vector<1x512xf32> to vector<1x256xf32>
    %202 = arith.mulf %198, %20 : vector<16x256xf32>
    %203 = arith.truncf %32 : vector<16x16xf32> to vector<16x16xbf16>
    %204 = arith.truncf %202 : vector<16x256xf32> to vector<16x256xbf16>
    %cst_77 = arith.constant dense<0.000000e+00> : vector<16x256xf32>
    %205 = tpu.matmul %203, %204, %cst_77 {dimension_numbers = #tpu.dot_dimension_numbers<[1], [0], [0], [1], [0, 0, 1, 1], [], []>} : vector<16x16xbf16>, vector<16x256xbf16>, vector<16x256xf32> -> vector<16x256xf32>
    %206 = arith.addf %199, %205 : vector<16x256xf32>
    %cst_78 = arith.constant 0.000000e+00 : f32
    %207 = vector.broadcast %cst_78 : f32 to vector<16x256xf32>
    %208 = arith.cmpf ogt, %206, %207 : vector<16x256xf32>
    %cst_79 = arith.constant 2.000000e-01 : f32
    %209 = vector.broadcast %cst_79 : f32 to vector<16x256xf32>
    %210 = arith.mulf %209, %206 : vector<16x256xf32>
    %211 = arith.select %208, %206, %210 : vector<16x256xi1>, vector<16x256xf32>
    %212 = vector.broadcast %201 : vector<1x256xf32> to vector<16x256xf32>
    %213 = arith.mulf %211, %212 : vector<16x256xf32>
    %214 = arith.truncf %213 : vector<16x256xf32> to vector<16x256xbf16>
    %cst_80 = arith.constant dense<0.000000e+00> : vector<16x16xf32>
    %215 = tpu.matmul %214, %21, %cst_80 {dimension_numbers = #tpu.dot_dimension_numbers<[1], [1], [0], [0], [0, 0, 1, 0], [], []>} : vector<16x256xbf16>, vector<16x256xbf16>, vector<16x16xf32> -> vector<16x16xf32>
    %cst_81 = arith.constant 0.000000e+00 : f32
    %216 = vector.broadcast %cst_81 : f32 to vector<16x16xf32>
    %217 = arith.cmpf ogt, %7, %216 : vector<16x16xf32>
    %cst_82 = arith.constant -1.000000e+30 : f32
    %218 = vector.broadcast %cst_82 : f32 to vector<16x16xf32>
    %219 = arith.select %217, %215, %218 : vector<16x16xi1>, vector<16x16xf32>
    %cst_83 = arith.constant dense<0xFF800000> : vector<16xf32>
    %220 = vector.multi_reduction <maximumf>, %219, %cst_83 [1] : vector<16x16xf32> to vector<16xf32>
    %221 = vector.shape_cast %220 : vector<16xf32> to vector<16x1xf32>
    %222 = vector.broadcast %221 : vector<16x1xf32> to vector<16x16xf32>
    %223 = arith.subf %219, %222 : vector<16x16xf32>
    %224 = math.exp %223 : vector<16x16xf32>
    %225 = arith.mulf %224, %7 : vector<16x16xf32>
    %cst_84 = arith.constant dense<0.000000e+00> : vector<16xf32>
    %226 = vector.multi_reduction <add>, %225, %cst_84 [1] : vector<16x16xf32> to vector<16xf32>
    %227 = vector.shape_cast %226 : vector<16xf32> to vector<16x1xf32>
    %cst_85 = arith.constant 1.000000e-30 : f32
    %228 = vector.broadcast %cst_85 : f32 to vector<16x1xf32>
    %229 = arith.maximumf %227, %228 : vector<16x1xf32>
    %230 = tpu.reciprocal %229 {approx = true} : vector<16x1xf32> -> vector<16x1xf32>
    %231 = vector.broadcast %230 : vector<16x1xf32> to vector<16x16xf32>
    %232 = arith.mulf %225, %231 : vector<16x16xf32>
    %233 = vector.extract_strided_slice %198 {offsets = [0, 0], sizes = [16, 16], strides = [1, 1]} : vector<16x256xf32> to vector<16x16xf32>
    %234 = arith.truncf %232 : vector<16x16xf32> to vector<16x16xbf16>
    %235 = arith.truncf %233 : vector<16x16xf32> to vector<16x16xbf16>
    %cst_86 = arith.constant dense<0.000000e+00> : vector<16x16xf32>
    %236 = tpu.matmul %234, %235, %cst_86 {dimension_numbers = #tpu.dot_dimension_numbers<[1], [0], [0], [1], [0, 0, 1, 1], [], []>} : vector<16x16xbf16>, vector<16x16xbf16>, vector<16x16xf32> -> vector<16x16xf32>
    %c6 = arith.constant 6 : index
    %c0_87 = arith.constant 0 : index
    %237 = vector.load %arg4[%c6, %c0_87] : memref<11x128xf32, #tpu.memory_space<vmem>>, vector<1x128xf32>
    %238 = vector.extract_strided_slice %237 {offsets = [0, 0], sizes = [1, 16], strides = [1, 1]} : vector<1x128xf32> to vector<1x16xf32>
    %239 = vector.broadcast %238 : vector<1x16xf32> to vector<16x16xf32>
    %240 = arith.addf %236, %239 : vector<16x16xf32>
    %cst_88 = arith.constant 0.000000e+00 : f32
    %241 = vector.broadcast %cst_88 : f32 to vector<16x16xf32>
    %242 = arith.maximumf %240, %241 : vector<16x16xf32>
    %243 = arith.truncf %242 : vector<16x16xf32> to vector<16x16xbf16>
    %cst_89 = arith.constant dense<0.000000e+00> : vector<16x256xf32>
    %244 = tpu.matmul %243, %31, %cst_89 {dimension_numbers = #tpu.dot_dimension_numbers<[1], [0], [0], [1], [0, 0, 1, 1], [], []>} : vector<16x16xbf16>, vector<16x256xbf16>, vector<16x256xf32> -> vector<16x256xf32>
    %245 = arith.mulf %244, %20 : vector<16x256xf32>
    %246 = arith.truncf %9 : vector<16x16xf32> to vector<16x16xbf16>
    %247 = arith.truncf %245 : vector<16x256xf32> to vector<16x256xbf16>
    %cst_90 = arith.constant dense<0.000000e+00> : vector<16x256xf32>
    %248 = tpu.matmul %246, %247, %cst_90 {dimension_numbers = #tpu.dot_dimension_numbers<[1], [0], [0], [1], [0, 0, 1, 1], [], []>} : vector<16x16xbf16>, vector<16x256xbf16>, vector<16x256xf32> -> vector<16x256xf32>
    %249 = vector.extract_strided_slice %248 {offsets = [0, 0], sizes = [16, 128], strides = [1, 1]} : vector<16x256xf32> to vector<16x128xf32>
    %250 = vector.extract_strided_slice %248 {offsets = [0, 128], sizes = [16, 128], strides = [1, 1]} : vector<16x256xf32> to vector<16x128xf32>
    %251 = arith.maximumf %249, %250 : vector<16x128xf32>
    %252 = vector.extract_strided_slice %251 {offsets = [0, 0], sizes = [16, 64], strides = [1, 1]} : vector<16x128xf32> to vector<16x64xf32>
    %253 = vector.extract_strided_slice %251 {offsets = [0, 64], sizes = [16, 64], strides = [1, 1]} : vector<16x128xf32> to vector<16x64xf32>
    %254 = arith.maximumf %252, %253 : vector<16x64xf32>
    %255 = vector.extract_strided_slice %254 {offsets = [0, 0], sizes = [16, 32], strides = [1, 1]} : vector<16x64xf32> to vector<16x32xf32>
    %256 = vector.extract_strided_slice %254 {offsets = [0, 32], sizes = [16, 32], strides = [1, 1]} : vector<16x64xf32> to vector<16x32xf32>
    %257 = arith.maximumf %255, %256 : vector<16x32xf32>
    %258 = vector.extract_strided_slice %257 {offsets = [0, 0], sizes = [16, 16], strides = [1, 1]} : vector<16x32xf32> to vector<16x16xf32>
    %259 = vector.extract_strided_slice %257 {offsets = [0, 16], sizes = [16, 16], strides = [1, 1]} : vector<16x32xf32> to vector<16x16xf32>
    %260 = arith.maximumf %258, %259 : vector<16x16xf32>
    %c5_91 = arith.constant 5 : index
    %c0_92 = arith.constant 0 : index
    %c0_93 = arith.constant 0 : index
    %261 = vector.load %arg2[%c5_91, %c0_92, %c0_93] : memref<13x16x128xbf16, #tpu.memory_space<vmem>>, vector<1x16x128xbf16>
    %262 = vector.shape_cast %261 : vector<1x16x128xbf16> to vector<16x128xbf16>
    %c7 = arith.constant 7 : index
    %c0_94 = arith.constant 0 : index
    %263 = vector.load %arg4[%c7, %c0_94] : memref<11x128xf32, #tpu.memory_space<vmem>>, vector<1x128xf32>
    %c6_95 = arith.constant 6 : index
    %c0_96 = arith.constant 0 : index
    %c0_97 = arith.constant 0 : index
    %264 = vector.load %arg2[%c6_95, %c0_96, %c0_97] : memref<13x16x128xbf16, #tpu.memory_space<vmem>>, vector<1x16x128xbf16>
    %265 = vector.shape_cast %264 : vector<1x16x128xbf16> to vector<16x128xbf16>
    %266 = arith.truncf %260 : vector<16x16xf32> to vector<16x16xbf16>
    %cst_98 = arith.constant dense<0.000000e+00> : vector<16x128xf32>
    %267 = tpu.matmul %266, %262, %cst_98 {dimension_numbers = #tpu.dot_dimension_numbers<[1], [0], [0], [1], [0, 0, 1, 1], [], []>} : vector<16x16xbf16>, vector<16x128xbf16>, vector<16x128xf32> -> vector<16x128xf32>
    %268 = vector.broadcast %263 : vector<1x128xf32> to vector<16x128xf32>
    %269 = arith.addf %267, %268 : vector<16x128xf32>
    %270 = arith.truncf %242 : vector<16x16xf32> to vector<16x16xbf16>
    %cst_99 = arith.constant dense<0.000000e+00> : vector<16x128xf32>
    %271 = tpu.matmul %270, %265, %cst_99 {dimension_numbers = #tpu.dot_dimension_numbers<[1], [0], [0], [1], [0, 0, 1, 1], [], []>} : vector<16x16xbf16>, vector<16x128xbf16>, vector<16x128xf32> -> vector<16x128xf32>
    %272 = arith.addf %269, %271 : vector<16x128xf32>
    %273 = vector.extract_strided_slice %272 {offsets = [0, 0], sizes = [16, 16], strides = [1, 1]} : vector<16x128xf32> to vector<16x16xf32>
    %cst_100 = arith.constant 0.000000e+00 : f32
    %274 = vector.broadcast %cst_100 : f32 to vector<16x16xf32>
    %275 = arith.maximumf %273, %274 : vector<16x16xf32>
    %c2_101 = arith.constant 2 : index
    %c0_102 = arith.constant 0 : index
    %c0_103 = arith.constant 0 : index
    %276 = vector.load %arg3[%c2_101, %c0_102, %c0_103] : memref<3x16x512xbf16, #tpu.memory_space<vmem>>, vector<1x16x512xbf16>
    %277 = vector.shape_cast %276 : vector<1x16x512xbf16> to vector<16x512xbf16>
    %278 = arith.truncf %275 : vector<16x16xf32> to vector<16x16xbf16>
    %cst_104 = arith.constant dense<0.000000e+00> : vector<16x512xf32>
    %279 = tpu.matmul %278, %277, %cst_104 {dimension_numbers = #tpu.dot_dimension_numbers<[1], [0], [0], [1], [0, 0, 1, 1], [], []>} : vector<16x16xbf16>, vector<16x512xbf16>, vector<16x512xf32> -> vector<16x512xf32>
    %c4_105 = arith.constant 4 : index
    %c0_106 = arith.constant 0 : index
    %280 = vector.load %arg5[%c4_105, %c0_106] : memref<6x512xf32, #tpu.memory_space<vmem>>, vector<1x512xf32>
    %281 = vector.broadcast %280 : vector<1x512xf32> to vector<16x512xf32>
    %282 = arith.addf %279, %281 : vector<16x512xf32>
    %283 = vector.extract_strided_slice %282 {offsets = [0, 0], sizes = [16, 256], strides = [1, 1]} : vector<16x512xf32> to vector<16x256xf32>
    %284 = vector.extract_strided_slice %282 {offsets = [0, 256], sizes = [16, 256], strides = [1, 1]} : vector<16x512xf32> to vector<16x256xf32>
    %c5_107 = arith.constant 5 : index
    %c0_108 = arith.constant 0 : index
    %285 = vector.load %arg5[%c5_107, %c0_108] : memref<6x512xf32, #tpu.memory_space<vmem>>, vector<1x512xf32>
    %286 = vector.extract_strided_slice %285 {offsets = [0, 0], sizes = [1, 256], strides = [1, 1]} : vector<1x512xf32> to vector<1x256xf32>
    %287 = arith.mulf %283, %20 : vector<16x256xf32>
    %288 = arith.truncf %32 : vector<16x16xf32> to vector<16x16xbf16>
    %289 = arith.truncf %287 : vector<16x256xf32> to vector<16x256xbf16>
    %cst_109 = arith.constant dense<0.000000e+00> : vector<16x256xf32>
    %290 = tpu.matmul %288, %289, %cst_109 {dimension_numbers = #tpu.dot_dimension_numbers<[1], [0], [0], [1], [0, 0, 1, 1], [], []>} : vector<16x16xbf16>, vector<16x256xbf16>, vector<16x256xf32> -> vector<16x256xf32>
    %291 = arith.addf %284, %290 : vector<16x256xf32>
    %cst_110 = arith.constant 0.000000e+00 : f32
    %292 = vector.broadcast %cst_110 : f32 to vector<16x256xf32>
    %293 = arith.cmpf ogt, %291, %292 : vector<16x256xf32>
    %cst_111 = arith.constant 2.000000e-01 : f32
    %294 = vector.broadcast %cst_111 : f32 to vector<16x256xf32>
    %295 = arith.mulf %294, %291 : vector<16x256xf32>
    %296 = arith.select %293, %291, %295 : vector<16x256xi1>, vector<16x256xf32>
    %297 = vector.broadcast %286 : vector<1x256xf32> to vector<16x256xf32>
    %298 = arith.mulf %296, %297 : vector<16x256xf32>
    %299 = arith.truncf %298 : vector<16x256xf32> to vector<16x256xbf16>
    %cst_112 = arith.constant dense<0.000000e+00> : vector<16x16xf32>
    %300 = tpu.matmul %299, %21, %cst_112 {dimension_numbers = #tpu.dot_dimension_numbers<[1], [1], [0], [0], [0, 0, 1, 0], [], []>} : vector<16x256xbf16>, vector<16x256xbf16>, vector<16x16xf32> -> vector<16x16xf32>
    %cst_113 = arith.constant 0.000000e+00 : f32
    %301 = vector.broadcast %cst_113 : f32 to vector<16x16xf32>
    %302 = arith.cmpf ogt, %7, %301 : vector<16x16xf32>
    %cst_114 = arith.constant -1.000000e+30 : f32
    %303 = vector.broadcast %cst_114 : f32 to vector<16x16xf32>
    %304 = arith.select %302, %300, %303 : vector<16x16xi1>, vector<16x16xf32>
    %cst_115 = arith.constant dense<0xFF800000> : vector<16xf32>
    %305 = vector.multi_reduction <maximumf>, %304, %cst_115 [1] : vector<16x16xf32> to vector<16xf32>
    %306 = vector.shape_cast %305 : vector<16xf32> to vector<16x1xf32>
    %307 = vector.broadcast %306 : vector<16x1xf32> to vector<16x16xf32>
    %308 = arith.subf %304, %307 : vector<16x16xf32>
    %309 = math.exp %308 : vector<16x16xf32>
    %310 = arith.mulf %309, %7 : vector<16x16xf32>
    %cst_116 = arith.constant dense<0.000000e+00> : vector<16xf32>
    %311 = vector.multi_reduction <add>, %310, %cst_116 [1] : vector<16x16xf32> to vector<16xf32>
    %312 = vector.shape_cast %311 : vector<16xf32> to vector<16x1xf32>
    %cst_117 = arith.constant 1.000000e-30 : f32
    %313 = vector.broadcast %cst_117 : f32 to vector<16x1xf32>
    %314 = arith.maximumf %312, %313 : vector<16x1xf32>
    %315 = tpu.reciprocal %314 {approx = true} : vector<16x1xf32> -> vector<16x1xf32>
    %316 = vector.broadcast %315 : vector<16x1xf32> to vector<16x16xf32>
    %317 = arith.mulf %310, %316 : vector<16x16xf32>
    %318 = vector.extract_strided_slice %283 {offsets = [0, 0], sizes = [16, 16], strides = [1, 1]} : vector<16x256xf32> to vector<16x16xf32>
    %319 = arith.truncf %317 : vector<16x16xf32> to vector<16x16xbf16>
    %320 = arith.truncf %318 : vector<16x16xf32> to vector<16x16xbf16>
    %cst_118 = arith.constant dense<0.000000e+00> : vector<16x16xf32>
    %321 = tpu.matmul %319, %320, %cst_118 {dimension_numbers = #tpu.dot_dimension_numbers<[1], [0], [0], [1], [0, 0, 1, 1], [], []>} : vector<16x16xbf16>, vector<16x16xbf16>, vector<16x16xf32> -> vector<16x16xf32>
    %c8 = arith.constant 8 : index
    %c0_119 = arith.constant 0 : index
    %322 = vector.load %arg4[%c8, %c0_119] : memref<11x128xf32, #tpu.memory_space<vmem>>, vector<1x128xf32>
    %323 = vector.extract_strided_slice %322 {offsets = [0, 0], sizes = [1, 16], strides = [1, 1]} : vector<1x128xf32> to vector<1x16xf32>
    %324 = vector.broadcast %323 : vector<1x16xf32> to vector<16x16xf32>
    %325 = arith.addf %321, %324 : vector<16x16xf32>
    %c7_120 = arith.constant 7 : index
    %c0_121 = arith.constant 0 : index
    %c0_122 = arith.constant 0 : index
    %326 = vector.load %arg2[%c7_120, %c0_121, %c0_122] : memref<13x16x128xbf16, #tpu.memory_space<vmem>>, vector<1x16x128xbf16>
    %327 = vector.shape_cast %326 : vector<1x16x128xbf16> to vector<16x128xbf16>
    %328 = arith.truncf %2 : vector<16x16xf32> to vector<16x16xbf16>
    %cst_123 = arith.constant dense<0.000000e+00> : vector<16x128xf32>
    %329 = tpu.matmul %328, %327, %cst_123 {dimension_numbers = #tpu.dot_dimension_numbers<[1], [0], [0], [1], [0, 0, 1, 1], [], []>} : vector<16x16xbf16>, vector<16x128xbf16>, vector<16x128xf32> -> vector<16x128xf32>
    %c8_124 = arith.constant 8 : index
    %c0_125 = arith.constant 0 : index
    %c0_126 = arith.constant 0 : index
    %330 = vector.load %arg2[%c8_124, %c0_125, %c0_126] : memref<13x16x128xbf16, #tpu.memory_space<vmem>>, vector<1x16x128xbf16>
    %331 = vector.shape_cast %330 : vector<1x16x128xbf16> to vector<16x128xbf16>
    %332 = arith.truncf %4 : vector<16x16xf32> to vector<16x16xbf16>
    %cst_127 = arith.constant dense<0.000000e+00> : vector<16x128xf32>
    %333 = tpu.matmul %332, %331, %cst_127 {dimension_numbers = #tpu.dot_dimension_numbers<[1], [0], [0], [1], [0, 0, 1, 1], [], []>} : vector<16x16xbf16>, vector<16x128xbf16>, vector<16x128xf32> -> vector<16x128xf32>
    %c9 = arith.constant 9 : index
    %c0_128 = arith.constant 0 : index
    %334 = vector.load %arg4[%c9, %c0_128] : memref<11x128xf32, #tpu.memory_space<vmem>>, vector<1x128xf32>
    %335 = vector.broadcast %334 : vector<1x128xf32> to vector<16x128xf32>
    %336 = arith.addf %333, %335 : vector<16x128xf32>
    %337 = vector.extract_strided_slice %329 {offsets = [0, 0], sizes = [16, 16], strides = [1, 1]} : vector<16x128xf32> to vector<16x16xf32>
    %338 = vector.extract_strided_slice %329 {offsets = [0, 16], sizes = [16, 16], strides = [1, 1]} : vector<16x128xf32> to vector<16x16xf32>
    %339 = vector.extract_strided_slice %329 {offsets = [0, 32], sizes = [16, 16], strides = [1, 1]} : vector<16x128xf32> to vector<16x16xf32>
    %340 = vector.extract_strided_slice %329 {offsets = [0, 48], sizes = [16, 16], strides = [1, 1]} : vector<16x128xf32> to vector<16x16xf32>
    %341 = vector.extract_strided_slice %336 {offsets = [0, 0], sizes = [16, 16], strides = [1, 1]} : vector<16x128xf32> to vector<16x16xf32>
    %342 = vector.extract_strided_slice %336 {offsets = [0, 16], sizes = [16, 16], strides = [1, 1]} : vector<16x128xf32> to vector<16x16xf32>
    %343 = vector.extract_strided_slice %336 {offsets = [0, 32], sizes = [16, 16], strides = [1, 1]} : vector<16x128xf32> to vector<16x16xf32>
    %344 = arith.truncf %5 : vector<16x16xf32> to vector<16x16xbf16>
    %345 = arith.truncf %338 : vector<16x16xf32> to vector<16x16xbf16>
    %cst_129 = arith.constant dense<0.000000e+00> : vector<16x16xf32>
    %346 = tpu.matmul %344, %345, %cst_129 {dimension_numbers = #tpu.dot_dimension_numbers<[1], [0], [0], [1], [0, 0, 1, 1], [], []>} : vector<16x16xbf16>, vector<16x16xbf16>, vector<16x16xf32> -> vector<16x16xf32>
    %347 = arith.addf %337, %346 : vector<16x16xf32>
    %348 = arith.addf %347, %341 : vector<16x16xf32>
    %c9_130 = arith.constant 9 : index
    %c0_131 = arith.constant 0 : index
    %c0_132 = arith.constant 0 : index
    %349 = vector.load %arg2[%c9_130, %c0_131, %c0_132] : memref<13x16x128xbf16, #tpu.memory_space<vmem>>, vector<1x16x128xbf16>
    %350 = vector.shape_cast %349 : vector<1x16x128xbf16> to vector<16x128xbf16>
    %351 = arith.truncf %348 : vector<16x16xf32> to vector<16x16xbf16>
    %cst_133 = arith.constant dense<0.000000e+00> : vector<16x128xf32>
    %352 = tpu.matmul %351, %350, %cst_133 {dimension_numbers = #tpu.dot_dimension_numbers<[1], [0], [0], [1], [0, 0, 1, 1], [], []>} : vector<16x16xbf16>, vector<16x128xbf16>, vector<16x128xf32> -> vector<16x128xf32>
    %353 = vector.extract_strided_slice %352 {offsets = [0, 0], sizes = [16, 16], strides = [1, 1]} : vector<16x128xf32> to vector<16x16xf32>
    %354 = arith.addf %339, %353 : vector<16x16xf32>
    %355 = vector.extract_strided_slice %352 {offsets = [0, 16], sizes = [16, 16], strides = [1, 1]} : vector<16x128xf32> to vector<16x16xf32>
    %356 = arith.addf %340, %355 : vector<16x16xf32>
    %357 = arith.truncf %5 : vector<16x16xf32> to vector<16x16xbf16>
    %358 = arith.truncf %356 : vector<16x16xf32> to vector<16x16xbf16>
    %cst_134 = arith.constant dense<0.000000e+00> : vector<16x16xf32>
    %359 = tpu.matmul %357, %358, %cst_134 {dimension_numbers = #tpu.dot_dimension_numbers<[1], [0], [0], [1], [0, 0, 1, 1], [], []>} : vector<16x16xbf16>, vector<16x16xbf16>, vector<16x16xf32> -> vector<16x16xf32>
    %360 = arith.addf %354, %359 : vector<16x16xf32>
    %361 = arith.addf %360, %342 : vector<16x16xf32>
    %c10 = arith.constant 10 : index
    %c0_135 = arith.constant 0 : index
    %c0_136 = arith.constant 0 : index
    %362 = vector.load %arg2[%c10, %c0_135, %c0_136] : memref<13x16x128xbf16, #tpu.memory_space<vmem>>, vector<1x16x128xbf16>
    %363 = vector.shape_cast %362 : vector<1x16x128xbf16> to vector<16x128xbf16>
    %364 = arith.truncf %361 : vector<16x16xf32> to vector<16x16xbf16>
    %cst_137 = arith.constant dense<0.000000e+00> : vector<16x128xf32>
    %365 = tpu.matmul %364, %363, %cst_137 {dimension_numbers = #tpu.dot_dimension_numbers<[1], [0], [0], [1], [0, 0, 1, 1], [], []>} : vector<16x16xbf16>, vector<16x128xbf16>, vector<16x128xf32> -> vector<16x128xf32>
    %366 = vector.extract_strided_slice %365 {offsets = [0, 0], sizes = [16, 16], strides = [1, 1]} : vector<16x128xf32> to vector<16x16xf32>
    %367 = vector.extract_strided_slice %365 {offsets = [0, 16], sizes = [16, 16], strides = [1, 1]} : vector<16x128xf32> to vector<16x16xf32>
    %368 = arith.truncf %5 : vector<16x16xf32> to vector<16x16xbf16>
    %369 = arith.truncf %367 : vector<16x16xf32> to vector<16x16xbf16>
    %cst_138 = arith.constant dense<0.000000e+00> : vector<16x16xf32>
    %370 = tpu.matmul %368, %369, %cst_138 {dimension_numbers = #tpu.dot_dimension_numbers<[1], [0], [0], [1], [0, 0, 1, 1], [], []>} : vector<16x16xbf16>, vector<16x16xbf16>, vector<16x16xf32> -> vector<16x16xf32>
    %371 = arith.addf %366, %370 : vector<16x16xf32>
    %372 = arith.addf %371, %343 : vector<16x16xf32>
    %c11 = arith.constant 11 : index
    %c0_139 = arith.constant 0 : index
    %c0_140 = arith.constant 0 : index
    %373 = vector.load %arg2[%c11, %c0_139, %c0_140] : memref<13x16x128xbf16, #tpu.memory_space<vmem>>, vector<1x16x128xbf16>
    %374 = vector.shape_cast %373 : vector<1x16x128xbf16> to vector<16x128xbf16>
    %375 = arith.truncf %372 : vector<16x16xf32> to vector<16x16xbf16>
    %cst_141 = arith.constant dense<0.000000e+00> : vector<16x128xf32>
    %376 = tpu.matmul %375, %374, %cst_141 {dimension_numbers = #tpu.dot_dimension_numbers<[1], [0], [0], [1], [0, 0, 1, 1], [], []>} : vector<16x16xbf16>, vector<16x128xbf16>, vector<16x128xf32> -> vector<16x128xf32>
    %c12 = arith.constant 12 : index
    %c0_142 = arith.constant 0 : index
    %c0_143 = arith.constant 0 : index
    %377 = vector.load %arg2[%c12, %c0_142, %c0_143] : memref<13x16x128xbf16, #tpu.memory_space<vmem>>, vector<1x16x128xbf16>
    %378 = vector.shape_cast %377 : vector<1x16x128xbf16> to vector<16x128xbf16>
    %379 = arith.truncf %325 : vector<16x16xf32> to vector<16x16xbf16>
    %cst_144 = arith.constant dense<0.000000e+00> : vector<16x128xf32>
    %380 = tpu.matmul %379, %378, %cst_144 {dimension_numbers = #tpu.dot_dimension_numbers<[1], [0], [0], [1], [0, 0, 1, 1], [], []>} : vector<16x16xbf16>, vector<16x128xbf16>, vector<16x128xf32> -> vector<16x128xf32>
    %381 = arith.addf %376, %380 : vector<16x128xf32>
    %c10_145 = arith.constant 10 : index
    %c0_146 = arith.constant 0 : index
    %382 = vector.load %arg4[%c10_145, %c0_146] : memref<11x128xf32, #tpu.memory_space<vmem>>, vector<1x128xf32>
    %383 = vector.broadcast %382 : vector<1x128xf32> to vector<16x128xf32>
    %384 = arith.addf %381, %383 : vector<16x128xf32>
    %385 = tpu.iota {dimensions = array<i32: 1>} : vector<16x128xi32>
    %c4_i32 = arith.constant 4 : i32
    %386 = vector.broadcast %c4_i32 : i32 to vector<16x128xi32>
    %387 = arith.cmpi slt, %385, %386 : vector<16x128xi32>
    %cst_147 = arith.constant -1.000000e+30 : f32
    %388 = vector.broadcast %cst_147 : f32 to vector<16x128xf32>
    %389 = arith.select %387, %384, %388 : vector<16x128xi1>, vector<16x128xf32>
    %cst_148 = arith.constant dense<0xFF800000> : vector<16xf32>
    %390 = vector.multi_reduction <maximumf>, %389, %cst_148 [1] : vector<16x128xf32> to vector<16xf32>
    %391 = vector.shape_cast %390 : vector<16xf32> to vector<16x1xf32>
    %392 = vector.broadcast %391 : vector<16x1xf32> to vector<16x128xf32>
    %393 = arith.subf %389, %392 : vector<16x128xf32>
    %394 = math.exp %393 : vector<16x128xf32>
    %cst_149 = arith.constant dense<0.000000e+00> : vector<16xf32>
    %395 = vector.multi_reduction <add>, %394, %cst_149 [1] : vector<16x128xf32> to vector<16xf32>
    %396 = vector.shape_cast %395 : vector<16xf32> to vector<16x1xf32>
    %397 = vector.broadcast %396 : vector<16x1xf32> to vector<16x128xf32>
    %398 = arith.divf %394, %397 : vector<16x128xf32>
    %c0_150 = arith.constant 0 : index
    %c0_151 = arith.constant 0 : index
    %399 = vector.load %arg6[%c0_150, %c0_151] : memref<16x128xf32, #tpu.memory_space<vmem>>, vector<16x128xf32>
    tpu.vector_store %arg6[%c0_150, %c0_151], %398 {strides = array<i32>} : memref<16x128xf32, #tpu.memory_space<vmem>>, vector<16x128xf32>,
    return
  }
}

</mosaic_0001>

<llo_original>
// kernel: comb_forward.1
$region0: #{comb_forward.1}
  #allocation0 [shape = 'u32[]', space=smem, size = 0x4, offset = 0x4, fixed_abs, tag = 'smem constant byte address 0x4 - core index']
  #allocation1 [shape = 'u32[144,128]{1,0:T(1,128)}', space=vmem, size = 0x12000, scoped, tag = 'internal scratch']
  %s0 = inlined_call_operand.vmem [shape: f32[16,128], index: 0, kind: input, shape index: {}]
  %s1 = inlined_call_operand.vmem [shape: f32[16,128], index: 1, kind: input, shape index: {}]
  %s2 = inlined_call_operand.vmem [shape: bf16[13,16,128], index: 2, kind: input, shape index: {}]
  %s3 = inlined_call_operand.vmem [shape: bf16[3,16,512], index: 3, kind: input, shape index: {}]
  %s4 = inlined_call_operand.vmem [shape: f32[11,128], index: 4, kind: input, shape index: {}]
  %s5 = inlined_call_operand.vmem [shape: f32[6,512], index: 5, kind: input, shape index: {}]
  %s6 = inlined_call_operand.vmem [shape: f32[16,128], index: 6, kind: output, shape index: {}]
  %s7 = sld [smem:[#allocation0]]
  $region34: #{comb_forward.1} parent=0
    _
  %s9 = ssub.s32 1, %s7
  %s10 = scalar_select 0, %s9, %s7
  // Predicated region
  $region2: #{comb_forward.1} parent=0 // pred_check
    _
  $region3: #{comb_forward.1} parent=0 // pred_check_branch
    %12 = sbr.rel (0) target = $region5
  $region4: #{comb_forward.1} parent=0 // pred_region
    _
  $region5: #{comb_forward.1} parent=0 // pred_fallthru
    _
  // Predicated region
  $region6: #{comb_forward.1} parent=0 // pred_check
    _
  $region7: #{comb_forward.1} parent=0 // pred_check_branch
    %14 = sbr.rel (0) target = $region9
  $region8: #{comb_forward.1} parent=0 // pred_region
    _
  $region9: #{comb_forward.1} parent=0 // pred_fallthru
    _
  // Predicated region
  $region10: #{comb_forward.1} parent=0 // pred_check
    _
  $region11: #{comb_forward.1} parent=0 // pred_check_branch
    %16 = sbr.rel (0) target = $region13
  $region12: #{comb_forward.1} parent=0 // pred_region
    _
  $region13: #{comb_forward.1} parent=0 // pred_fallthru
    _
  // Predicated region
  $region14: #{comb_forward.1} parent=0 // pred_check
    _
  $region15: #{comb_forward.1} parent=0 // pred_check_branch
    %18 = sbr.rel (0) target = $region17
  $region16: #{comb_forward.1} parent=0 // pred_region
    _
  $region17: #{comb_forward.1} parent=0 // pred_fallthru
    _
  // Predicated region
  $region18: #{comb_forward.1} parent=0 // pred_check
    _
  $region19: #{comb_forward.1} parent=0 // pred_check_branch
    %20 = sbr.rel (0) target = $region21
  $region20: #{comb_forward.1} parent=0 // pred_region
    _
  $region21: #{comb_forward.1} parent=0 // pred_fallthru
    _
  // Predicated region
  $region22: #{comb_forward.1} parent=0 // pred_check
    _
  $region23: #{comb_forward.1} parent=0 // pred_check_branch
    %22 = sbr.rel (0) target = $region25
  $region24: #{comb_forward.1} parent=0 // pred_region
    _
  $region25: #{comb_forward.1} parent=0 // pred_fallthru
    _
  %v25 = vld [vmem:[%s0] sm:$0xff]
  %v26 = vld [vmem:[%s0 + $0x8] sm:$0xff]
  %v27 = vld [vmem:[%s1] sm:$0xff]
  %v28 = vld [vmem:[%s1 + $0x8] sm:$0xff]
  %v29 = vlaneseq
  %v30 = vshrl.u32 %v29, 7
  %v31 = vadd.s32 %v30, 8
  %v32 = vlaneseq
  %v33 = vand.u32 %v32, 127
  %v34 = vadd.s32 %v33, 128
  %v35 = vmul.u32 %v30, 16
  %v36 = vmul.u32 %v31, 16
  %vm37 = vcmp.ge.s32.totalorder %v33, %v35
  %vm38 = vcmp.ge.s32.totalorder %v34, %v35
  %vm39 = vcmp.ge.s32.totalorder %v33, %v36
  %vm40 = vcmp.ge.s32.totalorder %v34, %v36
  %v41 = vadd.s32 %v35, 16
  %v42 = vadd.s32 %v36, 16
  %vm43 = vcmp.lt.s32.totalorder %v33, %v41
  %vm44 = vcmp.lt.s32.totalorder %v34, %v41
  %vm45 = vcmp.lt.s32.totalorder %v33, %v42
  %vm46 = vcmp.lt.s32.totalorder %v34, %v42
  %vm47 = vmand %vm37, %vm43
  %vm48 = vmand %vm38, %vm44
  %vm49 = vmand %vm39, %vm45
  %vm50 = vmand %vm40, %vm46
  %v51 = vsel %vm47, 1, 0
  %v52 = vsel %vm48, 1, 0
  %v53 = vsel %vm49, 1, 0
  %v54 = vsel %vm50, 1, 0
  %v55 = vcvt.s32.f32 %v51
  %v56 = vcvt.s32.f32 %v52
  %v57 = vcvt.s32.f32 %v53
  %v58 = vcvt.s32.f32 %v54
  %v59 = vpack.c.bf16 %v57, %v55
  %v60 = vpack.c.bf16 %v58, %v56
  %v61 = vsub.s32 %v33, %v30
  %v62 = vsub.s32 %v34, %v30
  %v63 = vsub.s32 %v33, %v31
  %v64 = vsub.s32 %v34, %v31
  %v65 = vand.u32 %v61, 15
  %v66 = vand.u32 %v62, 15
  %v67 = vand.u32 %v63, 15
  %v68 = vand.u32 %v64, 15
  %vm69 = vcmp.eq.s32.totalorder %v65, 0
  %vm70 = vcmp.eq.s32.totalorder %v66, 0
  %vm71 = vcmp.eq.s32.totalorder %v67, 0
  %vm72 = vcmp.eq.s32.totalorder %v68, 0
  %v73 = vsel %vm69, 1, 0
  %v74 = vsel %vm70, 1, 0
  %v75 = vsel %vm71, 1, 0
  %v76 = vsel %vm72, 1, 0
  %v77 = vcvt.s32.f32 %v73
  %v78 = vcvt.s32.f32 %v74
  %v79 = vcvt.s32.f32 %v75
  %v80 = vcvt.s32.f32 %v76
  %v81 = vpack.c.bf16 %v79, %v77
  %v82 = vpack.c.bf16 %v80, %v78
  %v83 = vld [vmem:[%s2] sm:$0xf]
  %v84 = vld [vmem:[%s2 + $0x4] sm:$0xf]
  %v85 = vpack.c.bf16 %v26, %v25
  %v86 = vld [vmem:[%s4] sm:$0x1]
  %v87 = vlaneseq
  %v88 = vshrl.u32 %v87, 7
  %v89 = vsub.s32 0, %v88
  %v90 = vrot.slane %v86, %v89
  %92 = vrot.lane.b32.xlu0 %v85, 112
  %v93 = vpop.permute.xlu0 %92
  %v96 = vunpack.c.l.b16 %v83
  %v97 = vunpack.c.l.b16 %v84
  %v98 = vpack.c.b16 %v97, %v96
  %vm100 = vcmask 130048
  %v102 = vsel %vm100, %v93, 0
  %104 = vmatprep.subr.bf16.mxu0 0
  %105 = vmatpush1.bf16.msra.mxu0 %v98
  %106 = vmatprep.subr.bf16.mxu0 0
  %107 = vmatpush1.bf16.msra.mxu0 0
  %108 = vmatprep.subr.bf16.mxu0 0
  %109 = vmatpush1.bf16.msra.mxu0 0
  %110 = vmatprep.subr.bf16.mxu0 0
  %111 = vmatpush1.bf16.msra.mxu0 0
  %112 = vmatprep.subr.bf16.mxu0 0
  %113 = vmatpush1.bf16.msra.mxu0 0
  %114 = vmatprep.subr.bf16.mxu0 0
  %115 = vmatpush1.bf16.msra.mxu0 0
  %116 = vmatprep.subr.bf16.mxu0 0
  %117 = vmatpush1.bf16.msra.mxu0 0
  %118 = vmatprep.subr.bf16.mxu0 0
  %119 = vmatpush1.bf16.msra.mxu0 0
  %120 = vmatprep.subr.bf16.mxu0 0
  %121 = vmatpush1.bf16.msra.mxu0 0
  %122 = vmatprep.subr.bf16.mxu0 0
  %123 = vmatpush1.bf16.msra.mxu0 0
  %124 = vmatprep.subr.bf16.mxu0 0
  %125 = vmatpush1.bf16.msra.mxu0 0
  %126 = vmatprep.subr.bf16.mxu0 0
  %127 = vmatpush1.bf16.msra.mxu0 0
  %128 = vmatprep.subr.bf16.mxu0 0
  %129 = vmatpush1.bf16.msra.mxu0 0
  %130 = vmatprep.subr.bf16.mxu0 0
  %131 = vmatpush1.bf16.msra.mxu0 0
  %132 = vmatprep.subr.bf16.mxu0 0
  %133 = vmatpush1.bf16.msra.mxu0 0
  %134 = vmatprep.subr.bf16.mxu0 0
  %135 = vmatpush1.bf16.msra.mxu0 0
  %136 = vmatprep.mubr.bf16.mxu0 0
  %137 = vmatmul.mubr.bf16.gmra.mrb[0].mxu0 %v102
  %v138 = vpop.f32.mrb[0].mxu0
  %v139 = vadd.f32 %v90, %v138
  %v140 = vpop.f32.mrb[0].mxu0
  %v141 = vpop.f32.mrb[0].mxu0
  %v142 = vadd.f32 %v90, %v141
  %v143 = vpop.f32.mrb[0].mxu0
  %144 = vdwg.mxu0
  %s145 = scalar_lea.vmem %s2, 8
  %v146 = vld [vmem:[%s145] sm:$0xf]
  %v147 = vld [vmem:[%s145 + $0x4] sm:$0xf]
  %v148 = vpack.c.bf16 %v142, %v139
  %v149 = vld [vmem:[%s4 + $0x1] sm:$0x1]
  %v150 = vlaneseq
  %v151 = vshrl.u32 %v150, 7
  %v152 = vsub.s32 0, %v151
  %v153 = vrot.slane %v149, %v152
  %v156 = vunpack.c.l.b16 %v146
  %v157 = vunpack.c.l.b16 %v147
  %v158 = vpack.c.b16 %v157, %v156
  %v161 = vsel %vm100, %v148, 0
  %163 = vmatprep.subr.bf16.mxu0 0
  %164 = vmatpush1.bf16.msra.mxu0 %v158
  %165 = vmatprep.subr.bf16.mxu0 0
  %166 = vmatpush1.bf16.msra.mxu0 0
  %167 = vmatprep.subr.bf16.mxu0 0
  %168 = vmatpush1.bf16.msra.mxu0 0
  %169 = vmatprep.subr.bf16.mxu0 0
  %170 = vmatpush1.bf16.msra.mxu0 0
  %171 = vmatprep.subr.bf16.mxu0 0
  %172 = vmatpush1.bf16.msra.mxu0 0
  %173 = vmatprep.subr.bf16.mxu0 0
  %174 = vmatpush1.bf16.msra.mxu0 0
  %175 = vmatprep.subr.bf16.mxu0 0
  %176 = vmatpush1.bf16.msra.mxu0 0
  %177 = vmatprep.subr.bf16.mxu0 0
  %178 = vmatpush1.bf16.msra.mxu0 0
  %179 = vmatprep.subr.bf16.mxu0 0
  %180 = vmatpush1.bf16.msra.mxu0 0
  %181 = vmatprep.subr.bf16.mxu0 0
  %182 = vmatpush1.bf16.msra.mxu0 0
  %183 = vmatprep.subr.bf16.mxu0 0
  %184 = vmatpush1.bf16.msra.mxu0 0
  %185 = vmatprep.subr.bf16.mxu0 0
  %186 = vmatpush1.bf16.msra.mxu0 0
  %187 = vmatprep.subr.bf16.mxu0 0
  %188 = vmatpush1.bf16.msra.mxu0 0
  %189 = vmatprep.subr.bf16.mxu0 0
  %190 = vmatpush1.bf16.msra.mxu0 0
  %191 = vmatprep.subr.bf16.mxu0 0
  %192 = vmatpush1.bf16.msra.mxu0 0
  %193 = vmatprep.subr.bf16.mxu0 0
  %194 = vmatpush1.bf16.msra.mxu0 0
  %195 = vmatprep.mubr.bf16.mxu0 0
  %196 = vmatmul.mubr.bf16.gmra.mrb[0].mxu0 %v161
  %v197 = vpop.f32.mrb[0].mxu0
  %v198 = vadd.f32 %v153, %v197
  %v199 = vpop.f32.mrb[0].mxu0
  %v200 = vpop.f32.mrb[0].mxu0
  %v201 = vadd.f32 %v153, %v200
  %v202 = vpop.f32.mrb[0].mxu0
  %203 = vdwg.mxu0
  %v204 = vpack.c.bf16 %v201, %v198
  %206 = vrot.lane.b32.xlu0 %v204, 112
  %v207 = vpop.permute.xlu0 %206
  %v209 = vsel %vm100, %v204, 0
  %v212 = vsel %vm100, %v207, 0
  %214 = vmatprep.subr.bf16.mxu0 0
  %215 = vmatpush1.bf16.xpose.msra.mxu0 %v212
  %216 = vmatprep.subr.bf16.mxu0 0
  %217 = vmatpush1.bf16.xpose.msra.mxu0 0
  %218 = vmatprep.subr.bf16.mxu0 0
  %219 = vmatpush1.bf16.xpose.msra.mxu0 0
  %220 = vmatprep.subr.bf16.mxu0 0
  %221 = vmatpush1.bf16.xpose.msra.mxu0 0
  %222 = vmatprep.subr.bf16.mxu0 0
  %223 = vmatpush1.bf16.xpose.msra.mxu0 0
  %224 = vmatprep.subr.bf16.mxu0 0
  %225 = vmatpush1.bf16.xpose.msra.mxu0 0
  %226 = vmatprep.subr.bf16.mxu0 0
  %227 = vmatpush1.bf16.xpose.msra.mxu0 0
  %228 = vmatprep.subr.bf16.mxu0 0
  %229 = vmatpush1.bf16.xpose.msra.mxu0 0
  %230 = vmatprep.subr.bf16.mxu0 0
  %231 = vmatpush1.bf16.xpose.msra.mxu0 0
  %232 = vmatprep.subr.bf16.mxu0 0
  %233 = vmatpush1.bf16.xpose.msra.mxu0 0
  %234 = vmatprep.subr.bf16.mxu0 0
  %235 = vmatpush1.bf16.xpose.msra.mxu0 0
  %236 = vmatprep.subr.bf16.mxu0 0
  %237 = vmatpush1.bf16.xpose.msra.mxu0 0
  %238 = vmatprep.subr.bf16.mxu0 0
  %239 = vmatpush1.bf16.xpose.msra.mxu0 0
  %240 = vmatprep.subr.bf16.mxu0 0
  %241 = vmatpush1.bf16.xpose.msra.mxu0 0
  %242 = vmatprep.subr.bf16.mxu0 0
  %243 = vmatpush1.bf16.xpose.msra.mxu0 0
  %244 = vmatprep.subr.bf16.mxu0 0
  %245 = vmatpush1.bf16.xpose.msra.mxu0 0
  %246 = vmatprep.mubr.bf16.mxu0 0
  %247 = vmatmul.mubr.bf16.gmra.mrb[0].mxu0 %v209
  %v248 = vpop.f32.mrb[0].mxu0
  %v249 = vadd.f32 0.0, %v248
  %v250 = vpop.f32.mrb[0].mxu0
  %v251 = vpop.f32.mrb[0].mxu0
  %v252 = vadd.f32 0.0, %v251
  %v253 = vpop.f32.mrb[0].mxu0
  %254 = vdwg.mxu0
  %v255 = vmul.f32 %v249, 0.31622776
  %v256 = vmul.f32 %v252, 0.31622776
  %vm257 = vcmp.gt.f32.partialorder %v27, 0.0
  %vm258 = vcmp.gt.f32.partialorder %v28, 0.0
  %261 = vrot.lane.b32.xlu0 %v255, 16
  %v262 = vpop.permute.xlu0 %261
  %263 = vrot.lane.b32.xlu0 %v256, 16
  %v264 = vpop.permute.xlu0 %263
  %v267 = vsel %vm257, %v262, -1e+30
  %v268 = vsel %vm258, %v264, -1e+30
  %vm269 = vcmask 261248
  %v270 = vsel %vm269, %v267, -inf
  %271 = vmax.xlane.f32.xlu0 %v270
  %v272 = vpop.xlane.xlu0 %271
  %v273 = vsel %vm269, %v268, -inf
  %274 = vmax.xlane.f32.xlu0 %v273
  %v275 = vpop.xlane.xlu0 %274
  %v276 = vsub.f32 %v267, %v272
  %v277 = vsub.f32 %v268, %v275
  %v278 = vmul.f32 %v276, 1.442695
  %v279 = vpow.pop %v278
  %v280 = vmul.f32 %v277, 1.442695
  %v281 = vpow.pop %v280
  %v282 = vmul.f32 %v279, %v27
  %v283 = vmul.f32 %v281, %v28
  %286 = vrot.lane.b32.xlu0 %v282, 112
  %v287 = vpop.permute.xlu0 %286
  %288 = vrot.lane.b32.xlu0 %v283, 112
  %v289 = vpop.permute.xlu0 %288
  %v292 = vsel %vm100, %v287, 0.0
  %293 = vadd.xlane.f32.xlu0 %v292
  %v294 = vpop.xlane.xlu0 %293
  %v295 = vsel %vm100, %v289, 0.0
  %296 = vadd.xlane.f32.xlu0 %v295
  %v297 = vpop.xlane.xlu0 %296
  %v298 = vmax.f32 %v294, 1e-30
  %v299 = vmax.f32 %v297, 1e-30
  %v300 = vrcp.pop %v298
  %v301 = vrcp.pop %v299
  %v302 = vmul.f32 %v282, %v300
  %v303 = vmul.f32 %v283, %v301
  %v304 = vpack.c.bf16 %v303, %v302
  %306 = vrot.lane.b32.xlu0 %v304, 112
  %v307 = vpop.permute.xlu0 %306
  %308 = vrot.lane.b32.xlu0 %v204, 96
  %v309 = vpop.permute.xlu0 %308
  %313 = vrot.lane.b32.xlu0 %v198, 80
  %v314 = vpop.permute.xlu0 %313
  %315 = vrot.lane.b32.xlu0 %v201, 80
  %v316 = vpop.permute.xlu0 %315
  %v320 = vsel %vm100, %v307, 0
  %322 = vmatprep.subr.bf16.mxu0 0
  %323 = vmatpush1.bf16.msra.mxu0 %v309
  %324 = vmatprep.subr.bf16.mxu0 0
  %325 = vmatpush1.bf16.msra.mxu0 0
  %326 = vmatprep.subr.bf16.mxu0 0
  %327 = vmatpush1.bf16.msra.mxu0 0
  %328 = vmatprep.subr.bf16.mxu0 0
  %329 = vmatpush1.bf16.msra.mxu0 0
  %330 = vmatprep.subr.bf16.mxu0 0
  %331 = vmatpush1.bf16.msra.mxu0 0
  %332 = vmatprep.subr.bf16.mxu0 0
  %333 = vmatpush1.bf16.msra.mxu0 0
  %334 = vmatprep.subr.bf16.mxu0 0
  %335 = vmatpush1.bf16.msra.mxu0 0
  %336 = vmatprep.subr.bf16.mxu0 0
  %337 = vmatpush1.bf16.msra.mxu0 0
  %338 = vmatprep.subr.bf16.mxu0 0
  %339 = vmatpush1.bf16.msra.mxu0 0
  %340 = vmatprep.subr.bf16.mxu0 0
  %341 = vmatpush1.bf16.msra.mxu0 0
  %342 = vmatprep.subr.bf16.mxu0 0
  %343 = vmatpush1.bf16.msra.mxu0 0
  %344 = vmatprep.subr.bf16.mxu0 0
  %345 = vmatpush1.bf16.msra.mxu0 0
  %346 = vmatprep.subr.bf16.mxu0 0
  %347 = vmatpush1.bf16.msra.mxu0 0
  %348 = vmatprep.subr.bf16.mxu0 0
  %349 = vmatpush1.bf16.msra.mxu0 0
  %350 = vmatprep.subr.bf16.mxu0 0
  %351 = vmatpush1.bf16.msra.mxu0 0
  %352 = vmatprep.subr.bf16.mxu0 0
  %353 = vmatpush1.bf16.msra.mxu0 0
  %354 = vmatprep.mubr.bf16.mxu0 0
  %355 = vmatmul.mubr.bf16.gmra.mrb[0].mxu0 %v320
  %v356 = vpop.f32.mrb[0].mxu0
  %v357 = vadd.f32 %v314, %v356
  %v358 = vpop.f32.mrb[0].mxu0
  %v359 = vpop.f32.mrb[0].mxu0
  %v360 = vadd.f32 %v316, %v359
  %v361 = vpop.f32.mrb[0].mxu0
  %362 = vdwg.mxu0
  %v363 = vmax.f32 %v357, 0.0
  %v364 = vmax.f32 %v360, 0.0
  %s365 = scalar_lea.vmem %s2, 16
  %v366 = vld [vmem:[%s365] sm:$0xf]
  %v367 = vld [vmem:[%s365 + $0x4] sm:$0xf]
  %v368 = vpack.c.bf16 %v364, %v363
  %v369 = vld [vmem:[%s4 + $0x2] sm:$0x1]
  %v370 = vlaneseq
  %v371 = vshrl.u32 %v370, 7
  %v372 = vsub.s32 0, %v371
  %v373 = vrot.slane %v369, %v372
  %v376 = vunpack.c.l.b16 %v366
  %v377 = vunpack.c.l.b16 %v367
  %v378 = vpack.c.b16 %v377, %v376
  %v381 = vsel %vm100, %v368, 0
  %383 = vmatprep.subr.bf16.mxu0 0
  %384 = vmatpush1.bf16.msra.mxu0 %v378
  %385 = vmatprep.subr.bf16.mxu0 0
  %386 = vmatpush1.bf16.msra.mxu0 0
  %387 = vmatprep.subr.bf16.mxu0 0
  %388 = vmatpush1.bf16.msra.mxu0 0
  %389 = vmatprep.subr.bf16.mxu0 0
  %390 = vmatpush1.bf16.msra.mxu0 0
  %391 = vmatprep.subr.bf16.mxu0 0
  %392 = vmatpush1.bf16.msra.mxu0 0
  %393 = vmatprep.subr.bf16.mxu0 0
  %394 = vmatpush1.bf16.msra.mxu0 0
  %395 = vmatprep.subr.bf16.mxu0 0
  %396 = vmatpush1.bf16.msra.mxu0 0
  %397 = vmatprep.subr.bf16.mxu0 0
  %398 = vmatpush1.bf16.msra.mxu0 0
  %399 = vmatprep.subr.bf16.mxu0 0
  %400 = vmatpush1.bf16.msra.mxu0 0
  %401 = vmatprep.subr.bf16.mxu0 0
  %402 = vmatpush1.bf16.msra.mxu0 0
  %403 = vmatprep.subr.bf16.mxu0 0
  %404 = vmatpush1.bf16.msra.mxu0 0
  %405 = vmatprep.subr.bf16.mxu0 0
  %406 = vmatpush1.bf16.msra.mxu0 0
  %407 = vmatprep.subr.bf16.mxu0 0
  %408 = vmatpush1.bf16.msra.mxu0 0
  %409 = vmatprep.subr.bf16.mxu0 0
  %410 = vmatpush1.bf16.msra.mxu0 0
  %411 = vmatprep.subr.bf16.mxu0 0
  %412 = vmatpush1.bf16.msra.mxu0 0
  %413 = vmatprep.subr.bf16.mxu0 0
  %414 = vmatpush1.bf16.msra.mxu0 0
  %415 = vmatprep.mubr.bf16.mxu0 0
  %416 = vmatmul.mubr.bf16.gmra.mrb[0].mxu0 %v381
  %v417 = vpop.f32.mrb[0].mxu0
  %v418 = vadd.f32 %v373, %v417
  %v419 = vpop.f32.mrb[0].mxu0
  %v420 = vpop.f32.mrb[0].mxu0
  %v421 = vadd.f32 %v373, %v420
  %v422 = vpop.f32.mrb[0].mxu0
  %423 = vdwg.mxu0
  %v424 = vpack.c.bf16 %v421, %v418
  %426 = vrot.lane.b32.xlu0 %v424, 112
  %v427 = vpop.permute.xlu0 %426
  %v429 = vsel %vm100, %v424, 0
  %v432 = vsel %vm100, %v427, 0
  %434 = vmatprep.subr.bf16.mxu0 0
  %435 = vmatpush1.bf16.xpose.msra.mxu0 %v432
  %436 = vmatprep.subr.bf16.mxu0 0
  %437 = vmatpush1.bf16.xpose.msra.mxu0 0
  %438 = vmatprep.subr.bf16.mxu0 0
  %439 = vmatpush1.bf16.xpose.msra.mxu0 0
  %440 = vmatprep.subr.bf16.mxu0 0
  %441 = vmatpush1.bf16.xpose.msra.mxu0 0
  %442 = vmatprep.subr.bf16.mxu0 0
  %443 = vmatpush1.bf16.xpose.msra.mxu0 0
  %444 = vmatprep.subr.bf16.mxu0 0
  %445 = vmatpush1.bf16.xpose.msra.mxu0 0
  %446 = vmatprep.subr.bf16.mxu0 0
  %447 = vmatpush1.bf16.xpose.msra.mxu0 0
  %448 = vmatprep.subr.bf16.mxu0 0
  %449 = vmatpush1.bf16.xpose.msra.mxu0 0
  %450 = vmatprep.subr.bf16.mxu0 0
  %451 = vmatpush1.bf16.xpose.msra.mxu0 0
  %452 = vmatprep.subr.bf16.mxu0 0
  %453 = vmatpush1.bf16.xpose.msra.mxu0 0
  %454 = vmatprep.subr.bf16.mxu0 0
  %455 = vmatpush1.bf16.xpose.msra.mxu0 0
  %456 = vmatprep.subr.bf16.mxu0 0
  %457 = vmatpush1.bf16.xpose.msra.mxu0 0
  %458 = vmatprep.subr.bf16.mxu0 0
  %459 = vmatpush1.bf16.xpose.msra.mxu0 0
  %460 = vmatprep.subr.bf16.mxu0 0
  %461 = vmatpush1.bf16.xpose.msra.mxu0 0
  %462 = vmatprep.subr.bf16.mxu0 0
  %463 = vmatpush1.bf16.xpose.msra.mxu0 0
  %464 = vmatprep.subr.bf16.mxu0 0
  %465 = vmatpush1.bf16.xpose.msra.mxu0 0
  %466 = vmatprep.mubr.bf16.mxu0 0
  %467 = vmatmul.mubr.bf16.gmra.mrb[0].mxu0 %v429
  %v468 = vpop.f32.mrb[0].mxu0
  %v469 = vadd.f32 0.0, %v468
  %v470 = vpop.f32.mrb[0].mxu0
  %v471 = vpop.f32.mrb[0].mxu0
  %v472 = vadd.f32 0.0, %v471
  %v473 = vpop.f32.mrb[0].mxu0
  %474 = vdwg.mxu0
  %v475 = vmul.f32 %v469, 0.31622776
  %v476 = vmul.f32 %v472, 0.31622776
  %479 = vrot.lane.b32.xlu0 %v475, 16
  %v480 = vpop.permute.xlu0 %479
  %481 = vrot.lane.b32.xlu0 %v476, 16
  %v482 = vpop.permute.xlu0 %481
  %v485 = vsel %vm257, %v480, -1e+30
  %v486 = vsel %vm258, %v482, -1e+30
  %v487 = vsel %vm269, %v485, -inf
  %488 = vmax.xlane.f32.xlu0 %v487
  %v489 = vpop.xlane.xlu0 %488
  %v490 = vsel %vm269, %v486, -inf
  %491 = vmax.xlane.f32.xlu0 %v490
  %v492 = vpop.xlane.xlu0 %491
  %v493 = vsub.f32 %v485, %v489
  %v494 = vsub.f32 %v486, %v492
  %v495 = vmul.f32 %v493, 1.442695
  %v496 = vpow.pop %v495
  %v497 = vmul.f32 %v494, 1.442695
  %v498 = vpow.pop %v497
  %v499 = vmul.f32 %v496, %v27
  %v500 = vmul.f32 %v498, %v28
  %503 = vrot.lane.b32.xlu0 %v499, 112
  %v504 = vpop.permute.xlu0 %503
  %505 = vrot.lane.b32.xlu0 %v500, 112
  %v506 = vpop.permute.xlu0 %505
  %v509 = vsel %vm100, %v504, 0.0
  %510 = vadd.xlane.f32.xlu0 %v509
  %v511 = vpop.xlane.xlu0 %510
  %v512 = vsel %vm100, %v506, 0.0
  %513 = vadd.xlane.f32.xlu0 %v512
  %v514 = vpop.xlane.xlu0 %513
  %v515 = vmax.f32 %v511, 1e-30
  %v516 = vmax.f32 %v514, 1e-30
  %v517 = vrcp.pop %v515
  %v518 = vrcp.pop %v516
  %v519 = vmul.f32 %v499, %v517
  %v520 = vmul.f32 %v500, %v518
  %v521 = vpack.c.bf16 %v520, %v519
  %523 = vrot.lane.b32.xlu0 %v521, 112
  %v524 = vpop.permute.xlu0 %523
  %525 = vrot.lane.b32.xlu0 %v424, 96
  %v526 = vpop.permute.xlu0 %525
  %530 = vrot.lane.b32.xlu0 %v418, 80
  %v531 = vpop.permute.xlu0 %530
  %532 = vrot.lane.b32.xlu0 %v421, 80
  %v533 = vpop.permute.xlu0 %532
  %v537 = vsel %vm100, %v524, 0
  %539 = vmatprep.subr.bf16.mxu0 0
  %540 = vmatpush1.bf16.msra.mxu0 %v526
  %541 = vmatprep.subr.bf16.mxu0 0
  %542 = vmatpush1.bf16.msra.mxu0 0
  %543 = vmatprep.subr.bf16.mxu0 0
  %544 = vmatpush1.bf16.msra.mxu0 0
  %545 = vmatprep.subr.bf16.mxu0 0
  %546 = vmatpush1.bf16.msra.mxu0 0
  %547 = vmatprep.subr.bf16.mxu0 0
  %548 = vmatpush1.bf16.msra.mxu0 0
  %549 = vmatprep.subr.bf16.mxu0 0
  %550 = vmatpush1.bf16.msra.mxu0 0
  %551 = vmatprep.subr.bf16.mxu0 0
  %552 = vmatpush1.bf16.msra.mxu0 0
  %553 = vmatprep.subr.bf16.mxu0 0
  %554 = vmatpush1.bf16.msra.mxu0 0
  %555 = vmatprep.subr.bf16.mxu0 0
  %556 = vmatpush1.bf16.msra.mxu0 0
  %557 = vmatprep.subr.bf16.mxu0 0
  %558 = vmatpush1.bf16.msra.mxu0 0
  %559 = vmatprep.subr.bf16.mxu0 0
  %560 = vmatpush1.bf16.msra.mxu0 0
  %561 = vmatprep.subr.bf16.mxu0 0
  %562 = vmatpush1.bf16.msra.mxu0 0
  %563 = vmatprep.subr.bf16.mxu0 0
  %564 = vmatpush1.bf16.msra.mxu0 0
  %565 = vmatprep.subr.bf16.mxu0 0
  %566 = vmatpush1.bf16.msra.mxu0 0
  %567 = vmatprep.subr.bf16.mxu0 0
  %568 = vmatpush1.bf16.msra.mxu0 0
  %569 = vmatprep.subr.bf16.mxu0 0
  %570 = vmatpush1.bf16.msra.mxu0 0
  %571 = vmatprep.mubr.bf16.mxu0 0
  %572 = vmatmul.mubr.bf16.gmra.mrb[0].mxu0 %v537
  %v573 = vpop.f32.mrb[0].mxu0
  %v574 = vadd.f32 %v531, %v573
  %v575 = vpop.f32.mrb[0].mxu0
  %v576 = vpop.f32.mrb[0].mxu0
  %v577 = vadd.f32 %v533, %v576
  %v578 = vpop.f32.mrb[0].mxu0
  %579 = vdwg.mxu0
  %s580 = scalar_lea.vmem %s2, 24
  %v581 = vld [vmem:[%s580] sm:$0xf]
  %v582 = vld [vmem:[%s580 + $0x4] sm:$0xf]
  %v583 = vpack.c.bf16 %v577, %v574
  %v584 = vld [vmem:[%s4 + $0x3] sm:$0x1]
  %v585 = vlaneseq
  %v586 = vshrl.u32 %v585, 7
  %v587 = vsub.s32 0, %v586
  %v588 = vrot.slane %v584, %v587
  %v591 = vunpack.c.l.b16 %v581
  %v592 = vunpack.c.l.b16 %v582
  %v593 = vpack.c.b16 %v592, %v591
  %v596 = vsel %vm100, %v583, 0
  %598 = vmatprep.subr.bf16.mxu0 0
  %599 = vmatpush1.bf16.msra.mxu0 %v593
  %600 = vmatprep.subr.bf16.mxu0 0
  %601 = vmatpush1.bf16.msra.mxu0 0
  %602 = vmatprep.subr.bf16.mxu0 0
  %603 = vmatpush1.bf16.msra.mxu0 0
  %604 = vmatprep.subr.bf16.mxu0 0
  %605 = vmatpush1.bf16.msra.mxu0 0
  %606 = vmatprep.subr.bf16.mxu0 0
  %607 = vmatpush1.bf16.msra.mxu0 0
  %608 = vmatprep.subr.bf16.mxu0 0
  %609 = vmatpush1.bf16.msra.mxu0 0
  %610 = vmatprep.subr.bf16.mxu0 0
  %611 = vmatpush1.bf16.msra.mxu0 0
  %612 = vmatprep.subr.bf16.mxu0 0
  %613 = vmatpush1.bf16.msra.mxu0 0
  %614 = vmatprep.subr.bf16.mxu0 0
  %615 = vmatpush1.bf16.msra.mxu0 0
  %616 = vmatprep.subr.bf16.mxu0 0
  %617 = vmatpush1.bf16.msra.mxu0 0
  %618 = vmatprep.subr.bf16.mxu0 0
  %619 = vmatpush1.bf16.msra.mxu0 0
  %620 = vmatprep.subr.bf16.mxu0 0
  %621 = vmatpush1.bf16.msra.mxu0 0
  %622 = vmatprep.subr.bf16.mxu0 0
  %623 = vmatpush1.bf16.msra.mxu0 0
  %624 = vmatprep.subr.bf16.mxu0 0
  %625 = vmatpush1.bf16.msra.mxu0 0
  %626 = vmatprep.subr.bf16.mxu0 0
  %627 = vmatpush1.bf16.msra.mxu0 0
  %628 = vmatprep.subr.bf16.mxu0 0
  %629 = vmatpush1.bf16.msra.mxu0 0
  %630 = vmatprep.mubr.bf16.mxu0 0
  %631 = vmatmul.mubr.bf16.gmra.mrb[0].mxu0 %v596
  %v632 = vpop.f32.mrb[0].mxu0
  %v633 = vadd.f32 %v588, %v632
  %v634 = vpop.f32.mrb[0].mxu0
  %v635 = vpop.f32.mrb[0].mxu0
  %v636 = vadd.f32 %v588, %v635
  %v637 = vpop.f32.mrb[0].mxu0
  %638 = vdwg.mxu0
  %s639 = scalar_lea.vmem %s2, 32
  %v640 = vld [vmem:[%s639] sm:$0xf]
  %v641 = vld [vmem:[%s639 + $0x4] sm:$0xf]
  %v642 = vpack.c.bf16 %v636, %v633
  %v643 = vld [vmem:[%s4 + $0x4] sm:$0x1]
  %v644 = vlaneseq
  %v645 = vshrl.u32 %v644, 7
  %v646 = vsub.s32 0, %v645
  %v647 = vrot.slane %v643, %v646
  %v650 = vunpack.c.l.b16 %v640
  %v651 = vunpack.c.l.b16 %v641
  %v652 = vpack.c.b16 %v651, %v650
  %v655 = vsel %vm100, %v642, 0
  %657 = vmatprep.subr.bf16.mxu0 0
  %658 = vmatpush1.bf16.msra.mxu0 %v652
  %659 = vmatprep.subr.bf16.mxu0 0
  %660 = vmatpush1.bf16.msra.mxu0 0
  %661 = vmatprep.subr.bf16.mxu0 0
  %662 = vmatpush1.bf16.msra.mxu0 0
  %663 = vmatprep.subr.bf16.mxu0 0
  %664 = vmatpush1.bf16.msra.mxu0 0
  %665 = vmatprep.subr.bf16.mxu0 0
  %666 = vmatpush1.bf16.msra.mxu0 0
  %667 = vmatprep.subr.bf16.mxu0 0
  %668 = vmatpush1.bf16.msra.mxu0 0
  %669 = vmatprep.subr.bf16.mxu0 0
  %670 = vmatpush1.bf16.msra.mxu0 0
  %671 = vmatprep.subr.bf16.mxu0 0
  %672 = vmatpush1.bf16.msra.mxu0 0
  %673 = vmatprep.subr.bf16.mxu0 0
  %674 = vmatpush1.bf16.msra.mxu0 0
  %675 = vmatprep.subr.bf16.mxu0 0
  %676 = vmatpush1.bf16.msra.mxu0 0
  %677 = vmatprep.subr.bf16.mxu0 0
  %678 = vmatpush1.bf16.msra.mxu0 0
  %679 = vmatprep.subr.bf16.mxu0 0
  %680 = vmatpush1.bf16.msra.mxu0 0
  %681 = vmatprep.subr.bf16.mxu0 0
  %682 = vmatpush1.bf16.msra.mxu0 0
  %683 = vmatprep.subr.bf16.mxu0 0
  %684 = vmatpush1.bf16.msra.mxu0 0
  %685 = vmatprep.subr.bf16.mxu0 0
  %686 = vmatpush1.bf16.msra.mxu0 0
  %687 = vmatprep.subr.bf16.mxu0 0
  %688 = vmatpush1.bf16.msra.mxu0 0
  %689 = vmatprep.mubr.bf16.mxu0 0
  %690 = vmatmul.mubr.bf16.gmra.mrb[0].mxu0 %v655
  %v691 = vpop.f32.mrb[0].mxu0
  %v692 = vadd.f32 %v647, %v691
  %v693 = vpop.f32.mrb[0].mxu0
  %v694 = vpop.f32.mrb[0].mxu0
  %v695 = vadd.f32 %v647, %v694
  %v696 = vpop.f32.mrb[0].mxu0
  %697 = vdwg.mxu0
  %v698 = vpack.c.bf16 %v28, %v27
  %v699 = vpack.c.bf16 %v695, %v692
  %701 = vrot.lane.b32.xlu0 %v698, 112
  %v702 = vpop.permute.xlu0 %701
  %v704 = vsel %vm100, %v702, 0
  %706 = vmatprep.subr.bf16.mxu0 0
  %707 = vmatpush1.bf16.msra.mxu0 %v699
  %708 = vmatprep.subr.bf16.mxu0 0
  %709 = vmatpush1.bf16.msra.mxu0 0
  %710 = vmatprep.subr.bf16.mxu0 0
  %711 = vmatpush1.bf16.msra.mxu0 0
  %712 = vmatprep.subr.bf16.mxu0 0
  %713 = vmatpush1.bf16.msra.mxu0 0
  %714 = vmatprep.subr.bf16.mxu0 0
  %715 = vmatpush1.bf16.msra.mxu0 0
  %716 = vmatprep.subr.bf16.mxu0 0
  %717 = vmatpush1.bf16.msra.mxu0 0
  %718 = vmatprep.subr.bf16.mxu0 0
  %719 = vmatpush1.bf16.msra.mxu0 0
  %720 = vmatprep.subr.bf16.mxu0 0
  %721 = vmatpush1.bf16.msra.mxu0 0
  %722 = vmatprep.subr.bf16.mxu0 0
  %723 = vmatpush1.bf16.msra.mxu0 0
  %724 = vmatprep.subr.bf16.mxu0 0
  %725 = vmatpush1.bf16.msra.mxu0 0
  %726 = vmatprep.subr.bf16.mxu0 0
  %727 = vmatpush1.bf16.msra.mxu0 0
  %728 = vmatprep.subr.bf16.mxu0 0
  %729 = vmatpush1.bf16.msra.mxu0 0
  %730 = vmatprep.subr.bf16.mxu0 0
  %731 = vmatpush1.bf16.msra.mxu0 0
  %732 = vmatprep.subr.bf16.mxu0 0
  %733 = vmatpush1.bf16.msra.mxu0 0
  %734 = vmatprep.subr.bf16.mxu0 0
  %735 = vmatpush1.bf16.msra.mxu0 0
  %736 = vmatprep.subr.bf16.mxu0 0
  %737 = vmatpush1.bf16.msra.mxu0 0
  %738 = vmatprep.mubr.bf16.mxu0 0
  %739 = vmatmul.mubr.bf16.gmra.mrb[0].mxu0 %v704
  %v740 = vpop.f32.mrb[0].mxu0
  %v741 = vadd.f32 %v633, %v740
  %v742 = vpop.f32.mrb[0].mxu0
  %v743 = vpop.f32.mrb[0].mxu0
  %v744 = vadd.f32 %v636, %v743
  %v745 = vpop.f32.mrb[0].mxu0
  %746 = vdwg.mxu0
  %v747 = vmax.f32 %v741, 0.0
  %v748 = vmax.f32 %v744, 0.0
  %v749 = vld [vmem:[%s3] sm:$0xff]
  %v750 = vld [vmem:[%s3 + $0x8] sm:$0xff]
  %v751 = vld [vmem:[%s3 + $0x10] sm:$0xff]
  %v752 = vld [vmem:[%s3 + $0x18] sm:$0xff]
  %v753 = vpack.c.bf16 %v748, %v747
  %v754 = vld [vmem:[%s5] ss:$8 sm:$0xf]
  %v756 = vlaneseq
  %v757 = vshrl.u32 %v756, 7
  %v758 = vsub.s32 0, %v757
  %v759 = vrot.slane %v754, %v758
  %v760 = vlaneseq
  %v761 = vshrl.u32 %v760, 7
  %v762 = vsub.s32 1, %v761
  %v763 = vrot.slane %v754, %v762
  %v764 = vlaneseq
  %v765 = vshrl.u32 %v764, 7
  %v766 = vsub.s32 2, %v765
  %v767 = vrot.slane %v754, %v766
  %v768 = vlaneseq
  %v769 = vshrl.u32 %v768, 7
  %v770 = vsub.s32 3, %v769
  %v771 = vrot.slane %v754, %v770
  %v780 = vunpack.c.l.b16 %v749
  %v781 = vunpack.c.h.b16 %v749
  %v782 = vunpack.c.l.b16 %v750
  %v783 = vunpack.c.h.b16 %v750
  %v784 = vunpack.c.l.b16 %v751
  %v785 = vunpack.c.h.b16 %v751
  %v786 = vunpack.c.l.b16 %v752
  %v787 = vunpack.c.h.b16 %v752
  %v788 = vpack.c.b16 %v784, %v780
  %v789 = vpack.c.b16 %v785, %v781
  %v790 = vpack.c.b16 %v786, %v782
  %v791 = vpack.c.b16 %v787, %v783
  %v797 = vsel %vm100, %v753, 0
  %799 = vmatprep.subr.bf16.mxu0 %v789
  %800 = vmatpush1.bf16.msra.mxu0 %v788
  %801 = vmatprep.subr.bf16.mxu0 0
  %802 = vmatpush1.bf16.msra.mxu0 0
  %803 = vmatprep.subr.bf16.mxu0 0
  %804 = vmatpush1.bf16.msra.mxu0 0
  %805 = vmatprep.subr.bf16.mxu0 0
  %806 = vmatpush1.bf16.msra.mxu0 0
  %807 = vmatprep.subr.bf16.mxu0 0
  %808 = vmatpush1.bf16.msra.mxu0 0
  %809 = vmatprep.subr.bf16.mxu0 0
  %810 = vmatpush1.bf16.msra.mxu0 0
  %811 = vmatprep.subr.bf16.mxu0 0
  %812 = vmatpush1.bf16.msra.mxu0 0
  %813 = vmatprep.subr.bf16.mxu0 0
  %814 = vmatpush1.bf16.msra.mxu0 0
  %815 = vmatprep.subr.bf16.mxu0 0
  %816 = vmatpush1.bf16.msra.mxu0 0
  %817 = vmatprep.subr.bf16.mxu0 0
  %818 = vmatpush1.bf16.msra.mxu0 0
  %819 = vmatprep.subr.bf16.mxu0 0
  %820 = vmatpush1.bf16.msra.mxu0 0
  %821 = vmatprep.subr.bf16.mxu0 0
  %822 = vmatpush1.bf16.msra.mxu0 0
  %823 = vmatprep.subr.bf16.mxu0 0
  %824 = vmatpush1.bf16.msra.mxu0 0
  %825 = vmatprep.subr.bf16.mxu0 0
  %826 = vmatpush1.bf16.msra.mxu0 0
  %827 = vmatprep.subr.bf16.mxu0 0
  %828 = vmatpush1.bf16.msra.mxu0 0
  %829 = vmatprep.subr.bf16.mxu0 0
  %830 = vmatpush1.bf16.msra.mxu0 0
  %831 = vmatprep.mubr.bf16.mxu0 0
  %832 = vmatmul.mubr.bf16.gmra.mrb[0].mxu0 %v797
  %v833 = vpop.f32.mrb[0].mxu0
  %v834 = vadd.f32 %v759, %v833
  %v835 = vpop.f32.mrb[0].mxu0
  %v836 = vadd.f32 %v763, %v835
  %v837 = vpop.f32.mrb[0].mxu0
  %v838 = vadd.f32 %v759, %v837
  %v839 = vpop.f32.mrb[0].mxu0
  %v840 = vadd.f32 %v763, %v839
  %841 = vdwg.mxu0
  %842 = vmatprep.subr.bf16.mxu0 %v791
  %843 = vmatpush1.bf16.msra.mxu0 %v790
  %844 = vmatprep.subr.bf16.mxu0 0
  %845 = vmatpush1.bf16.msra.mxu0 0
  %846 = vmatprep.subr.bf16.mxu0 0
  %847 = vmatpush1.bf16.msra.mxu0 0
  %848 = vmatprep.subr.bf16.mxu0 0
  %849 = vmatpush1.bf16.msra.mxu0 0
  %850 = vmatprep.subr.bf16.mxu0 0
  %851 = vmatpush1.bf16.msra.mxu0 0
  %852 = vmatprep.subr.bf16.mxu0 0
  %853 = vmatpush1.bf16.msra.mxu0 0
  %854 = vmatprep.subr.bf16.mxu0 0
  %855 = vmatpush1.bf16.msra.mxu0 0
  %856 = vmatprep.subr.bf16.mxu0 0
  %857 = vmatpush1.bf16.msra.mxu0 0
  %858 = vmatprep.subr.bf16.mxu0 0
  %859 = vmatpush1.bf16.msra.mxu0 0
  %860 = vmatprep.subr.bf16.mxu0 0
  %861 = vmatpush1.bf16.msra.mxu0 0
  %862 = vmatprep.subr.bf16.mxu0 0
  %863 = vmatpush1.bf16.msra.mxu0 0
  %864 = vmatprep.subr.bf16.mxu0 0
  %865 = vmatpush1.bf16.msra.mxu0 0
  %866 = vmatprep.subr.bf16.mxu0 0
  %867 = vmatpush1.bf16.msra.mxu0 0
  %868 = vmatprep.subr.bf16.mxu0 0
  %869 = vmatpush1.bf16.msra.mxu0 0
  %870 = vmatprep.subr.bf16.mxu0 0
  %871 = vmatpush1.bf16.msra.mxu0 0
  %872 = vmatprep.subr.bf16.mxu0 0
  %873 = vmatpush1.bf16.msra.mxu0 0
  %874 = vmatprep.mubr.bf16.mxu0 0
  %875 = vmatmul.mubr.bf16.gmra.mrb[0].mxu0 %v797
  %v876 = vpop.f32.mrb[0].mxu0
  %v877 = vadd.f32 %v767, %v876
  %v878 = vpop.f32.mrb[0].mxu0
  %v879 = vadd.f32 %v771, %v878
  %v880 = vpop.f32.mrb[0].mxu0
  %v881 = vadd.f32 %v767, %v880
  %v882 = vpop.f32.mrb[0].mxu0
  %v883 = vadd.f32 %v771, %v882
  %884 = vdwg.mxu0
  %s885 = scalar_lea.vmem %s5, 1
  %v886 = vld [vmem:[%s885] ss:$8 sm:$0xf]
  %v887 = vmul.f32 %v834, %v55
  %v888 = vmul.f32 %v836, %v56
  %v889 = vmul.f32 %v838, %v57
  %v890 = vmul.f32 %v840, %v58
  %v891 = vpack.c.bf16 %v889, %v887
  %v892 = vpack.c.bf16 %v890, %v888
  %v894 = vsel %vm100, 1065369472, 0
  %896 = vmatprep.subr.bf16.mxu0 %v892
  %897 = vmatpush1.bf16.msra.mxu0 %v891
  %898 = vmatprep.subr.bf16.mxu0 0
  %899 = vmatpush1.bf16.msra.mxu0 0
  %900 = vmatprep.subr.bf16.mxu0 0
  %901 = vmatpush1.bf16.msra.mxu0 0
  %902 = vmatprep.subr.bf16.mxu0 0
  %903 = vmatpush1.bf16.msra.mxu0 0
  %904 = vmatprep.subr.bf16.mxu0 0
  %905 = vmatpush1.bf16.msra.mxu0 0
  %906 = vmatprep.subr.bf16.mxu0 0
  %907 = vmatpush1.bf16.msra.mxu0 0
  %908 = vmatprep.subr.bf16.mxu0 0
  %909 = vmatpush1.bf16.msra.mxu0 0
  %910 = vmatprep.subr.bf16.mxu0 0
  %911 = vmatpush1.bf16.msra.mxu0 0
  %912 = vmatprep.subr.bf16.mxu0 0
  %913 = vmatpush1.bf16.msra.mxu0 0
  %914 = vmatprep.subr.bf16.mxu0 0
  %915 = vmatpush1.bf16.msra.mxu0 0
  %916 = vmatprep.subr.bf16.mxu0 0
  %917 = vmatpush1.bf16.msra.mxu0 0
  %918 = vmatprep.subr.bf16.mxu0 0
  %919 = vmatpush1.bf16.msra.mxu0 0
  %920 = vmatprep.subr.bf16.mxu0 0
  %921 = vmatpush1.bf16.msra.mxu0 0
  %922 = vmatprep.subr.bf16.mxu0 0
  %923 = vmatpush1.bf16.msra.mxu0 0
  %924 = vmatprep.subr.bf16.mxu0 0
  %925 = vmatpush1.bf16.msra.mxu0 0
  %926 = vmatprep.subr.bf16.mxu0 0
  %927 = vmatpush1.bf16.msra.mxu0 0
  %928 = vmatprep.mubr.bf16.mxu0 0
  %929 = vmatmul.mubr.bf16.gmra.mrb[0].mxu0 %v894
  %v930 = vpop.f32.mrb[0].mxu0
  %v931 = vadd.f32 0.0, %v930
  %v932 = vpop.f32.mrb[0].mxu0
  %v933 = vadd.f32 0.0, %v932
  %v934 = vpop.f32.mrb[0].mxu0
  %v935 = vadd.f32 0.0, %v934
  %v936 = vpop.f32.mrb[0].mxu0
  %v937 = vadd.f32 0.0, %v936
  %938 = vdwg.mxu0
  %v939 = vadd.f32 %v877, %v931
  %v940 = vadd.f32 %v879, %v933
  %v941 = vadd.f32 %v881, %v935
  %v942 = vadd.f32 %v883, %v937
  %vm943 = vcmp.gt.f32.partialorder %v939, 0.0
  %vm944 = vcmp.gt.f32.partialorder %v940, 0.0
  %vm945 = vcmp.gt.f32.partialorder %v941, 0.0
  %vm946 = vcmp.gt.f32.partialorder %v942, 0.0
  %v947 = vmul.f32 %v939, 0.2
  %v948 = vmul.f32 %v940, 0.2
  %v949 = vmul.f32 %v941, 0.2
  %v950 = vmul.f32 %v942, 0.2
  %v951 = vsel %vm943, %v939, %v947
  %v952 = vsel %vm944, %v940, %v948
  %v953 = vsel %vm945, %v941, %v949
  %v954 = vsel %vm946, %v942, %v950
  %v956 = vlaneseq
  %v957 = vshrl.u32 %v956, 7
  %v958 = vsub.s32 0, %v957
  %v959 = vrot.slane %v886, %v958
  %v960 = vlaneseq
  %v961 = vshrl.u32 %v960, 7
  %v962 = vsub.s32 1, %v961
  %v963 = vrot.slane %v886, %v962
  %v966 = vmul.f32 %v951, %v959
  %v967 = vmul.f32 %v952, %v963
  %v968 = vmul.f32 %v953, %v959
  %v969 = vmul.f32 %v954, %v963
  %v970 = vpack.c.bf16 %v968, %v966
  %v971 = vpack.c.bf16 %v969, %v967
  %972 = vmatprep.subr.bf16.mxu0 %v60
  %973 = vmatpush1.bf16.xpose.msra.mxu0 %v59
  %974 = vmatprep.subr.bf16.mxu0 0
  %975 = vmatpush1.bf16.xpose.msra.mxu0 0
  %976 = vmatprep.subr.bf16.mxu0 0
  %977 = vmatpush1.bf16.xpose.msra.mxu0 0
  %978 = vmatprep.subr.bf16.mxu0 0
  %979 = vmatpush1.bf16.xpose.msra.mxu0 0
  %980 = vmatprep.subr.bf16.mxu0 0
  %981 = vmatpush1.bf16.xpose.msra.mxu0 0
  %982 = vmatprep.subr.bf16.mxu0 0
  %983 = vmatpush1.bf16.xpose.msra.mxu0 0
  %984 = vmatprep.subr.bf16.mxu0 0
  %985 = vmatpush1.bf16.xpose.msra.mxu0 0
  %986 = vmatprep.subr.bf16.mxu0 0
  %987 = vmatpush1.bf16.xpose.msra.mxu0 0
  %988 = vmatprep.subr.bf16.mxu0 0
  %989 = vmatpush1.bf16.xpose.msra.mxu0 0
  %990 = vmatprep.subr.bf16.mxu0 0
  %991 = vmatpush1.bf16.xpose.msra.mxu0 0
  %992 = vmatprep.subr.bf16.mxu0 0
  %993 = vmatpush1.bf16.xpose.msra.mxu0 0
  %994 = vmatprep.subr.bf16.mxu0 0
  %995 = vmatpush1.bf16.xpose.msra.mxu0 0
  %996 = vmatprep.subr.bf16.mxu0 0
  %997 = vmatpush1.bf16.xpose.msra.mxu0 0
  %998 = vmatprep.subr.bf16.mxu0 0
  %999 = vmatpush1.bf16.xpose.msra.mxu0 0
  %1000 = vmatprep.subr.bf16.mxu0 0
  %1001 = vmatpush1.bf16.xpose.msra.mxu0 0
  %1002 = vmatprep.subr.bf16.mxu0 0
  %1003 = vmatpush1.bf16.xpose.msra.mxu0 0
  %1004 = vmatprep.mubr.bf16.mxu0 %v971
  %1005 = vmatmul.mubr.bf16.gmra.mrb[0].mxu0 %v970
  %v1006 = vpop.f32.mrb[0].mxu0
  %v1007 = vadd.f32 0.0, %v1006
  %v1008 = vpop.f32.mrb[0].mxu0
  %v1009 = vpop.f32.mrb[0].mxu0
  %v1010 = vadd.f32 0.0, %v1009
  %v1011 = vpop.f32.mrb[0].mxu0
  %1012 = vdwg.mxu0
  %1015 = vrot.lane.b32.xlu0 %v1007, 48
  %v1016 = vpop.permute.xlu0 %1015
  %1017 = vrot.lane.b32.xlu0 %v1010, 48
  %v1018 = vpop.permute.xlu0 %1017
  %v1021 = vsel %vm257, %v1016, -1e+30
  %v1022 = vsel %vm258, %v1018, -1e+30
  %vm1023 = vcmask 523648
  %v1024 = vsel %vm1023, %v1021, -inf
  %1025 = vmax.xlane.f32.xlu0 %v1024
  %v1026 = vpop.xlane.xlu0 %1025
  %v1027 = vsel %vm1023, %v1022, -inf
  %1028 = vmax.xlane.f32.xlu0 %v1027
  %v1029 = vpop.xlane.xlu0 %1028
  %v1030 = vsub.f32 %v1021, %v1026
  %v1031 = vsub.f32 %v1022, %v1029
  %v1032 = vmul.f32 %v1030, 1.442695
  %v1033 = vpow.pop %v1032
  %v1034 = vmul.f32 %v1031, 1.442695
  %v1035 = vpow.pop %v1034
  %v1036 = vmul.f32 %v1033, %v27
  %v1037 = vmul.f32 %v1035, %v28
  %1040 = vrot.lane.b32.xlu0 %v1036, 80
  %v1041 = vpop.permute.xlu0 %1040
  %1042 = vrot.lane.b32.xlu0 %v1037, 80
  %v1043 = vpop.permute.xlu0 %1042
  %v1046 = vsel %vm100, %v1041, 0.0
  %1047 = vadd.xlane.f32.xlu0 %v1046
  %v1048 = vpop.xlane.xlu0 %1047
  %v1049 = vsel %vm100, %v1043, 0.0
  %1050 = vadd.xlane.f32.xlu0 %v1049
  %v1051 = vpop.xlane.xlu0 %1050
  %v1052 = vmax.f32 %v1048, 1e-30
  %v1053 = vmax.f32 %v1051, 1e-30
  %v1054 = vrcp.pop %v1052
  %v1055 = vrcp.pop %v1053
  %v1056 = vmul.f32 %v1036, %v1054
  %v1057 = vmul.f32 %v1037, %v1055
  %v1058 = vpack.c.bf16 %v1057, %v1056
  %v1059 = vpack.c.bf16 %v838, %v834
  %v1060 = vld [vmem:[%s4 + $0x5] sm:$0x1]
  %v1061 = vlaneseq
  %v1062 = vshrl.u32 %v1061, 7
  %v1063 = vsub.s32 0, %v1062
  %v1064 = vrot.slane %v1060, %v1063
  %1066 = vrot.lane.b32.xlu0 %v1058, 80
  %v1067 = vpop.permute.xlu0 %1066
  %v1069 = vsel %vm100, %v1067, 0
  %1071 = vmatprep.subr.bf16.mxu0 0
  %1072 = vmatpush1.bf16.msra.mxu0 %v1059
  %1073 = vmatprep.subr.bf16.mxu0 0
  %1074 = vmatpush1.bf16.msra.mxu0 0
  %1075 = vmatprep.subr.bf16.mxu0 0
  %1076 = vmatpush1.bf16.msra.mxu0 0
  %1077 = vmatprep.subr.bf16.mxu0 0
  %1078 = vmatpush1.bf16.msra.mxu0 0
  %1079 = vmatprep.subr.bf16.mxu0 0
  %1080 = vmatpush1.bf16.msra.mxu0 0
  %1081 = vmatprep.subr.bf16.mxu0 0
  %1082 = vmatpush1.bf16.msra.mxu0 0
  %1083 = vmatprep.subr.bf16.mxu0 0
  %1084 = vmatpush1.bf16.msra.mxu0 0
  %1085 = vmatprep.subr.bf16.mxu0 0
  %1086 = vmatpush1.bf16.msra.mxu0 0
  %1087 = vmatprep.subr.bf16.mxu0 0
  %1088 = vmatpush1.bf16.msra.mxu0 0
  %1089 = vmatprep.subr.bf16.mxu0 0
  %1090 = vmatpush1.bf16.msra.mxu0 0
  %1091 = vmatprep.subr.bf16.mxu0 0
  %1092 = vmatpush1.bf16.msra.mxu0 0
  %1093 = vmatprep.subr.bf16.mxu0 0
  %1094 = vmatpush1.bf16.msra.mxu0 0
  %1095 = vmatprep.subr.bf16.mxu0 0
  %1096 = vmatpush1.bf16.msra.mxu0 0
  %1097 = vmatprep.subr.bf16.mxu0 0
  %1098 = vmatpush1.bf16.msra.mxu0 0
  %1099 = vmatprep.subr.bf16.mxu0 0
  %1100 = vmatpush1.bf16.msra.mxu0 0
  %1101 = vmatprep.subr.bf16.mxu0 0
  %1102 = vmatpush1.bf16.msra.mxu0 0
  %1103 = vmatprep.mubr.bf16.mxu0 0
  %1104 = vmatmul.mubr.bf16.gmra.mrb[0].mxu0 %v1069
  %v1105 = vpop.f32.mrb[0].mxu0
  %v1106 = vadd.f32 %v1064, %v1105
  %v1107 = vpop.f32.mrb[0].mxu0
  %v1108 = vpop.f32.mrb[0].mxu0
  %v1109 = vadd.f32 %v1064, %v1108
  %v1110 = vpop.f32.mrb[0].mxu0
  %1111 = vdwg.mxu0
  %v1112 = vmax.f32 %v1106, 0.0
  %v1113 = vmax.f32 %v1109, 0.0
  %s1114 = scalar_lea.vmem %s3, 32
  %v1115 = vld [vmem:[%s1114] sm:$0xff]
  %v1116 = vld [vmem:[%s1114 + $0x8] sm:$0xff]
  %v1117 = vld [vmem:[%s1114 + $0x10] sm:$0xff]
  %v1118 = vld [vmem:[%s1114 + $0x18] sm:$0xff]
  %v1119 = vpack.c.bf16 %v1113, %v1112
  %s1120 = scalar_lea.vmem %s5, 2
  %v1121 = vld [vmem:[%s1120] ss:$8 sm:$0xf]
  %v1123 = vlaneseq
  %v1124 = vshrl.u32 %v1123, 7
  %v1125 = vsub.s32 0, %v1124
  %v1126 = vrot.slane %v1121, %v1125
  %v1127 = vlaneseq
  %v1128 = vshrl.u32 %v1127, 7
  %v1129 = vsub.s32 1, %v1128
  %v1130 = vrot.slane %v1121, %v1129
  %v1131 = vlaneseq
  %v1132 = vshrl.u32 %v1131, 7
  %v1133 = vsub.s32 2, %v1132
  %v1134 = vrot.slane %v1121, %v1133
  %v1135 = vlaneseq
  %v1136 = vshrl.u32 %v1135, 7
  %v1137 = vsub.s32 3, %v1136
  %v1138 = vrot.slane %v1121, %v1137
  %v1147 = vunpack.c.l.b16 %v1115
  %v1148 = vunpack.c.h.b16 %v1115
  %v1149 = vunpack.c.l.b16 %v1116
  %v1150 = vunpack.c.h.b16 %v1116
  %v1151 = vunpack.c.l.b16 %v1117
  %v1152 = vunpack.c.h.b16 %v1117
  %v1153 = vunpack.c.l.b16 %v1118
  %v1154 = vunpack.c.h.b16 %v1118
  %v1155 = vpack.c.b16 %v1151, %v1147
  %v1156 = vpack.c.b16 %v1152, %v1148
  %v1157 = vpack.c.b16 %v1153, %v1149
  %v1158 = vpack.c.b16 %v1154, %v1150
  %v1164 = vsel %vm100, %v1119, 0
  %1166 = vmatprep.subr.bf16.mxu0 %v1156
  %1167 = vmatpush1.bf16.msra.mxu0 %v1155
  %1168 = vmatprep.subr.bf16.mxu0 0
  %1169 = vmatpush1.bf16.msra.mxu0 0
  %1170 = vmatprep.subr.bf16.mxu0 0
  %1171 = vmatpush1.bf16.msra.mxu0 0
  %1172 = vmatprep.subr.bf16.mxu0 0
  %1173 = vmatpush1.bf16.msra.mxu0 0
  %1174 = vmatprep.subr.bf16.mxu0 0
  %1175 = vmatpush1.bf16.msra.mxu0 0
  %1176 = vmatprep.subr.bf16.mxu0 0
  %1177 = vmatpush1.bf16.msra.mxu0 0
  %1178 = vmatprep.subr.bf16.mxu0 0
  %1179 = vmatpush1.bf16.msra.mxu0 0
  %1180 = vmatprep.subr.bf16.mxu0 0
  %1181 = vmatpush1.bf16.msra.mxu0 0
  %1182 = vmatprep.subr.bf16.mxu0 0
  %1183 = vmatpush1.bf16.msra.mxu0 0
  %1184 = vmatprep.subr.bf16.mxu0 0
  %1185 = vmatpush1.bf16.msra.mxu0 0
  %1186 = vmatprep.subr.bf16.mxu0 0
  %1187 = vmatpush1.bf16.msra.mxu0 0
  %1188 = vmatprep.subr.bf16.mxu0 0
  %1189 = vmatpush1.bf16.msra.mxu0 0
  %1190 = vmatprep.subr.bf16.mxu0 0
  %1191 = vmatpush1.bf16.msra.mxu0 0
  %1192 = vmatprep.subr.bf16.mxu0 0
  %1193 = vmatpush1.bf16.msra.mxu0 0
  %1194 = vmatprep.subr.bf16.mxu0 0
  %1195 = vmatpush1.bf16.msra.mxu0 0
  %1196 = vmatprep.subr.bf16.mxu0 0
  %1197 = vmatpush1.bf16.msra.mxu0 0
  %1198 = vmatprep.mubr.bf16.mxu0 0
  %1199 = vmatmul.mubr.bf16.gmra.mrb[0].mxu0 %v1164
  %v1200 = vpop.f32.mrb[0].mxu0
  %v1201 = vadd.f32 %v1126, %v1200
  %v1202 = vpop.f32.mrb[0].mxu0
  %v1203 = vadd.f32 %v1130, %v1202
  %v1204 = vpop.f32.mrb[0].mxu0
  %v1205 = vadd.f32 %v1126, %v1204
  %v1206 = vpop.f32.mrb[0].mxu0
  %v1207 = vadd.f32 %v1130, %v1206
  %1208 = vdwg.mxu0
  %1209 = vmatprep.subr.bf16.mxu0 %v1158
  %1210 = vmatpush1.bf16.msra.mxu0 %v1157
  %1211 = vmatprep.subr.bf16.mxu0 0
  %1212 = vmatpush1.bf16.msra.mxu0 0
  %1213 = vmatprep.subr.bf16.mxu0 0
  %1214 = vmatpush1.bf16.msra.mxu0 0
  %1215 = vmatprep.subr.bf16.mxu0 0
  %1216 = vmatpush1.bf16.msra.mxu0 0
  %1217 = vmatprep.subr.bf16.mxu0 0
  %1218 = vmatpush1.bf16.msra.mxu0 0
  %1219 = vmatprep.subr.bf16.mxu0 0
  %1220 = vmatpush1.bf16.msra.mxu0 0
  %1221 = vmatprep.subr.bf16.mxu0 0
  %1222 = vmatpush1.bf16.msra.mxu0 0
  %1223 = vmatprep.subr.bf16.mxu0 0
  %1224 = vmatpush1.bf16.msra.mxu0 0
  %1225 = vmatprep.subr.bf16.mxu0 0
  %1226 = vmatpush1.bf16.msra.mxu0 0
  %1227 = vmatprep.subr.bf16.mxu0 0
  %1228 = vmatpush1.bf16.msra.mxu0 0
  %1229 = vmatprep.subr.bf16.mxu0 0
  %1230 = vmatpush1.bf16.msra.mxu0 0
  %1231 = vmatprep.subr.bf16.mxu0 0
  %1232 = vmatpush1.bf16.msra.mxu0 0
  %1233 = vmatprep.subr.bf16.mxu0 0
  %1234 = vmatpush1.bf16.msra.mxu0 0
  %1235 = vmatprep.subr.bf16.mxu0 0
  %1236 = vmatpush1.bf16.msra.mxu0 0
  %1237 = vmatprep.subr.bf16.mxu0 0
  %1238 = vmatpush1.bf16.msra.mxu0 0
  %1239 = vmatprep.subr.bf16.mxu0 0
  %1240 = vmatpush1.bf16.msra.mxu0 0
  %1241 = vmatprep.mubr.bf16.mxu0 0
  %1242 = vmatmul.mubr.bf16.gmra.mrb[0].mxu0 %v1164
  %v1243 = vpop.f32.mrb[0].mxu0
  %v1244 = vadd.f32 %v1134, %v1243
  %v1245 = vpop.f32.mrb[0].mxu0
  %v1246 = vadd.f32 %v1138, %v1245
  %v1247 = vpop.f32.mrb[0].mxu0
  %v1248 = vadd.f32 %v1134, %v1247
  %v1249 = vpop.f32.mrb[0].mxu0
  %v1250 = vadd.f32 %v1138, %v1249
  %1251 = vdwg.mxu0
  %s1252 = scalar_lea.vmem %s5, 3
  %v1253 = vld [vmem:[%s1252] ss:$8 sm:$0xf]
  %v1254 = vmul.f32 %v1201, %v55
  %v1255 = vmul.f32 %v1203, %v56
  %v1256 = vmul.f32 %v1205, %v57
  %v1257 = vmul.f32 %v1207, %v58
  %v1258 = vpack.c.bf16 %v1256, %v1254
  %v1259 = vpack.c.bf16 %v1257, %v1255
  %1260 = vmatprep.subr.bf16.mxu0 %v1259
  %1261 = vmatpush1.bf16.msra.mxu0 %v1258
  %1262 = vmatprep.subr.bf16.mxu0 0
  %1263 = vmatpush1.bf16.msra.mxu0 0
  %1264 = vmatprep.subr.bf16.mxu0 0
  %1265 = vmatpush1.bf16.msra.mxu0 0
  %1266 = vmatprep.subr.bf16.mxu0 0
  %1267 = vmatpush1.bf16.msra.mxu0 0
  %1268 = vmatprep.subr.bf16.mxu0 0
  %1269 = vmatpush1.bf16.msra.mxu0 0
  %1270 = vmatprep.subr.bf16.mxu0 0
  %1271 = vmatpush1.bf16.msra.mxu0 0
  %1272 = vmatprep.subr.bf16.mxu0 0
  %1273 = vmatpush1.bf16.msra.mxu0 0
  %1274 = vmatprep.subr.bf16.mxu0 0
  %1275 = vmatpush1.bf16.msra.mxu0 0
  %1276 = vmatprep.subr.bf16.mxu0 0
  %1277 = vmatpush1.bf16.msra.mxu0 0
  %1278 = vmatprep.subr.bf16.mxu0 0
  %1279 = vmatpush1.bf16.msra.mxu0 0
  %1280 = vmatprep.subr.bf16.mxu0 0
  %1281 = vmatpush1.bf16.msra.mxu0 0
  %1282 = vmatprep.subr.bf16.mxu0 0
  %1283 = vmatpush1.bf16.msra.mxu0 0
  %1284 = vmatprep.subr.bf16.mxu0 0
  %1285 = vmatpush1.bf16.msra.mxu0 0
  %1286 = vmatprep.subr.bf16.mxu0 0
  %1287 = vmatpush1.bf16.msra.mxu0 0
  %1288 = vmatprep.subr.bf16.mxu0 0
  %1289 = vmatpush1.bf16.msra.mxu0 0
  %1290 = vmatprep.subr.bf16.mxu0 0
  %1291 = vmatpush1.bf16.msra.mxu0 0
  %1292 = vmatprep.mubr.bf16.mxu0 0
  %1293 = vmatmul.mubr.bf16.gmra.mrb[0].mxu0 %v894
  %v1294 = vpop.f32.mrb[0].mxu0
  %v1295 = vadd.f32 0.0, %v1294
  %v1296 = vpop.f32.mrb[0].mxu0
  %v1297 = vadd.f32 0.0, %v1296
  %v1298 = vpop.f32.mrb[0].mxu0
  %v1299 = vadd.f32 0.0, %v1298
  %v1300 = vpop.f32.mrb[0].mxu0
  %v1301 = vadd.f32 0.0, %v1300
  %1302 = vdwg.mxu0
  %v1303 = vadd.f32 %v1244, %v1295
  %v1304 = vadd.f32 %v1246, %v1297
  %v1305 = vadd.f32 %v1248, %v1299
  %v1306 = vadd.f32 %v1250, %v1301
  %vm1307 = vcmp.gt.f32.partialorder %v1303, 0.0
  %vm1308 = vcmp.gt.f32.partialorder %v1304, 0.0
  %vm1309 = vcmp.gt.f32.partialorder %v1305, 0.0
  %vm1310 = vcmp.gt.f32.partialorder %v1306, 0.0
  %v1311 = vmul.f32 %v1303, 0.2
  %v1312 = vmul.f32 %v1304, 0.2
  %v1313 = vmul.f32 %v1305, 0.2
  %v1314 = vmul.f32 %v1306, 0.2
  %v1315 = vsel %vm1307, %v1303, %v1311
  %v1316 = vsel %vm1308, %v1304, %v1312
  %v1317 = vsel %vm1309, %v1305, %v1313
  %v1318 = vsel %vm1310, %v1306, %v1314
  %v1320 = vlaneseq
  %v1321 = vshrl.u32 %v1320, 7
  %v1322 = vsub.s32 0, %v1321
  %v1323 = vrot.slane %v1253, %v1322
  %v1324 = vlaneseq
  %v1325 = vshrl.u32 %v1324, 7
  %v1326 = vsub.s32 1, %v1325
  %v1327 = vrot.slane %v1253, %v1326
  %v1330 = vmul.f32 %v1315, %v1323
  %v1331 = vmul.f32 %v1316, %v1327
  %v1332 = vmul.f32 %v1317, %v1323
  %v1333 = vmul.f32 %v1318, %v1327
  %v1334 = vpack.c.bf16 %v1332, %v1330
  %v1335 = vpack.c.bf16 %v1333, %v1331
  %1336 = vmatprep.subr.bf16.mxu0 %v60
  %1337 = vmatpush1.bf16.xpose.msra.mxu0 %v59
  %1338 = vmatprep.subr.bf16.mxu0 0
  %1339 = vmatpush1.bf16.xpose.msra.mxu0 0
  %1340 = vmatprep.subr.bf16.mxu0 0
  %1341 = vmatpush1.bf16.xpose.msra.mxu0 0
  %1342 = vmatprep.subr.bf16.mxu0 0
  %1343 = vmatpush1.bf16.xpose.msra.mxu0 0
  %1344 = vmatprep.subr.bf16.mxu0 0
  %1345 = vmatpush1.bf16.xpose.msra.mxu0 0
  %1346 = vmatprep.subr.bf16.mxu0 0
  %1347 = vmatpush1.bf16.xpose.msra.mxu0 0
  %1348 = vmatprep.subr.bf16.mxu0 0
  %1349 = vmatpush1.bf16.xpose.msra.mxu0 0
  %1350 = vmatprep.subr.bf16.mxu0 0
  %1351 = vmatpush1.bf16.xpose.msra.mxu0 0
  %1352 = vmatprep.subr.bf16.mxu0 0
  %1353 = vmatpush1.bf16.xpose.msra.mxu0 0
  %1354 = vmatprep.subr.bf16.mxu0 0
  %1355 = vmatpush1.bf16.xpose.msra.mxu0 0
  %1356 = vmatprep.subr.bf16.mxu0 0
  %1357 = vmatpush1.bf16.xpose.msra.mxu0 0
  %1358 = vmatprep.subr.bf16.mxu0 0
  %1359 = vmatpush1.bf16.xpose.msra.mxu0 0
  %1360 = vmatprep.subr.bf16.mxu0 0
  %1361 = vmatpush1.bf16.xpose.msra.mxu0 0
  %1362 = vmatprep.subr.bf16.mxu0 0
  %1363 = vmatpush1.bf16.xpose.msra.mxu0 0
  %1364 = vmatprep.subr.bf16.mxu0 0
  %1365 = vmatpush1.bf16.xpose.msra.mxu0 0
  %1366 = vmatprep.subr.bf16.mxu0 0
  %1367 = vmatpush1.bf16.xpose.msra.mxu0 0
  %1368 = vmatprep.mubr.bf16.mxu0 %v1335
  %1369 = vmatmul.mubr.bf16.gmra.mrb[0].mxu0 %v1334
  %v1370 = vpop.f32.mrb[0].mxu0
  %v1371 = vadd.f32 0.0, %v1370
  %v1372 = vpop.f32.mrb[0].mxu0
  %v1373 = vpop.f32.mrb[0].mxu0
  %v1374 = vadd.f32 0.0, %v1373
  %v1375 = vpop.f32.mrb[0].mxu0
  %1376 = vdwg.mxu0
  %1379 = vrot.lane.b32.xlu0 %v1371, 32
  %v1380 = vpop.permute.xlu0 %1379
  %1381 = vrot.lane.b32.xlu0 %v1374, 32
  %v1382 = vpop.permute.xlu0 %1381
  %v1385 = vsel %vm257, %v1380, -1e+30
  %v1386 = vsel %vm258, %v1382, -1e+30
  %vm1387 = vcmask 392448
  %v1388 = vsel %vm1387, %v1385, -inf
  %1389 = vmax.xlane.f32.xlu0 %v1388
  %v1390 = vpop.xlane.xlu0 %1389
  %v1391 = vsel %vm1387, %v1386, -inf
  %1392 = vmax.xlane.f32.xlu0 %v1391
  %v1393 = vpop.xlane.xlu0 %1392
  %v1394 = vsub.f32 %v1385, %v1390
  %v1395 = vsub.f32 %v1386, %v1393
  %v1396 = vmul.f32 %v1394, 1.442695
  %v1397 = vpow.pop %v1396
  %v1398 = vmul.f32 %v1395, 1.442695
  %v1399 = vpow.pop %v1398
  %v1400 = vmul.f32 %v1397, %v27
  %v1401 = vmul.f32 %v1399, %v28
  %1404 = vrot.lane.b32.xlu0 %v1400, 96
  %v1405 = vpop.permute.xlu0 %1404
  %1406 = vrot.lane.b32.xlu0 %v1401, 96
  %v1407 = vpop.permute.xlu0 %1406
  %v1410 = vsel %vm100, %v1405, 0.0
  %1411 = vadd.xlane.f32.xlu0 %v1410
  %v1412 = vpop.xlane.xlu0 %1411
  %v1413 = vsel %vm100, %v1407, 0.0
  %1414 = vadd.xlane.f32.xlu0 %v1413
  %v1415 = vpop.xlane.xlu0 %1414
  %v1416 = vmax.f32 %v1412, 1e-30
  %v1417 = vmax.f32 %v1415, 1e-30
  %v1418 = vrcp.pop %v1416
  %v1419 = vrcp.pop %v1417
  %v1420 = vmul.f32 %v1400, %v1418
  %v1421 = vmul.f32 %v1401, %v1419
  %v1422 = vpack.c.bf16 %v1421, %v1420
  %v1423 = vpack.c.bf16 %v1205, %v1201
  %v1424 = vld [vmem:[%s4 + $0x6] sm:$0x1]
  %v1425 = vlaneseq
  %v1426 = vshrl.u32 %v1425, 7
  %v1427 = vsub.s32 0, %v1426
  %v1428 = vrot.slane %v1424, %v1427
  %1430 = vrot.lane.b32.xlu0 %v1422, 96
  %v1431 = vpop.permute.xlu0 %1430
  %v1433 = vsel %vm100, %v1431, 0
  %1435 = vmatprep.subr.bf16.mxu0 0
  %1436 = vmatpush1.bf16.msra.mxu0 %v1423
  %1437 = vmatprep.subr.bf16.mxu0 0
  %1438 = vmatpush1.bf16.msra.mxu0 0
  %1439 = vmatprep.subr.bf16.mxu0 0
  %1440 = vmatpush1.bf16.msra.mxu0 0
  %1441 = vmatprep.subr.bf16.mxu0 0
  %1442 = vmatpush1.bf16.msra.mxu0 0
  %1443 = vmatprep.subr.bf16.mxu0 0
  %1444 = vmatpush1.bf16.msra.mxu0 0
  %1445 = vmatprep.subr.bf16.mxu0 0
  %1446 = vmatpush1.bf16.msra.mxu0 0
  %1447 = vmatprep.subr.bf16.mxu0 0
  %1448 = vmatpush1.bf16.msra.mxu0 0
  %1449 = vmatprep.subr.bf16.mxu0 0
  %1450 = vmatpush1.bf16.msra.mxu0 0
  %1451 = vmatprep.subr.bf16.mxu0 0
  %1452 = vmatpush1.bf16.msra.mxu0 0
  %1453 = vmatprep.subr.bf16.mxu0 0
  %1454 = vmatpush1.bf16.msra.mxu0 0
  %1455 = vmatprep.subr.bf16.mxu0 0
  %1456 = vmatpush1.bf16.msra.mxu0 0
  %1457 = vmatprep.subr.bf16.mxu0 0
  %1458 = vmatpush1.bf16.msra.mxu0 0
  %1459 = vmatprep.subr.bf16.mxu0 0
  %1460 = vmatpush1.bf16.msra.mxu0 0
  %1461 = vmatprep.subr.bf16.mxu0 0
  %1462 = vmatpush1.bf16.msra.mxu0 0
  %1463 = vmatprep.subr.bf16.mxu0 0
  %1464 = vmatpush1.bf16.msra.mxu0 0
  %1465 = vmatprep.subr.bf16.mxu0 0
  %1466 = vmatpush1.bf16.msra.mxu0 0
  %1467 = vmatprep.mubr.bf16.mxu0 0
  %1468 = vmatmul.mubr.bf16.gmra.mrb[0].mxu0 %v1433
  %v1469 = vpop.f32.mrb[0].mxu0
  %v1470 = vadd.f32 %v1428, %v1469
  %v1471 = vpop.f32.mrb[0].mxu0
  %v1472 = vpop.f32.mrb[0].mxu0
  %v1473 = vadd.f32 %v1428, %v1472
  %v1474 = vpop.f32.mrb[0].mxu0
  %1475 = vdwg.mxu0
  %v1476 = vmax.f32 %v1470, 0.0
  %v1477 = vmax.f32 %v1473, 0.0
  %v1478 = vpack.c.bf16 %v1477, %v1476
  %v1480 = vsel %vm100, %v1478, 0
  %1482 = vmatprep.subr.bf16.mxu0 %v82
  %1483 = vmatpush1.bf16.msra.mxu0 %v81
  %1484 = vmatprep.subr.bf16.mxu0 0
  %1485 = vmatpush1.bf16.msra.mxu0 0
  %1486 = vmatprep.subr.bf16.mxu0 0
  %1487 = vmatpush1.bf16.msra.mxu0 0
  %1488 = vmatprep.subr.bf16.mxu0 0
  %1489 = vmatpush1.bf16.msra.mxu0 0
  %1490 = vmatprep.subr.bf16.mxu0 0
  %1491 = vmatpush1.bf16.msra.mxu0 0
  %1492 = vmatprep.subr.bf16.mxu0 0
  %1493 = vmatpush1.bf16.msra.mxu0 0
  %1494 = vmatprep.subr.bf16.mxu0 0
  %1495 = vmatpush1.bf16.msra.mxu0 0
  %1496 = vmatprep.subr.bf16.mxu0 0
  %1497 = vmatpush1.bf16.msra.mxu0 0
  %1498 = vmatprep.subr.bf16.mxu0 0
  %1499 = vmatpush1.bf16.msra.mxu0 0
  %1500 = vmatprep.subr.bf16.mxu0 0
  %1501 = vmatpush1.bf16.msra.mxu0 0
  %1502 = vmatprep.subr.bf16.mxu0 0
  %1503 = vmatpush1.bf16.msra.mxu0 0
  %1504 = vmatprep.subr.bf16.mxu0 0
  %1505 = vmatpush1.bf16.msra.mxu0 0
  %1506 = vmatprep.subr.bf16.mxu0 0
  %1507 = vmatpush1.bf16.msra.mxu0 0
  %1508 = vmatprep.subr.bf16.mxu0 0
  %1509 = vmatpush1.bf16.msra.mxu0 0
  %1510 = vmatprep.subr.bf16.mxu0 0
  %1511 = vmatpush1.bf16.msra.mxu0 0
  %1512 = vmatprep.subr.bf16.mxu0 0
  %1513 = vmatpush1.bf16.msra.mxu0 0
  %1514 = vmatprep.mubr.bf16.mxu0 0
  %1515 = vmatmul.mubr.bf16.gmra.mrb[0].mxu0 %v1480
  %v1516 = vpop.f32.mrb[0].mxu0
  %v1517 = vadd.f32 0.0, %v1516
  %v1518 = vpop.f32.mrb[0].mxu0
  %v1519 = vadd.f32 0.0, %v1518
  %v1520 = vpop.f32.mrb[0].mxu0
  %v1521 = vadd.f32 0.0, %v1520
  %v1522 = vpop.f32.mrb[0].mxu0
  %v1523 = vadd.f32 0.0, %v1522
  %1524 = vdwg.mxu0
  %v1525 = vmul.f32 %v1517, %v55
  %v1526 = vmul.f32 %v1519, %v56
  %v1527 = vmul.f32 %v1521, %v57
  %v1528 = vmul.f32 %v1523, %v58
  %v1529 = vpack.c.bf16 %v1527, %v1525
  %v1530 = vpack.c.bf16 %v1528, %v1526
  %1531 = vrot.lane.b32.xlu0 %v698, 64
  %v1532 = vpop.permute.xlu0 %1531
  %v1534 = vsel %vm100, %v1532, 0
  %1536 = vmatprep.subr.bf16.mxu0 %v1530
  %1537 = vmatpush1.bf16.msra.mxu0 %v1529
  %1538 = vmatprep.subr.bf16.mxu0 0
  %1539 = vmatpush1.bf16.msra.mxu0 0
  %1540 = vmatprep.subr.bf16.mxu0 0
  %1541 = vmatpush1.bf16.msra.mxu0 0
  %1542 = vmatprep.subr.bf16.mxu0 0
  %1543 = vmatpush1.bf16.msra.mxu0 0
  %1544 = vmatprep.subr.bf16.mxu0 0
  %1545 = vmatpush1.bf16.msra.mxu0 0
  %1546 = vmatprep.subr.bf16.mxu0 0
  %1547 = vmatpush1.bf16.msra.mxu0 0
  %1548 = vmatprep.subr.bf16.mxu0 0
  %1549 = vmatpush1.bf16.msra.mxu0 0
  %1550 = vmatprep.subr.bf16.mxu0 0
  %1551 = vmatpush1.bf16.msra.mxu0 0
  %1552 = vmatprep.subr.bf16.mxu0 0
  %1553 = vmatpush1.bf16.msra.mxu0 0
  %1554 = vmatprep.subr.bf16.mxu0 0
  %1555 = vmatpush1.bf16.msra.mxu0 0
  %1556 = vmatprep.subr.bf16.mxu0 0
  %1557 = vmatpush1.bf16.msra.mxu0 0
  %1558 = vmatprep.subr.bf16.mxu0 0
  %1559 = vmatpush1.bf16.msra.mxu0 0
  %1560 = vmatprep.subr.bf16.mxu0 0
  %1561 = vmatpush1.bf16.msra.mxu0 0
  %1562 = vmatprep.subr.bf16.mxu0 0
  %1563 = vmatpush1.bf16.msra.mxu0 0
  %1564 = vmatprep.subr.bf16.mxu0 0
  %1565 = vmatpush1.bf16.msra.mxu0 0
  %1566 = vmatprep.subr.bf16.mxu0 0
  %1567 = vmatpush1.bf16.msra.mxu0 0
  %1568 = vmatprep.mubr.bf16.mxu0 0
  %1569 = vmatmul.mubr.bf16.gmra.mrb[0].mxu0 %v1534
  %v1570 = vpop.f32.mrb[0].mxu0
  %v1571 = vadd.f32 0.0, %v1570
  %v1572 = vpop.f32.mrb[0].mxu0
  %v1573 = vadd.f32 0.0, %v1572
  %v1574 = vpop.f32.mrb[0].mxu0
  %v1575 = vadd.f32 0.0, %v1574
  %v1576 = vpop.f32.mrb[0].mxu0
  %v1577 = vadd.f32 0.0, %v1576
  %1578 = vdwg.mxu0
  %v1579 = vmax.f32 %v1571, %v1573
  %v1580 = vmax.f32 %v1575, %v1577
  %1583 = vrot.lane.b32.xlu0 %v1579, 64
  %v1584 = vpop.permute.xlu0 %1583
  %1585 = vrot.lane.b32.xlu0 %v1580, 64
  %v1586 = vpop.permute.xlu0 %1585
  %v1589 = vmax.f32 %v1579, %v1584
  %v1590 = vmax.f32 %v1580, %v1586
  %1593 = vrot.lane.b32.xlu0 %v1589, 96
  %v1594 = vpop.permute.xlu0 %1593
  %1595 = vrot.lane.b32.xlu0 %v1590, 96
  %v1596 = vpop.permute.xlu0 %1595
  %v1599 = vmax.f32 %v1589, %v1594
  %v1600 = vmax.f32 %v1590, %v1596
  %1603 = vrot.lane.b32.xlu0 %v1599, 112
  %v1604 = vpop.permute.xlu0 %1603
  %1605 = vrot.lane.b32.xlu0 %v1600, 112
  %v1606 = vpop.permute.xlu0 %1605
  %v1609 = vmax.f32 %v1599, %v1604
  %v1610 = vmax.f32 %v1600, %v1606
  %s1611 = scalar_lea.vmem %s2, 40
  %v1612 = vld [vmem:[%s1611] sm:$0xf]
  %v1613 = vld [vmem:[%s1611 + $0x4] sm:$0xf]
  %v1614 = vld [vmem:[%s4 + $0x7] sm:$0x1]
  %s1615 = scalar_lea.vmem %s2, 48
  %v1616 = vld [vmem:[%s1615] sm:$0xf]
  %v1617 = vld [vmem:[%s1615 + $0x4] sm:$0xf]
  %v1618 = vpack.c.bf16 %v1610, %v1609
  %v1619 = vlaneseq
  %v1620 = vshrl.u32 %v1619, 7
  %v1621 = vsub.s32 0, %v1620
  %v1622 = vrot.slane %v1614, %v1621
  %v1625 = vunpack.c.l.b16 %v1612
  %v1626 = vunpack.c.l.b16 %v1613
  %v1627 = vpack.c.b16 %v1626, %v1625
  %v1630 = vsel %vm100, %v1618, 0
  %1632 = vmatprep.subr.bf16.mxu0 0
  %1633 = vmatpush1.bf16.msra.mxu0 %v1627
  %1634 = vmatprep.subr.bf16.mxu0 0
  %1635 = vmatpush1.bf16.msra.mxu0 0
  %1636 = vmatprep.subr.bf16.mxu0 0
  %1637 = vmatpush1.bf16.msra.mxu0 0
  %1638 = vmatprep.subr.bf16.mxu0 0
  %1639 = vmatpush1.bf16.msra.mxu0 0
  %1640 = vmatprep.subr.bf16.mxu0 0
  %1641 = vmatpush1.bf16.msra.mxu0 0
  %1642 = vmatprep.subr.bf16.mxu0 0
  %1643 = vmatpush1.bf16.msra.mxu0 0
  %1644 = vmatprep.subr.bf16.mxu0 0
  %1645 = vmatpush1.bf16.msra.mxu0 0
  %1646 = vmatprep.subr.bf16.mxu0 0
  %1647 = vmatpush1.bf16.msra.mxu0 0
  %1648 = vmatprep.subr.bf16.mxu0 0
  %1649 = vmatpush1.bf16.msra.mxu0 0
  %1650 = vmatprep.subr.bf16.mxu0 0
  %1651 = vmatpush1.bf16.msra.mxu0 0
  %1652 = vmatprep.subr.bf16.mxu0 0
  %1653 = vmatpush1.bf16.msra.mxu0 0
  %1654 = vmatprep.subr.bf16.mxu0 0
  %1655 = vmatpush1.bf16.msra.mxu0 0
  %1656 = vmatprep.subr.bf16.mxu0 0
  %1657 = vmatpush1.bf16.msra.mxu0 0
  %1658 = vmatprep.subr.bf16.mxu0 0
  %1659 = vmatpush1.bf16.msra.mxu0 0
  %1660 = vmatprep.subr.bf16.mxu0 0
  %1661 = vmatpush1.bf16.msra.mxu0 0
  %1662 = vmatprep.subr.bf16.mxu0 0
  %1663 = vmatpush1.bf16.msra.mxu0 0
  %1664 = vmatprep.mubr.bf16.mxu0 0
  %1665 = vmatmul.mubr.bf16.gmra.mrb[0].mxu0 %v1630
  %v1666 = vpop.f32.mrb[0].mxu0
  %v1667 = vadd.f32 %v1622, %v1666
  %v1668 = vpop.f32.mrb[0].mxu0
  %v1669 = vpop.f32.mrb[0].mxu0
  %v1670 = vadd.f32 %v1622, %v1669
  %v1671 = vpop.f32.mrb[0].mxu0
  %1672 = vdwg.mxu0
  %v1675 = vunpack.c.l.b16 %v1616
  %v1676 = vunpack.c.l.b16 %v1617
  %v1677 = vpack.c.b16 %v1676, %v1675
  %1679 = vmatprep.subr.bf16.mxu0 0
  %1680 = vmatpush1.bf16.msra.mxu0 %v1677
  %1681 = vmatprep.subr.bf16.mxu0 0
  %1682 = vmatpush1.bf16.msra.mxu0 0
  %1683 = vmatprep.subr.bf16.mxu0 0
  %1684 = vmatpush1.bf16.msra.mxu0 0
  %1685 = vmatprep.subr.bf16.mxu0 0
  %1686 = vmatpush1.bf16.msra.mxu0 0
  %1687 = vmatprep.subr.bf16.mxu0 0
  %1688 = vmatpush1.bf16.msra.mxu0 0
  %1689 = vmatprep.subr.bf16.mxu0 0
  %1690 = vmatpush1.bf16.msra.mxu0 0
  %1691 = vmatprep.subr.bf16.mxu0 0
  %1692 = vmatpush1.bf16.msra.mxu0 0
  %1693 = vmatprep.subr.bf16.mxu0 0
  %1694 = vmatpush1.bf16.msra.mxu0 0
  %1695 = vmatprep.subr.bf16.mxu0 0
  %1696 = vmatpush1.bf16.msra.mxu0 0
  %1697 = vmatprep.subr.bf16.mxu0 0
  %1698 = vmatpush1.bf16.msra.mxu0 0
  %1699 = vmatprep.subr.bf16.mxu0 0
  %1700 = vmatpush1.bf16.msra.mxu0 0
  %1701 = vmatprep.subr.bf16.mxu0 0
  %1702 = vmatpush1.bf16.msra.mxu0 0
  %1703 = vmatprep.subr.bf16.mxu0 0
  %1704 = vmatpush1.bf16.msra.mxu0 0
  %1705 = vmatprep.subr.bf16.mxu0 0
  %1706 = vmatpush1.bf16.msra.mxu0 0
  %1707 = vmatprep.subr.bf16.mxu0 0
  %1708 = vmatpush1.bf16.msra.mxu0 0
  %1709 = vmatprep.subr.bf16.mxu0 0
  %1710 = vmatpush1.bf16.msra.mxu0 0
  %1711 = vmatprep.mubr.bf16.mxu0 0
  %1712 = vmatmul.mubr.bf16.gmra.mrb[0].mxu0 %v1480
  %v1713 = vpop.f32.mrb[0].mxu0
  %v1714 = vadd.f32 0.0, %v1713
  %v1715 = vpop.f32.mrb[0].mxu0
  %v1716 = vpop.f32.mrb[0].mxu0
  %v1717 = vadd.f32 0.0, %v1716
  %v1718 = vpop.f32.mrb[0].mxu0
  %1719 = vdwg.mxu0
  %v1720 = vadd.f32 %v1667, %v1714
  %v1721 = vadd.f32 %v1670, %v1717
  %v1722 = vmax.f32 %v1720, 0.0
  %v1723 = vmax.f32 %v1721, 0.0
  %s1724 = scalar_lea.vmem %s3, 64
  %v1725 = vld [vmem:[%s1724] sm:$0xff]
  %v1726 = vld [vmem:[%s1724 + $0x8] sm:$0xff]
  %v1727 = vld [vmem:[%s1724 + $0x10] sm:$0xff]
  %v1728 = vld [vmem:[%s1724 + $0x18] sm:$0xff]
  %v1729 = vpack.c.bf16 %v1723, %v1722
  %s1730 = scalar_lea.vmem %s5, 4
  %v1731 = vld [vmem:[%s1730] ss:$8 sm:$0xf]
  %v1733 = vlaneseq
  %v1734 = vshrl.u32 %v1733, 7
  %v1735 = vsub.s32 0, %v1734
  %v1736 = vrot.slane %v1731, %v1735
  %v1737 = vlaneseq
  %v1738 = vshrl.u32 %v1737, 7
  %v1739 = vsub.s32 1, %v1738
  %v1740 = vrot.slane %v1731, %v1739
  %v1741 = vlaneseq
  %v1742 = vshrl.u32 %v1741, 7
  %v1743 = vsub.s32 2, %v1742
  %v1744 = vrot.slane %v1731, %v1743
  %v1745 = vlaneseq
  %v1746 = vshrl.u32 %v1745, 7
  %v1747 = vsub.s32 3, %v1746
  %v1748 = vrot.slane %v1731, %v1747
  %v1757 = vunpack.c.l.b16 %v1725
  %v1758 = vunpack.c.h.b16 %v1725
  %v1759 = vunpack.c.l.b16 %v1726
  %v1760 = vunpack.c.h.b16 %v1726
  %v1761 = vunpack.c.l.b16 %v1727
  %v1762 = vunpack.c.h.b16 %v1727
  %v1763 = vunpack.c.l.b16 %v1728
  %v1764 = vunpack.c.h.b16 %v1728
  %v1765 = vpack.c.b16 %v1761, %v1757
  %v1766 = vpack.c.b16 %v1762, %v1758
  %v1767 = vpack.c.b16 %v1763, %v1759
  %v1768 = vpack.c.b16 %v1764, %v1760
  %v1774 = vsel %vm100, %v1729, 0
  %1776 = vmatprep.subr.bf16.mxu0 %v1766
  %1777 = vmatpush1.bf16.msra.mxu0 %v1765
  %1778 = vmatprep.subr.bf16.mxu0 0
  %1779 = vmatpush1.bf16.msra.mxu0 0
  %1780 = vmatprep.subr.bf16.mxu0 0
  %1781 = vmatpush1.bf16.msra.mxu0 0
  %1782 = vmatprep.subr.bf16.mxu0 0
  %1783 = vmatpush1.bf16.msra.mxu0 0
  %1784 = vmatprep.subr.bf16.mxu0 0
  %1785 = vmatpush1.bf16.msra.mxu0 0
  %1786 = vmatprep.subr.bf16.mxu0 0
  %1787 = vmatpush1.bf16.msra.mxu0 0
  %1788 = vmatprep.subr.bf16.mxu0 0
  %1789 = vmatpush1.bf16.msra.mxu0 0
  %1790 = vmatprep.subr.bf16.mxu0 0
  %1791 = vmatpush1.bf16.msra.mxu0 0
  %1792 = vmatprep.subr.bf16.mxu0 0
  %1793 = vmatpush1.bf16.msra.mxu0 0
  %1794 = vmatprep.subr.bf16.mxu0 0
  %1795 = vmatpush1.bf16.msra.mxu0 0
  %1796 = vmatprep.subr.bf16.mxu0 0
  %1797 = vmatpush1.bf16.msra.mxu0 0
  %1798 = vmatprep.subr.bf16.mxu0 0
  %1799 = vmatpush1.bf16.msra.mxu0 0
  %1800 = vmatprep.subr.bf16.mxu0 0
  %1801 = vmatpush1.bf16.msra.mxu0 0
  %1802 = vmatprep.subr.bf16.mxu0 0
  %1803 = vmatpush1.bf16.msra.mxu0 0
  %1804 = vmatprep.subr.bf16.mxu0 0
  %1805 = vmatpush1.bf16.msra.mxu0 0
  %1806 = vmatprep.subr.bf16.mxu0 0
  %1807 = vmatpush1.bf16.msra.mxu0 0
  %1808 = vmatprep.mubr.bf16.mxu0 0
  %1809 = vmatmul.mubr.bf16.gmra.mrb[0].mxu0 %v1774
  %v1810 = vpop.f32.mrb[0].mxu0
  %v1811 = vadd.f32 %v1736, %v1810
  %v1812 = vpop.f32.mrb[0].mxu0
  %v1813 = vadd.f32 %v1740, %v1812
  %v1814 = vpop.f32.mrb[0].mxu0
  %v1815 = vadd.f32 %v1736, %v1814
  %v1816 = vpop.f32.mrb[0].mxu0
  %v1817 = vadd.f32 %v1740, %v1816
  %1818 = vdwg.mxu0
  %1819 = vmatprep.subr.bf16.mxu0 %v1768
  %1820 = vmatpush1.bf16.msra.mxu0 %v1767
  %1821 = vmatprep.subr.bf16.mxu0 0
  %1822 = vmatpush1.bf16.msra.mxu0 0
  %1823 = vmatprep.subr.bf16.mxu0 0
  %1824 = vmatpush1.bf16.msra.mxu0 0
  %1825 = vmatprep.subr.bf16.mxu0 0
  %1826 = vmatpush1.bf16.msra.mxu0 0
  %1827 = vmatprep.subr.bf16.mxu0 0
  %1828 = vmatpush1.bf16.msra.mxu0 0
  %1829 = vmatprep.subr.bf16.mxu0 0
  %1830 = vmatpush1.bf16.msra.mxu0 0
  %1831 = vmatprep.subr.bf16.mxu0 0
  %1832 = vmatpush1.bf16.msra.mxu0 0
  %1833 = vmatprep.subr.bf16.mxu0 0
  %1834 = vmatpush1.bf16.msra.mxu0 0
  %1835 = vmatprep.subr.bf16.mxu0 0
  %1836 = vmatpush1.bf16.msra.mxu0 0
  %1837 = vmatprep.subr.bf16.mxu0 0
  %1838 = vmatpush1.bf16.msra.mxu0 0
  %1839 = vmatprep.subr.bf16.mxu0 0
  %1840 = vmatpush1.bf16.msra.mxu0 0
  %1841 = vmatprep.subr.bf16.mxu0 0
  %1842 = vmatpush1.bf16.msra.mxu0 0
  %1843 = vmatprep.subr.bf16.mxu0 0
  %1844 = vmatpush1.bf16.msra.mxu0 0
  %1845 = vmatprep.subr.bf16.mxu0 0
  %1846 = vmatpush1.bf16.msra.mxu0 0
  %1847 = vmatprep.subr.bf16.mxu0 0
  %1848 = vmatpush1.bf16.msra.mxu0 0
  %1849 = vmatprep.subr.bf16.mxu0 0
  %1850 = vmatpush1.bf16.msra.mxu0 0
  %1851 = vmatprep.mubr.bf16.mxu0 0
  %1852 = vmatmul.mubr.bf16.gmra.mrb[0].mxu0 %v1774
  %v1853 = vpop.f32.mrb[0].mxu0
  %v1854 = vadd.f32 %v1744, %v1853
  %v1855 = vpop.f32.mrb[0].mxu0
  %v1856 = vadd.f32 %v1748, %v1855
  %v1857 = vpop.f32.mrb[0].mxu0
  %v1858 = vadd.f32 %v1744, %v1857
  %v1859 = vpop.f32.mrb[0].mxu0
  %v1860 = vadd.f32 %v1748, %v1859
  %1861 = vdwg.mxu0
  %s1862 = scalar_lea.vmem %s5, 5
  %v1863 = vld [vmem:[%s1862] ss:$8 sm:$0xf]
  %v1864 = vmul.f32 %v1811, %v55
  %v1865 = vmul.f32 %v1813, %v56
  %v1866 = vmul.f32 %v1815, %v57
  %v1867 = vmul.f32 %v1817, %v58
  %v1868 = vpack.c.bf16 %v1866, %v1864
  %v1869 = vpack.c.bf16 %v1867, %v1865
  %1870 = vmatprep.subr.bf16.mxu0 %v1869
  %1871 = vmatpush1.bf16.msra.mxu0 %v1868
  %1872 = vmatprep.subr.bf16.mxu0 0
  %1873 = vmatpush1.bf16.msra.mxu0 0
  %1874 = vmatprep.subr.bf16.mxu0 0
  %1875 = vmatpush1.bf16.msra.mxu0 0
  %1876 = vmatprep.subr.bf16.mxu0 0
  %1877 = vmatpush1.bf16.msra.mxu0 0
  %1878 = vmatprep.subr.bf16.mxu0 0
  %1879 = vmatpush1.bf16.msra.mxu0 0
  %1880 = vmatprep.subr.bf16.mxu0 0
  %1881 = vmatpush1.bf16.msra.mxu0 0
  %1882 = vmatprep.subr.bf16.mxu0 0
  %1883 = vmatpush1.bf16.msra.mxu0 0
  %1884 = vmatprep.subr.bf16.mxu0 0
  %1885 = vmatpush1.bf16.msra.mxu0 0
  %1886 = vmatprep.subr.bf16.mxu0 0
  %1887 = vmatpush1.bf16.msra.mxu0 0
  %1888 = vmatprep.subr.bf16.mxu0 0
  %1889 = vmatpush1.bf16.msra.mxu0 0
  %1890 = vmatprep.subr.bf16.mxu0 0
  %1891 = vmatpush1.bf16.msra.mxu0 0
  %1892 = vmatprep.subr.bf16.mxu0 0
  %1893 = vmatpush1.bf16.msra.mxu0 0
  %1894 = vmatprep.subr.bf16.mxu0 0
  %1895 = vmatpush1.bf16.msra.mxu0 0
  %1896 = vmatprep.subr.bf16.mxu0 0
  %1897 = vmatpush1.bf16.msra.mxu0 0
  %1898 = vmatprep.subr.bf16.mxu0 0
  %1899 = vmatpush1.bf16.msra.mxu0 0
  %1900 = vmatprep.subr.bf16.mxu0 0
  %1901 = vmatpush1.bf16.msra.mxu0 0
  %1902 = vmatprep.mubr.bf16.mxu0 0
  %1903 = vmatmul.mubr.bf16.gmra.mrb[0].mxu0 %v894
  %v1904 = vpop.f32.mrb[0].mxu0
  %v1905 = vadd.f32 0.0, %v1904
  %v1906 = vpop.f32.mrb[0].mxu0
  %v1907 = vadd.f32 0.0, %v1906
  %v1908 = vpop.f32.mrb[0].mxu0
  %v1909 = vadd.f32 0.0, %v1908
  %v1910 = vpop.f32.mrb[0].mxu0
  %v1911 = vadd.f32 0.0, %v1910
  %1912 = vdwg.mxu0
  %v1913 = vadd.f32 %v1854, %v1905
  %v1914 = vadd.f32 %v1856, %v1907
  %v1915 = vadd.f32 %v1858, %v1909
  %v1916 = vadd.f32 %v1860, %v1911
  %vm1917 = vcmp.gt.f32.partialorder %v1913, 0.0
  %vm1918 = vcmp.gt.f32.partialorder %v1914, 0.0
  %vm1919 = vcmp.gt.f32.partialorder %v1915, 0.0
  %vm1920 = vcmp.gt.f32.partialorder %v1916, 0.0
  %v1921 = vmul.f32 %v1913, 0.2
  %v1922 = vmul.f32 %v1914, 0.2
  %v1923 = vmul.f32 %v1915, 0.2
  %v1924 = vmul.f32 %v1916, 0.2
  %v1925 = vsel %vm1917, %v1913, %v1921
  %v1926 = vsel %vm1918, %v1914, %v1922
  %v1927 = vsel %vm1919, %v1915, %v1923
  %v1928 = vsel %vm1920, %v1916, %v1924
  %v1930 = vlaneseq
  %v1931 = vshrl.u32 %v1930, 7
  %v1932 = vsub.s32 0, %v1931
  %v1933 = vrot.slane %v1863, %v1932
  %v1934 = vlaneseq
  %v1935 = vshrl.u32 %v1934, 7
  %v1936 = vsub.s32 1, %v1935
  %v1937 = vrot.slane %v1863, %v1936
  %v1940 = vmul.f32 %v1925, %v1933
  %v1941 = vmul.f32 %v1926, %v1937
  %v1942 = vmul.f32 %v1927, %v1933
  %v1943 = vmul.f32 %v1928, %v1937
  %v1944 = vpack.c.bf16 %v1942, %v1940
  %v1945 = vpack.c.bf16 %v1943, %v1941
  %1946 = vmatprep.subr.bf16.mxu0 %v60
  %1947 = vmatpush1.bf16.xpose.msra.mxu0 %v59
  %1948 = vmatprep.subr.bf16.mxu0 0
  %1949 = vmatpush1.bf16.xpose.msra.mxu0 0
  %1950 = vmatprep.subr.bf16.mxu0 0
  %1951 = vmatpush1.bf16.xpose.msra.mxu0 0
  %1952 = vmatprep.subr.bf16.mxu0 0
  %1953 = vmatpush1.bf16.xpose.msra.mxu0 0
  %1954 = vmatprep.subr.bf16.mxu0 0
  %1955 = vmatpush1.bf16.xpose.msra.mxu0 0
  %1956 = vmatprep.subr.bf16.mxu0 0
  %1957 = vmatpush1.bf16.xpose.msra.mxu0 0
  %1958 = vmatprep.subr.bf16.mxu0 0
  %1959 = vmatpush1.bf16.xpose.msra.mxu0 0
  %1960 = vmatprep.subr.bf16.mxu0 0
  %1961 = vmatpush1.bf16.xpose.msra.mxu0 0
  %1962 = vmatprep.subr.bf16.mxu0 0
  %1963 = vmatpush1.bf16.xpose.msra.mxu0 0
  %1964 = vmatprep.subr.bf16.mxu0 0
  %1965 = vmatpush1.bf16.xpose.msra.mxu0 0
  %1966 = vmatprep.subr.bf16.mxu0 0
  %1967 = vmatpush1.bf16.xpose.msra.mxu0 0
  %1968 = vmatprep.subr.bf16.mxu0 0
  %1969 = vmatpush1.bf16.xpose.msra.mxu0 0
  %1970 = vmatprep.subr.bf16.mxu0 0
  %1971 = vmatpush1.bf16.xpose.msra.mxu0 0
  %1972 = vmatprep.subr.bf16.mxu0 0
  %1973 = vmatpush1.bf16.xpose.msra.mxu0 0
  %1974 = vmatprep.subr.bf16.mxu0 0
  %1975 = vmatpush1.bf16.xpose.msra.mxu0 0
  %1976 = vmatprep.subr.bf16.mxu0 0
  %1977 = vmatpush1.bf16.xpose.msra.mxu0 0
  %1978 = vmatprep.mubr.bf16.mxu0 %v1945
  %1979 = vmatmul.mubr.bf16.gmra.mrb[0].mxu0 %v1944
  %v1980 = vpop.f32.mrb[0].mxu0
  %v1981 = vadd.f32 0.0, %v1980
  %v1982 = vpop.f32.mrb[0].mxu0
  %v1983 = vpop.f32.mrb[0].mxu0
  %v1984 = vadd.f32 0.0, %v1983
  %v1985 = vpop.f32.mrb[0].mxu0
  %1986 = vdwg.mxu0
  %1989 = vrot.lane.b32.xlu0 %v1981, 32
  %v1990 = vpop.permute.xlu0 %1989
  %1991 = vrot.lane.b32.xlu0 %v1984, 32
  %v1992 = vpop.permute.xlu0 %1991
  %v1995 = vsel %vm257, %v1990, -1e+30
  %v1996 = vsel %vm258, %v1992, -1e+30
  %v1997 = vsel %vm1387, %v1995, -inf
  %1998 = vmax.xlane.f32.xlu0 %v1997
  %v1999 = vpop.xlane.xlu0 %1998
  %v2000 = vsel %vm1387, %v1996, -inf
  %2001 = vmax.xlane.f32.xlu0 %v2000
  %v2002 = vpop.xlane.xlu0 %2001
  %v2003 = vsub.f32 %v1995, %v1999
  %v2004 = vsub.f32 %v1996, %v2002
  %v2005 = vmul.f32 %v2003, 1.442695
  %v2006 = vpow.pop %v2005
  %v2007 = vmul.f32 %v2004, 1.442695
  %v2008 = vpow.pop %v2007
  %v2009 = vmul.f32 %v2006, %v27
  %v2010 = vmul.f32 %v2008, %v28
  %2013 = vrot.lane.b32.xlu0 %v2009, 96
  %v2014 = vpop.permute.xlu0 %2013
  %2015 = vrot.lane.b32.xlu0 %v2010, 96
  %v2016 = vpop.permute.xlu0 %2015
  %v2019 = vsel %vm100, %v2014, 0.0
  %2020 = vadd.xlane.f32.xlu0 %v2019
  %v2021 = vpop.xlane.xlu0 %2020
  %v2022 = vsel %vm100, %v2016, 0.0
  %2023 = vadd.xlane.f32.xlu0 %v2022
  %v2024 = vpop.xlane.xlu0 %2023
  %v2025 = vmax.f32 %v2021, 1e-30
  %v2026 = vmax.f32 %v2024, 1e-30
  %v2027 = vrcp.pop %v2025
  %v2028 = vrcp.pop %v2026
  %v2029 = vmul.f32 %v2009, %v2027
  %v2030 = vmul.f32 %v2010, %v2028
  %v2031 = vpack.c.bf16 %v2030, %v2029
  %v2032 = vpack.c.bf16 %v1815, %v1811
  %v2033 = vld [vmem:[%s4 + $0x8] sm:$0x1]
  %v2034 = vlaneseq
  %v2035 = vshrl.u32 %v2034, 7
  %v2036 = vsub.s32 0, %v2035
  %v2037 = vrot.slane %v2033, %v2036
  %2039 = vrot.lane.b32.xlu0 %v2031, 96
  %v2040 = vpop.permute.xlu0 %2039
  %v2042 = vsel %vm100, %v2040, 0
  %2044 = vmatprep.subr.bf16.mxu0 0
  %2045 = vmatpush1.bf16.msra.mxu0 %v2032
  %2046 = vmatprep.subr.bf16.mxu0 0
  %2047 = vmatpush1.bf16.msra.mxu0 0
  %2048 = vmatprep.subr.bf16.mxu0 0
  %2049 = vmatpush1.bf16.msra.mxu0 0
  %2050 = vmatprep.subr.bf16.mxu0 0
  %2051 = vmatpush1.bf16.msra.mxu0 0
  %2052 = vmatprep.subr.bf16.mxu0 0
  %2053 = vmatpush1.bf16.msra.mxu0 0
  %2054 = vmatprep.subr.bf16.mxu0 0
  %2055 = vmatpush1.bf16.msra.mxu0 0
  %2056 = vmatprep.subr.bf16.mxu0 0
  %2057 = vmatpush1.bf16.msra.mxu0 0
  %2058 = vmatprep.subr.bf16.mxu0 0
  %2059 = vmatpush1.bf16.msra.mxu0 0
  %2060 = vmatprep.subr.bf16.mxu0 0
  %2061 = vmatpush1.bf16.msra.mxu0 0
  %2062 = vmatprep.subr.bf16.mxu0 0
  %2063 = vmatpush1.bf16.msra.mxu0 0
  %2064 = vmatprep.subr.bf16.mxu0 0
  %2065 = vmatpush1.bf16.msra.mxu0 0
  %2066 = vmatprep.subr.bf16.mxu0 0
  %2067 = vmatpush1.bf16.msra.mxu0 0
  %2068 = vmatprep.subr.bf16.mxu0 0
  %2069 = vmatpush1.bf16.msra.mxu0 0
  %2070 = vmatprep.subr.bf16.mxu0 0
  %2071 = vmatpush1.bf16.msra.mxu0 0
  %2072 = vmatprep.subr.bf16.mxu0 0
  %2073 = vmatpush1.bf16.msra.mxu0 0
  %2074 = vmatprep.subr.bf16.mxu0 0
  %2075 = vmatpush1.bf16.msra.mxu0 0
  %2076 = vmatprep.mubr.bf16.mxu0 0
  %2077 = vmatmul.mubr.bf16.gmra.mrb[0].mxu0 %v2042
  %v2078 = vpop.f32.mrb[0].mxu0
  %v2079 = vadd.f32 %v2037, %v2078
  %v2080 = vpop.f32.mrb[0].mxu0
  %v2081 = vpop.f32.mrb[0].mxu0
  %v2082 = vadd.f32 %v2037, %v2081
  %v2083 = vpop.f32.mrb[0].mxu0
  %2084 = vdwg.mxu0
  %s2085 = scalar_lea.vmem %s2, 56
  %v2086 = vld [vmem:[%s2085] sm:$0xf]
  %v2087 = vld [vmem:[%s2085 + $0x4] sm:$0xf]
  %v2090 = vunpack.c.l.b16 %v2086
  %v2091 = vunpack.c.l.b16 %v2087
  %v2092 = vpack.c.b16 %v2091, %v2090
  %v2095 = vsel %vm100, %v85, 0
  %2097 = vmatprep.subr.bf16.mxu0 0
  %2098 = vmatpush1.bf16.msra.mxu0 %v2092
  %2099 = vmatprep.subr.bf16.mxu0 0
  %2100 = vmatpush1.bf16.msra.mxu0 0
  %2101 = vmatprep.subr.bf16.mxu0 0
  %2102 = vmatpush1.bf16.msra.mxu0 0
  %2103 = vmatprep.subr.bf16.mxu0 0
  %2104 = vmatpush1.bf16.msra.mxu0 0
  %2105 = vmatprep.subr.bf16.mxu0 0
  %2106 = vmatpush1.bf16.msra.mxu0 0
  %2107 = vmatprep.subr.bf16.mxu0 0
  %2108 = vmatpush1.bf16.msra.mxu0 0
  %2109 = vmatprep.subr.bf16.mxu0 0
  %2110 = vmatpush1.bf16.msra.mxu0 0
  %2111 = vmatprep.subr.bf16.mxu0 0
  %2112 = vmatpush1.bf16.msra.mxu0 0
  %2113 = vmatprep.subr.bf16.mxu0 0
  %2114 = vmatpush1.bf16.msra.mxu0 0
  %2115 = vmatprep.subr.bf16.mxu0 0
  %2116 = vmatpush1.bf16.msra.mxu0 0
  %2117 = vmatprep.subr.bf16.mxu0 0
  %2118 = vmatpush1.bf16.msra.mxu0 0
  %2119 = vmatprep.subr.bf16.mxu0 0
  %2120 = vmatpush1.bf16.msra.mxu0 0
  %2121 = vmatprep.subr.bf16.mxu0 0
  %2122 = vmatpush1.bf16.msra.mxu0 0
  %2123 = vmatprep.subr.bf16.mxu0 0
  %2124 = vmatpush1.bf16.msra.mxu0 0
  %2125 = vmatprep.subr.bf16.mxu0 0
  %2126 = vmatpush1.bf16.msra.mxu0 0
  %2127 = vmatprep.subr.bf16.mxu0 0
  %2128 = vmatpush1.bf16.msra.mxu0 0
  %2129 = vmatprep.mubr.bf16.mxu0 0
  %2130 = vmatmul.mubr.bf16.gmra.mrb[0].mxu0 %v2095
  %v2131 = vpop.f32.mrb[0].mxu0
  %v2132 = vadd.f32 0.0, %v2131
  %v2133 = vpop.f32.mrb[0].mxu0
  %v2134 = vpop.f32.mrb[0].mxu0
  %v2135 = vadd.f32 0.0, %v2134
  %v2136 = vpop.f32.mrb[0].mxu0
  %2137 = vdwg.mxu0
  %s2138 = scalar_lea.vmem %s2, 64
  %v2139 = vld [vmem:[%s2138] sm:$0xf]
  %v2140 = vld [vmem:[%s2138 + $0x4] sm:$0xf]
  %v2141 = vld [vmem:[%s4 + $0x9] sm:$0x1]
  %v2142 = vlaneseq
  %v2143 = vshrl.u32 %v2142, 7
  %v2144 = vsub.s32 0, %v2143
  %v2145 = vrot.slane %v2141, %v2144
  %2146 = vrot.lane.b32.xlu0 %v85, 96
  %v2147 = vpop.permute.xlu0 %2146
  %v2150 = vunpack.c.l.b16 %v2139
  %v2151 = vunpack.c.l.b16 %v2140
  %v2152 = vpack.c.b16 %v2151, %v2150
  %v2155 = vsel %vm100, %v2147, 0
  %2157 = vmatprep.subr.bf16.mxu0 0
  %2158 = vmatpush1.bf16.msra.mxu0 %v2152
  %2159 = vmatprep.subr.bf16.mxu0 0
  %2160 = vmatpush1.bf16.msra.mxu0 0
  %2161 = vmatprep.subr.bf16.mxu0 0
  %2162 = vmatpush1.bf16.msra.mxu0 0
  %2163 = vmatprep.subr.bf16.mxu0 0
  %2164 = vmatpush1.bf16.msra.mxu0 0
  %2165 = vmatprep.subr.bf16.mxu0 0
  %2166 = vmatpush1.bf16.msra.mxu0 0
  %2167 = vmatprep.subr.bf16.mxu0 0
  %2168 = vmatpush1.bf16.msra.mxu0 0
  %2169 = vmatprep.subr.bf16.mxu0 0
  %2170 = vmatpush1.bf16.msra.mxu0 0
  %2171 = vmatprep.subr.bf16.mxu0 0
  %2172 = vmatpush1.bf16.msra.mxu0 0
  %2173 = vmatprep.subr.bf16.mxu0 0
  %2174 = vmatpush1.bf16.msra.mxu0 0
  %2175 = vmatprep.subr.bf16.mxu0 0
  %2176 = vmatpush1.bf16.msra.mxu0 0
  %2177 = vmatprep.subr.bf16.mxu0 0
  %2178 = vmatpush1.bf16.msra.mxu0 0
  %2179 = vmatprep.subr.bf16.mxu0 0
  %2180 = vmatpush1.bf16.msra.mxu0 0
  %2181 = vmatprep.subr.bf16.mxu0 0
  %2182 = vmatpush1.bf16.msra.mxu0 0
  %2183 = vmatprep.subr.bf16.mxu0 0
  %2184 = vmatpush1.bf16.msra.mxu0 0
  %2185 = vmatprep.subr.bf16.mxu0 0
  %2186 = vmatpush1.bf16.msra.mxu0 0
  %2187 = vmatprep.subr.bf16.mxu0 0
  %2188 = vmatpush1.bf16.msra.mxu0 0
  %2189 = vmatprep.mubr.bf16.mxu0 0
  %2190 = vmatmul.mubr.bf16.gmra.mrb[0].mxu0 %v2155
  %v2191 = vpop.f32.mrb[0].mxu0
  %v2192 = vadd.f32 %v2145, %v2191
  %v2193 = vpop.f32.mrb[0].mxu0
  %v2194 = vpop.f32.mrb[0].mxu0
  %v2195 = vadd.f32 %v2145, %v2194
  %v2196 = vpop.f32.mrb[0].mxu0
  %2197 = vdwg.mxu0
  %v2198 = vpack.c.bf16 %v2135, %v2132
  %2200 = vrot.lane.b32.xlu0 %v2198, 112
  %v2201 = vpop.permute.xlu0 %2200
  %v2204 = vsel %vm100, %v698, 0
  %2206 = vmatprep.subr.bf16.mxu0 0
  %2207 = vmatpush1.bf16.msra.mxu0 %v2201
  %2208 = vmatprep.subr.bf16.mxu0 0
  %2209 = vmatpush1.bf16.msra.mxu0 0
  %2210 = vmatprep.subr.bf16.mxu0 0
  %2211 = vmatpush1.bf16.msra.mxu0 0
  %2212 = vmatprep.subr.bf16.mxu0 0
  %2213 = vmatpush1.bf16.msra.mxu0 0
  %2214 = vmatprep.subr.bf16.mxu0 0
  %2215 = vmatpush1.bf16.msra.mxu0 0
  %2216 = vmatprep.subr.bf16.mxu0 0
  %2217 = vmatpush1.bf16.msra.mxu0 0
  %2218 = vmatprep.subr.bf16.mxu0 0
  %2219 = vmatpush1.bf16.msra.mxu0 0
  %2220 = vmatprep.subr.bf16.mxu0 0
  %2221 = vmatpush1.bf16.msra.mxu0 0
  %2222 = vmatprep.subr.bf16.mxu0 0
  %2223 = vmatpush1.bf16.msra.mxu0 0
  %2224 = vmatprep.subr.bf16.mxu0 0
  %2225 = vmatpush1.bf16.msra.mxu0 0
  %2226 = vmatprep.subr.bf16.mxu0 0
  %2227 = vmatpush1.bf16.msra.mxu0 0
  %2228 = vmatprep.subr.bf16.mxu0 0
  %2229 = vmatpush1.bf16.msra.mxu0 0
  %2230 = vmatprep.subr.bf16.mxu0 0
  %2231 = vmatpush1.bf16.msra.mxu0 0
  %2232 = vmatprep.subr.bf16.mxu0 0
  %2233 = vmatpush1.bf16.msra.mxu0 0
  %2234 = vmatprep.subr.bf16.mxu0 0
  %2235 = vmatpush1.bf16.msra.mxu0 0
  %2236 = vmatprep.subr.bf16.mxu0 0
  %2237 = vmatpush1.bf16.msra.mxu0 0
  %2238 = vmatprep.mubr.bf16.mxu0 0
  %2239 = vmatmul.mubr.bf16.gmra.mrb[0].mxu0 %v2204
  %v2240 = vpop.f32.mrb[0].mxu0
  %v2241 = vadd.f32 0.0, %v2240
  %v2242 = vpop.f32.mrb[0].mxu0
  %v2243 = vpop.f32.mrb[0].mxu0
  %v2244 = vadd.f32 0.0, %v2243
  %v2245 = vpop.f32.mrb[0].mxu0
  %2246 = vdwg.mxu0
  %v2247 = vadd.f32 %v2132, %v2241
  %v2248 = vadd.f32 %v2135, %v2244
  %v2249 = vadd.f32 %v2247, %v2192
  %v2250 = vadd.f32 %v2248, %v2195
  %s2251 = scalar_lea.vmem %s2, 72
  %v2252 = vld [vmem:[%s2251] sm:$0xf]
  %v2253 = vld [vmem:[%s2251 + $0x4] sm:$0xf]
  %v2254 = vpack.c.bf16 %v2250, %v2249
  %v2257 = vunpack.c.l.b16 %v2252
  %v2258 = vunpack.c.l.b16 %v2253
  %v2259 = vpack.c.b16 %v2258, %v2257
  %v2262 = vsel %vm100, %v2254, 0
  %2264 = vmatprep.subr.bf16.mxu0 0
  %2265 = vmatpush1.bf16.msra.mxu0 %v2259
  %2266 = vmatprep.subr.bf16.mxu0 0
  %2267 = vmatpush1.bf16.msra.mxu0 0
  %2268 = vmatprep.subr.bf16.mxu0 0
  %2269 = vmatpush1.bf16.msra.mxu0 0
  %2270 = vmatprep.subr.bf16.mxu0 0
  %2271 = vmatpush1.bf16.msra.mxu0 0
  %2272 = vmatprep.subr.bf16.mxu0 0
  %2273 = vmatpush1.bf16.msra.mxu0 0
  %2274 = vmatprep.subr.bf16.mxu0 0
  %2275 = vmatpush1.bf16.msra.mxu0 0
  %2276 = vmatprep.subr.bf16.mxu0 0
  %2277 = vmatpush1.bf16.msra.mxu0 0
  %2278 = vmatprep.subr.bf16.mxu0 0
  %2279 = vmatpush1.bf16.msra.mxu0 0
  %2280 = vmatprep.subr.bf16.mxu0 0
  %2281 = vmatpush1.bf16.msra.mxu0 0
  %2282 = vmatprep.subr.bf16.mxu0 0
  %2283 = vmatpush1.bf16.msra.mxu0 0
  %2284 = vmatprep.subr.bf16.mxu0 0
  %2285 = vmatpush1.bf16.msra.mxu0 0
  %2286 = vmatprep.subr.bf16.mxu0 0
  %2287 = vmatpush1.bf16.msra.mxu0 0
  %2288 = vmatprep.subr.bf16.mxu0 0
  %2289 = vmatpush1.bf16.msra.mxu0 0
  %2290 = vmatprep.subr.bf16.mxu0 0
  %2291 = vmatpush1.bf16.msra.mxu0 0
  %2292 = vmatprep.subr.bf16.mxu0 0
  %2293 = vmatpush1.bf16.msra.mxu0 0
  %2294 = vmatprep.subr.bf16.mxu0 0
  %2295 = vmatpush1.bf16.msra.mxu0 0
  %2296 = vmatprep.mubr.bf16.mxu0 0
  %2297 = vmatmul.mubr.bf16.gmra.mrb[0].mxu0 %v2262
  %v2298 = vpop.f32.mrb[0].mxu0
  %v2299 = vadd.f32 0.0, %v2298
  %v2300 = vpop.f32.mrb[0].mxu0
  %v2301 = vpop.f32.mrb[0].mxu0
  %v2302 = vadd.f32 0.0, %v2301
  %v2303 = vpop.f32.mrb[0].mxu0
  %2304 = vdwg.mxu0
  %2307 = vrot.lane.b32.xlu0 %v2299, 32
  %v2308 = vpop.permute.xlu0 %2307
  %2309 = vrot.lane.b32.xlu0 %v2302, 32
  %v2310 = vpop.permute.xlu0 %2309
  %v2313 = vadd.f32 %v2132, %v2308
  %v2314 = vadd.f32 %v2135, %v2310
  %v2315 = vpack.c.bf16 %v2314, %v2313
  %2317 = vrot.lane.b32.xlu0 %v2315, 80
  %v2318 = vpop.permute.xlu0 %2317
  %2320 = vmatprep.subr.bf16.mxu0 0
  %2321 = vmatpush1.bf16.msra.mxu0 %v2318
  %2322 = vmatprep.subr.bf16.mxu0 0
  %2323 = vmatpush1.bf16.msra.mxu0 0
  %2324 = vmatprep.subr.bf16.mxu0 0
  %2325 = vmatpush1.bf16.msra.mxu0 0
  %2326 = vmatprep.subr.bf16.mxu0 0
  %2327 = vmatpush1.bf16.msra.mxu0 0
  %2328 = vmatprep.subr.bf16.mxu0 0
  %2329 = vmatpush1.bf16.msra.mxu0 0
  %2330 = vmatprep.subr.bf16.mxu0 0
  %2331 = vmatpush1.bf16.msra.mxu0 0
  %2332 = vmatprep.subr.bf16.mxu0 0
  %2333 = vmatpush1.bf16.msra.mxu0 0
  %2334 = vmatprep.subr.bf16.mxu0 0
  %2335 = vmatpush1.bf16.msra.mxu0 0
  %2336 = vmatprep.subr.bf16.mxu0 0
  %2337 = vmatpush1.bf16.msra.mxu0 0
  %2338 = vmatprep.subr.bf16.mxu0 0
  %2339 = vmatpush1.bf16.msra.mxu0 0
  %2340 = vmatprep.subr.bf16.mxu0 0
  %2341 = vmatpush1.bf16.msra.mxu0 0
  %2342 = vmatprep.subr.bf16.mxu0 0
  %2343 = vmatpush1.bf16.msra.mxu0 0
  %2344 = vmatprep.subr.bf16.mxu0 0
  %2345 = vmatpush1.bf16.msra.mxu0 0
  %2346 = vmatprep.subr.bf16.mxu0 0
  %2347 = vmatpush1.bf16.msra.mxu0 0
  %2348 = vmatprep.subr.bf16.mxu0 0
  %2349 = vmatpush1.bf16.msra.mxu0 0
  %2350 = vmatprep.subr.bf16.mxu0 0
  %2351 = vmatpush1.bf16.msra.mxu0 0
  %2352 = vmatprep.mubr.bf16.mxu0 0
  %2353 = vmatmul.mubr.bf16.gmra.mrb[0].mxu0 %v2204
  %v2354 = vpop.f32.mrb[0].mxu0
  %v2355 = vadd.f32 0.0, %v2354
  %v2356 = vpop.f32.mrb[0].mxu0
  %v2357 = vpop.f32.mrb[0].mxu0
  %v2358 = vadd.f32 0.0, %v2357
  %v2359 = vpop.f32.mrb[0].mxu0
  %2360 = vdwg.mxu0
  %2363 = vrot.lane.b32.xlu0 %v2355, 32
  %v2364 = vpop.permute.xlu0 %2363
  %2365 = vrot.lane.b32.xlu0 %v2358, 32
  %v2366 = vpop.permute.xlu0 %2365
  %v2369 = vadd.f32 %v2313, %v2364
  %v2370 = vadd.f32 %v2314, %v2366
  %2373 = vrot.lane.b32.xlu0 %v2192, 16
  %v2374 = vpop.permute.xlu0 %2373
  %2375 = vrot.lane.b32.xlu0 %v2195, 16
  %v2376 = vpop.permute.xlu0 %2375
  %v2379 = vadd.f32 %v2369, %v2374
  %v2380 = vadd.f32 %v2370, %v2376
  %s2381 = scalar_lea.vmem %s2, 80
  %v2382 = vld [vmem:[%s2381] sm:$0xf]
  %v2383 = vld [vmem:[%s2381 + $0x4] sm:$0xf]
  %v2384 = vpack.c.bf16 %v2380, %v2379
  %2386 = vrot.lane.b32.xlu0 %v2384, 96
  %v2387 = vpop.permute.xlu0 %2386
  %v2390 = vunpack.c.l.b16 %v2382
  %v2391 = vunpack.c.l.b16 %v2383
  %v2392 = vpack.c.b16 %v2391, %v2390
  %v2395 = vsel %vm100, %v2387, 0
  %2397 = vmatprep.subr.bf16.mxu0 0
  %2398 = vmatpush1.bf16.msra.mxu0 %v2392
  %2399 = vmatprep.subr.bf16.mxu0 0
  %2400 = vmatpush1.bf16.msra.mxu0 0
  %2401 = vmatprep.subr.bf16.mxu0 0
  %2402 = vmatpush1.bf16.msra.mxu0 0
  %2403 = vmatprep.subr.bf16.mxu0 0
  %2404 = vmatpush1.bf16.msra.mxu0 0
  %2405 = vmatprep.subr.bf16.mxu0 0
  %2406 = vmatpush1.bf16.msra.mxu0 0
  %2407 = vmatprep.subr.bf16.mxu0 0
  %2408 = vmatpush1.bf16.msra.mxu0 0
  %2409 = vmatprep.subr.bf16.mxu0 0
  %2410 = vmatpush1.bf16.msra.mxu0 0
  %2411 = vmatprep.subr.bf16.mxu0 0
  %2412 = vmatpush1.bf16.msra.mxu0 0
  %2413 = vmatprep.subr.bf16.mxu0 0
  %2414 = vmatpush1.bf16.msra.mxu0 0
  %2415 = vmatprep.subr.bf16.mxu0 0
  %2416 = vmatpush1.bf16.msra.mxu0 0
  %2417 = vmatprep.subr.bf16.mxu0 0
  %2418 = vmatpush1.bf16.msra.mxu0 0
  %2419 = vmatprep.subr.bf16.mxu0 0
  %2420 = vmatpush1.bf16.msra.mxu0 0
  %2421 = vmatprep.subr.bf16.mxu0 0
  %2422 = vmatpush1.bf16.msra.mxu0 0
  %2423 = vmatprep.subr.bf16.mxu0 0
  %2424 = vmatpush1.bf16.msra.mxu0 0
  %2425 = vmatprep.subr.bf16.mxu0 0
  %2426 = vmatpush1.bf16.msra.mxu0 0
  %2427 = vmatprep.subr.bf16.mxu0 0
  %2428 = vmatpush1.bf16.msra.mxu0 0
  %2429 = vmatprep.mubr.bf16.mxu0 0
  %2430 = vmatmul.mubr.bf16.gmra.mrb[0].mxu0 %v2395
  %v2431 = vpop.f32.mrb[0].mxu0
  %v2432 = vadd.f32 0.0, %v2431
  %v2433 = vpop.f32.mrb[0].mxu0
  %v2434 = vpop.f32.mrb[0].mxu0
  %v2435 = vadd.f32 0.0, %v2434
  %v2436 = vpop.f32.mrb[0].mxu0
  %2437 = vdwg.mxu0
  %v2438 = vpack.c.bf16 %v2435, %v2432
  %2440 = vrot.lane.b32.xlu0 %v2438, 112
  %v2441 = vpop.permute.xlu0 %2440
  %2443 = vmatprep.subr.bf16.mxu0 0
  %2444 = vmatpush1.bf16.msra.mxu0 %v2441
  %2445 = vmatprep.subr.bf16.mxu0 0
  %2446 = vmatpush1.bf16.msra.mxu0 0
  %2447 = vmatprep.subr.bf16.mxu0 0
  %2448 = vmatpush1.bf16.msra.mxu0 0
  %2449 = vmatprep.subr.bf16.mxu0 0
  %2450 = vmatpush1.bf16.msra.mxu0 0
  %2451 = vmatprep.subr.bf16.mxu0 0
  %2452 = vmatpush1.bf16.msra.mxu0 0
  %2453 = vmatprep.subr.bf16.mxu0 0
  %2454 = vmatpush1.bf16.msra.mxu0 0
  %2455 = vmatprep.subr.bf16.mxu0 0
  %2456 = vmatpush1.bf16.msra.mxu0 0
  %2457 = vmatprep.subr.bf16.mxu0 0
  %2458 = vmatpush1.bf16.msra.mxu0 0
  %2459 = vmatprep.subr.bf16.mxu0 0
  %2460 = vmatpush1.bf16.msra.mxu0 0
  %2461 = vmatprep.subr.bf16.mxu0 0
  %2462 = vmatpush1.bf16.msra.mxu0 0
  %2463 = vmatprep.subr.bf16.mxu0 0
  %2464 = vmatpush1.bf16.msra.mxu0 0
  %2465 = vmatprep.subr.bf16.mxu0 0
  %2466 = vmatpush1.bf16.msra.mxu0 0
  %2467 = vmatprep.subr.bf16.mxu0 0
  %2468 = vmatpush1.bf16.msra.mxu0 0
  %2469 = vmatprep.subr.bf16.mxu0 0
  %2470 = vmatpush1.bf16.msra.mxu0 0
  %2471 = vmatprep.subr.bf16.mxu0 0
  %2472 = vmatpush1.bf16.msra.mxu0 0
  %2473 = vmatprep.subr.bf16.mxu0 0
  %2474 = vmatpush1.bf16.msra.mxu0 0
  %2475 = vmatprep.mubr.bf16.mxu0 0
  %2476 = vmatmul.mubr.bf16.gmra.mrb[0].mxu0 %v2204
  %v2477 = vpop.f32.mrb[0].mxu0
  %v2478 = vadd.f32 0.0, %v2477
  %v2479 = vpop.f32.mrb[0].mxu0
  %v2480 = vpop.f32.mrb[0].mxu0
  %v2481 = vadd.f32 0.0, %v2480
  %v2482 = vpop.f32.mrb[0].mxu0
  %2483 = vdwg.mxu0
  %v2484 = vadd.f32 %v2432, %v2478
  %v2485 = vadd.f32 %v2435, %v2481
  %2486 = vrot.lane.b32.xlu0 %v2192, 96
  %v2487 = vpop.permute.xlu0 %2486
  %2488 = vrot.lane.b32.xlu0 %v2195, 96
  %v2489 = vpop.permute.xlu0 %2488
  %v2492 = vadd.f32 %v2484, %v2487
  %v2493 = vadd.f32 %v2485, %v2489
  %s2494 = scalar_lea.vmem %s2, 88
  %v2495 = vld [vmem:[%s2494] sm:$0xf]
  %v2496 = vld [vmem:[%s2494 + $0x4] sm:$0xf]
  %v2497 = vpack.c.bf16 %v2493, %v2492
  %s2498 = scalar_lea.vmem %s2, 96
  %v2499 = vld [vmem:[%s2498] sm:$0xf]
  %v2500 = vld [vmem:[%s2498 + $0x4] sm:$0xf]
  %v2501 = vpack.c.bf16 %v2082, %v2079
  %v2504 = vunpack.c.l.b16 %v2499
  %v2505 = vunpack.c.l.b16 %v2500
  %v2506 = vpack.c.b16 %v2505, %v2504
  %v2509 = vsel %vm100, %v2501, 0
  %2511 = vmatprep.subr.bf16.mxu0 0
  %2512 = vmatpush1.bf16.msra.mxu0 %v2506
  %2513 = vmatprep.subr.bf16.mxu0 0
  %2514 = vmatpush1.bf16.msra.mxu0 0
  %2515 = vmatprep.subr.bf16.mxu0 0
  %2516 = vmatpush1.bf16.msra.mxu0 0
  %2517 = vmatprep.subr.bf16.mxu0 0
  %2518 = vmatpush1.bf16.msra.mxu0 0
  %2519 = vmatprep.subr.bf16.mxu0 0
  %2520 = vmatpush1.bf16.msra.mxu0 0
  %2521 = vmatprep.subr.bf16.mxu0 0
  %2522 = vmatpush1.bf16.msra.mxu0 0
  %2523 = vmatprep.subr.bf16.mxu0 0
  %2524 = vmatpush1.bf16.msra.mxu0 0
  %2525 = vmatprep.subr.bf16.mxu0 0
  %2526 = vmatpush1.bf16.msra.mxu0 0
  %2527 = vmatprep.subr.bf16.mxu0 0
  %2528 = vmatpush1.bf16.msra.mxu0 0
  %2529 = vmatprep.subr.bf16.mxu0 0
  %2530 = vmatpush1.bf16.msra.mxu0 0
  %2531 = vmatprep.subr.bf16.mxu0 0
  %2532 = vmatpush1.bf16.msra.mxu0 0
  %2533 = vmatprep.subr.bf16.mxu0 0
  %2534 = vmatpush1.bf16.msra.mxu0 0
  %2535 = vmatprep.subr.bf16.mxu0 0
  %2536 = vmatpush1.bf16.msra.mxu0 0
  %2537 = vmatprep.subr.bf16.mxu0 0
  %2538 = vmatpush1.bf16.msra.mxu0 0
  %2539 = vmatprep.subr.bf16.mxu0 0
  %2540 = vmatpush1.bf16.msra.mxu0 0
  %2541 = vmatprep.subr.bf16.mxu0 0
  %2542 = vmatpush1.bf16.msra.mxu0 0
  %2543 = vmatprep.mubr.bf16.mxu0 0
  %2544 = vmatmul.mubr.bf16.gmra.mrb[0].mxu0 %v2509
  %v2545 = vpop.f32.mrb[0].mxu0
  %v2546 = vadd.f32 0.0, %v2545
  %v2547 = vpop.f32.mrb[0].mxu0
  %v2548 = vpop.f32.mrb[0].mxu0
  %v2549 = vadd.f32 0.0, %v2548
  %v2550 = vpop.f32.mrb[0].mxu0
  %2551 = vdwg.mxu0
  %v2554 = vunpack.c.l.b16 %v2495
  %v2555 = vunpack.c.l.b16 %v2496
  %v2556 = vpack.c.b16 %v2555, %v2554
  %v2559 = vsel %vm100, %v2497, 0
  %2561 = vmatprep.subr.bf16.mxu0 0
  %2562 = vmatpush1.bf16.msra.mxu0 %v2556
  %2563 = vmatprep.subr.bf16.mxu0 0
  %2564 = vmatpush1.bf16.msra.mxu0 0
  %2565 = vmatprep.subr.bf16.mxu0 0
  %2566 = vmatpush1.bf16.msra.mxu0 0
  %2567 = vmatprep.subr.bf16.mxu0 0
  %2568 = vmatpush1.bf16.msra.mxu0 0
  %2569 = vmatprep.subr.bf16.mxu0 0
  %2570 = vmatpush1.bf16.msra.mxu0 0
  %2571 = vmatprep.subr.bf16.mxu0 0
  %2572 = vmatpush1.bf16.msra.mxu0 0
  %2573 = vmatprep.subr.bf16.mxu0 0
  %2574 = vmatpush1.bf16.msra.mxu0 0
  %2575 = vmatprep.subr.bf16.mxu0 0
  %2576 = vmatpush1.bf16.msra.mxu0 0
  %2577 = vmatprep.subr.bf16.mxu0 0
  %2578 = vmatpush1.bf16.msra.mxu0 0
  %2579 = vmatprep.subr.bf16.mxu0 0
  %2580 = vmatpush1.bf16.msra.mxu0 0
  %2581 = vmatprep.subr.bf16.mxu0 0
  %2582 = vmatpush1.bf16.msra.mxu0 0
  %2583 = vmatprep.subr.bf16.mxu0 0
  %2584 = vmatpush1.bf16.msra.mxu0 0
  %2585 = vmatprep.subr.bf16.mxu0 0
  %2586 = vmatpush1.bf16.msra.mxu0 0
  %2587 = vmatprep.subr.bf16.mxu0 0
  %2588 = vmatpush1.bf16.msra.mxu0 0
  %2589 = vmatprep.subr.bf16.mxu0 0
  %2590 = vmatpush1.bf16.msra.mxu0 0
  %2591 = vmatprep.subr.bf16.mxu0 0
  %2592 = vmatpush1.bf16.msra.mxu0 0
  %2593 = vmatprep.mubr.bf16.mxu0 0
  %2594 = vmatmul.mubr.bf16.gmra.mrb[0].mxu0 %v2559
  %v2595 = vpop.f32.mrb[0].mxu0
  %v2596 = vadd.f32 %v2546, %v2595
  %v2597 = vpop.f32.mrb[0].mxu0
  %v2598 = vpop.f32.mrb[0].mxu0
  %v2599 = vadd.f32 %v2549, %v2598
  %v2600 = vpop.f32.mrb[0].mxu0
  %2601 = vdwg.mxu0
  %v2602 = vld [vmem:[%s4 + $0xa] sm:$0x1]
  %v2603 = vlaneseq
  %v2604 = vshrl.u32 %v2603, 7
  %v2605 = vsub.s32 0, %v2604
  %v2606 = vrot.slane %v2602, %v2605
  %v2607 = vadd.f32 %v2596, %v2606
  %v2608 = vadd.f32 %v2599, %v2606
  %vm2609 = vcmp.lt.s32.totalorder %v33, 4
  %v2610 = vsel %vm2609, %v2607, -1e+30
  %v2611 = vsel %vm2609, %v2608, -1e+30
  %2612 = vmax.xlane.f32.xlu0 %v2610
  %v2613 = vpop.xlane.xlu0 %2612
  %2614 = vmax.xlane.f32.xlu0 %v2611
  %v2615 = vpop.xlane.xlu0 %2614
  %v2616 = vsub.f32 %v2610, %v2613
  %v2617 = vsub.f32 %v2611, %v2615
  %v2618 = vmul.f32 %v2616, 1.442695
  %v2619 = vpow.pop %v2618
  %v2620 = vmul.f32 %v2617, 1.442695
  %v2621 = vpow.pop %v2620
  %2622 = vadd.xlane.f32.xlu0 %v2619
  %v2623 = vpop.xlane.xlu0 %2622
  %2624 = vadd.xlane.f32.xlu0 %v2621
  %v2625 = vpop.xlane.xlu0 %2624
  %v2626 = vrcp.pop %v2623
  %v2627 = vmul.f32 %v2619, %v2626
  %v2628 = vrcp.pop %v2625
  %v2629 = vmul.f32 %v2621, %v2628
  %2630 = vst [vmem:[%s6] sm:$0xff] %v2627
  %2631 = vst [vmem:[%s6 + $0x8] sm:$0xff] %v2629
  // Predicated region
  $region26: #{comb_forward.1} parent=0 // pred_check
    _
  $region27: #{comb_forward.1} parent=0 // pred_check_branch
    %2633 = sbr.rel (0) target = $region29
  $region28: #{comb_forward.1} parent=0 // pred_region
    _
  $region29: #{comb_forward.1} parent=0 // pred_fallthru
    _
  // Predicated region
  $region30: #{comb_forward.1} parent=0 // pred_check
    _
  $region31: #{comb_forward.1} parent=0 // pred_check_branch
    %2635 = sbr.rel (0) target = $region33
  $region32: #{comb_forward.1} parent=0 // pred_region
    _
  $region33: #{comb_forward.1} parent=0 // pred_fallthru
    _

</llo_original>
